<compile_context>
chip_gen: v7x
topology: tpu7x:2x2x1
jax: 0.10.0
libtpu: 0.0.40
codegen_flags: <defaults>
</compile_context>

<pallas_src>
import jax
import jax.numpy as jnp
from jax import lax
from jax.experimental import pallas as pl
from jax.experimental.pallas import tpu as pltpu
import numpy as np

HIDDEN = 8   # encoder output channels
C_DEC = 5    # fused decoder channels: seed(1) + instance(4)
C_PAD = 8    # decoder channels padded for (8,128)-aligned, lane-dense stores


def _pad_hw1(x):
    """Zero-pad a (Bb, H, W, C) value by 1 on each side of H and W (in-kernel)."""
    Bb, H, W, C = x.shape
    zrow = jnp.zeros((Bb, 1, W, C), x.dtype)
    x = jnp.concatenate([zrow, x, zrow], axis=1)
    zcol = jnp.zeros((Bb, H + 2, 1, C), x.dtype)
    return jnp.concatenate([zcol, x, zcol], axis=2)


def _conv3x3(xpad, w_mat, bias):
    """3x3 'same' conv as a single im2col matmul.

    xpad: (Bb, H+2, W+2, Cin) f32, w_mat: (9*Cin, Cout) (dy-major, dx, cin order),
    bias: (1, Cout).  Returns (Bb*H*W, Cout) f32.
    """
    Bb, Hp2, Wp2, Cin = xpad.shape
    H, W = Hp2 - 2, Wp2 - 2
    taps = [xpad[:, dy:dy + H, dx:dx + W, :]
            for dy in range(3) for dx in range(3)]
    col = jnp.concatenate(taps, axis=-1).reshape(Bb * H * W, 9 * Cin)
    return jnp.dot(col, w_mat, preferred_element_type=jnp.float32) + bias


def embed_seg_kernel(x_ref, w_enc_ref, b_enc_ref, w_dec_ref, b_dec_ref, out_ref):
    Bb, H, W, Cin = x_ref.shape  # Bb == 1 (one batch item per grid step)

    # Encoder: 3x3 conv + ReLU (zero halo folded in-kernel).
    z = jnp.maximum(
        _conv3x3(_pad_hw1(x_ref[...]), w_enc_ref[...], b_enc_ref[...]), 0.0)

    # Fused decoder: seed + instance channels in one matmul.
    dec = _conv3x3(_pad_hw1(z.reshape(Bb, H, W, HIDDEN)),
                   w_dec_ref[...], b_dec_ref[...])          # (H*W, C_PAD)

    # Channel map: 0 = seed (sigmoid), 1:3 = sigma (sigmoid),
    #              3:5 = offsets y,x (tanh), 5:8 = zero padding (ignored).
    ch = lax.broadcasted_iota(jnp.int32, dec.shape, 1)
    act = jnp.where(ch < 3, jax.nn.sigmoid(dec), jnp.tanh(dec))

    # Lane-dense store: (C_PAD, H*W) with H*W on the 128-lane axis.
    out_ref[...] = jnp.transpose(act).reshape(1, C_PAD, H * W)


def make_params(key, cin):
    ks = jax.random.split(key, 6)
    scale = 0.1
    return {
        "w_enc":  scale * jax.random.normal(ks[0], (3, 3, cin, HIDDEN), jnp.float32),
        "b_enc":  scale * jax.random.normal(ks[1], (1, HIDDEN), jnp.float32),
        "w_seed": scale * jax.random.normal(ks[2], (3, 3, HIDDEN, 1), jnp.float32),
        "b_seed": scale * jax.random.normal(ks[3], (1, 1), jnp.float32),
        "w_inst": scale * jax.random.normal(ks[4], (3, 3, HIDDEN, 4), jnp.float32),
        "b_inst": scale * jax.random.normal(ks[5], (1, 4), jnp.float32),
    }


def embed_seg_forward(x_nchw, params):
    """Returns (seed_map (B,1,H,W), offset_map (B,2,H,W), sigma_map (B,2,H,W))."""
    B, Cin, H, W = x_nchw.shape
    x_nhwc = jnp.transpose(x_nchw, (0, 2, 3, 1)).astype(jnp.float32)

    # Reshape weights to im2col matrices; fuse + pad the two decoders (wrapper-side).
    w_enc_mat = params["w_enc"].reshape(9 * Cin, HIDDEN)
    w_dec = jnp.concatenate([params["w_seed"], params["w_inst"]], axis=-1)
    w_dec = jnp.pad(w_dec, ((0, 0), (0, 0), (0, 0), (0, C_PAD - C_DEC)))
    w_dec_mat = w_dec.reshape(9 * HIDDEN, C_PAD)
    b_dec = jnp.pad(
        jnp.concatenate([params["b_seed"], params["b_inst"]], axis=-1),
        ((0, 0), (0, C_PAD - C_DEC)))

    fused = pl.pallas_call(
        embed_seg_kernel,
        out_shape=jax.ShapeDtypeStruct((B, C_PAD, H * W), jnp.float32),
        grid_spec=pltpu.PrefetchScalarGridSpec(
            num_scalar_prefetch=0,
            grid=(B,),
            in_specs=[
                pl.BlockSpec((1, H, W, Cin), lambda b: (b, 0, 0, 0)),
                pl.BlockSpec((9 * Cin, HIDDEN), lambda b: (0, 0)),
                pl.BlockSpec((1, HIDDEN), lambda b: (0, 0)),
                pl.BlockSpec((9 * HIDDEN, C_PAD), lambda b: (0, 0)),
                pl.BlockSpec((1, C_PAD), lambda b: (0, 0)),
            ],
            out_specs=pl.BlockSpec((1, C_PAD, H * W), lambda b: (b, 0, 0)),
        ),
        compiler_params=pltpu.CompilerParams(
            dimension_semantics=("parallel",),
            vmem_limit_bytes=32 * 1024 * 1024,
        ),
    )(x_nhwc, w_enc_mat, params["b_enc"], w_dec_mat, b_dec)

    # Free channel slices + reshapes (already channel-major): no output transposes.
    seed = fused[:, 0:1, :].reshape(B, 1, H, W)
    sigma = fused[:, 1:3, :].reshape(B, 2, H, W)
    offset = fused[:, 3:5, :].reshape(B, 2, H, W)
    return seed, offset, sigma


def embed_seg_reference(x_nchw, params):
    """Pure-JAX reference (XLA convs) with identical semantics, for validation."""
    x = jnp.transpose(x_nchw, (0, 2, 3, 1)).astype(jnp.float32)

    def conv(t, w, b):
        return lax.conv_general_dilated(
            t, w, window_strides=(1, 1), padding="SAME",
            dimension_numbers=("NHWC", "HWIO", "NHWC")) + b

    z = jax.nn.relu(conv(x, params["w_enc"], params["b_enc"]))
    seed = jax.nn.sigmoid(conv(z, params["w_seed"], params["b_seed"]))
    inst = conv(z, params["w_inst"], params["b_inst"])
    sigma = jax.nn.sigmoid(inst[..., 0:2])
    offset = jnp.concatenate(
        [jnp.tanh(inst[..., 2:3]), jnp.tanh(inst[..., 3:4])], axis=-1)
    to_nchw = lambda t: jnp.transpose(t, (0, 3, 1, 2))
    return to_nchw(seed), to_nchw(offset), to_nchw(sigma)


if __name__ == "__main__":
    key = jax.random.PRNGKey(0)
    k_x, k_p = jax.random.split(key)

    B, Cin, H, W = 2, 4, 16, 16
    x = jax.random.normal(k_x, (B, Cin, H, W), jnp.float32)
    params = make_params(k_p, Cin)

    seed_map, offset_map, sigma_map = embed_seg_forward(x, params)
    jax.block_until_ready((seed_map, offset_map, sigma_map))

    # Correctness check against the pure-JAX reference.
    ref = embed_seg_reference(x, params)
    for got, want in zip((seed_map, offset_map, sigma_map), ref):
        assert got.shape == want.shape, (got.shape, want.shape)
        np.testing.assert_allclose(np.asarray(got), np.asarray(want),
                                   rtol=1e-4, atol=1e-4)

    print("KERNEL_OK")
</pallas_src>

<mosaic_0001>
module attributes {stable_mosaic.version = 11 : i64} {
  func.func @embed_seg_kernel(%arg0: i32, %arg1: memref<1x16x16x4xf32, #tpu.memory_space<vmem>>, %arg2: memref<36x8xf32, #tpu.memory_space<vmem>>, %arg3: memref<1x8xf32, #tpu.memory_space<vmem>>, %arg4: memref<72x8xf32, #tpu.memory_space<vmem>>, %arg5: memref<1x8xf32, #tpu.memory_space<vmem>>, %arg6: memref<1x8x256xf32, #tpu.memory_space<vmem>>) attributes {dimension_semantics = [#tpu.dimension_semantics<parallel>], iteration_bounds = array<i64: 2>, scalar_prefetch = 0 : i64, scratch_operands = 0 : i64, tpu.core_type = #tpu.core_type<tc>, window_params = [{transform_indices = @transform_0, window_bounds = array<i64: 1, 16, 16, 4>}, {pipeline_mode = #tpu.pipeline_mode<synchronous>, transform_indices = @transform_1, window_bounds = array<i64: 36, 8>}, {pipeline_mode = #tpu.pipeline_mode<synchronous>, transform_indices = @transform_2, window_bounds = array<i64: 1, 8>}, {pipeline_mode = #tpu.pipeline_mode<synchronous>, transform_indices = @transform_3, window_bounds = array<i64: 72, 8>}, {pipeline_mode = #tpu.pipeline_mode<synchronous>, transform_indices = @transform_4, window_bounds = array<i64: 1, 8>}, {transform_indices = @transform_5, window_bounds = array<i64: 1, 8, 256>}]} {
    %c0 = arith.constant 0 : index
    %c0_0 = arith.constant 0 : index
    %c0_1 = arith.constant 0 : index
    %c0_2 = arith.constant 0 : index
    %0 = vector.load %arg1[%c0, %c0_0, %c0_1, %c0_2] : memref<1x16x16x4xf32, #tpu.memory_space<vmem>>, vector<1x16x16x4xf32>
    %cst = arith.constant 0.000000e+00 : f32
    %1 = vector.broadcast %cst : f32 to vector<1x1x16x4xf32>
    %2 = tpu.concatenate %1, %0, %1 in 1 : vector<1x1x16x4xf32>, vector<1x16x16x4xf32>, vector<1x1x16x4xf32> -> vector<1x18x16x4xf32>
    %cst_3 = arith.constant 0.000000e+00 : f32
    %3 = vector.broadcast %cst_3 : f32 to vector<1x18x1x4xf32>
    %4 = tpu.concatenate %3, %2, %3 in 2 : vector<1x18x1x4xf32>, vector<1x18x16x4xf32>, vector<1x18x1x4xf32> -> vector<1x18x18x4xf32>
    %c0_4 = arith.constant 0 : index
    %c0_5 = arith.constant 0 : index
    %5 = vector.load %arg2[%c0_4, %c0_5] : memref<36x8xf32, #tpu.memory_space<vmem>>, vector<36x8xf32>
    %c0_6 = arith.constant 0 : index
    %c0_7 = arith.constant 0 : index
    %6 = vector.load %arg3[%c0_6, %c0_7] : memref<1x8xf32, #tpu.memory_space<vmem>>, vector<1x8xf32>
    %7 = vector.extract_strided_slice %4 {offsets = [0, 0, 0, 0], sizes = [1, 16, 16, 4], strides = [1, 1, 1, 1]} : vector<1x18x18x4xf32> to vector<1x16x16x4xf32>
    %8 = vector.extract_strided_slice %4 {offsets = [0, 0, 1, 0], sizes = [1, 16, 16, 4], strides = [1, 1, 1, 1]} : vector<1x18x18x4xf32> to vector<1x16x16x4xf32>
    %9 = vector.extract_strided_slice %4 {offsets = [0, 0, 2, 0], sizes = [1, 16, 16, 4], strides = [1, 1, 1, 1]} : vector<1x18x18x4xf32> to vector<1x16x16x4xf32>
    %10 = vector.extract_strided_slice %4 {offsets = [0, 1, 0, 0], sizes = [1, 16, 16, 4], strides = [1, 1, 1, 1]} : vector<1x18x18x4xf32> to vector<1x16x16x4xf32>
    %11 = vector.extract_strided_slice %4 {offsets = [0, 1, 1, 0], sizes = [1, 16, 16, 4], strides = [1, 1, 1, 1]} : vector<1x18x18x4xf32> to vector<1x16x16x4xf32>
    %12 = vector.extract_strided_slice %4 {offsets = [0, 1, 2, 0], sizes = [1, 16, 16, 4], strides = [1, 1, 1, 1]} : vector<1x18x18x4xf32> to vector<1x16x16x4xf32>
    %13 = vector.extract_strided_slice %4 {offsets = [0, 2, 0, 0], sizes = [1, 16, 16, 4], strides = [1, 1, 1, 1]} : vector<1x18x18x4xf32> to vector<1x16x16x4xf32>
    %14 = vector.extract_strided_slice %4 {offsets = [0, 2, 1, 0], sizes = [1, 16, 16, 4], strides = [1, 1, 1, 1]} : vector<1x18x18x4xf32> to vector<1x16x16x4xf32>
    %15 = vector.extract_strided_slice %4 {offsets = [0, 2, 2, 0], sizes = [1, 16, 16, 4], strides = [1, 1, 1, 1]} : vector<1x18x18x4xf32> to vector<1x16x16x4xf32>
    %16 = tpu.concatenate %7, %8, %9, %10, %11, %12, %13, %14, %15 in 3 : vector<1x16x16x4xf32>, vector<1x16x16x4xf32>, vector<1x16x16x4xf32>, vector<1x16x16x4xf32>, vector<1x16x16x4xf32>, vector<1x16x16x4xf32>, vector<1x16x16x4xf32>, vector<1x16x16x4xf32>, vector<1x16x16x4xf32> -> vector<1x16x16x36xf32>
    %17 = vector.shape_cast %16 : vector<1x16x16x36xf32> to vector<256x36xf32>
    %cst_8 = arith.constant dense<0.000000e+00> : vector<256x8xf32>
    %18 = tpu.matmul %17, %5, %cst_8 {dimension_numbers = #tpu.dot_dimension_numbers<[1], [0], [0], [1], [0, 0, 1, 1], [], []>} : vector<256x36xf32>, vector<36x8xf32>, vector<256x8xf32> -> vector<256x8xf32>
    %19 = vector.broadcast %6 : vector<1x8xf32> to vector<256x8xf32>
    %20 = arith.addf %18, %19 : vector<256x8xf32>
    %cst_9 = arith.constant 0.000000e+00 : f32
    %21 = vector.broadcast %cst_9 : f32 to vector<256x8xf32>
    %22 = arith.maximumf %20, %21 : vector<256x8xf32>
    %23 = vector.shape_cast %22 : vector<256x8xf32> to vector<1x16x16x8xf32>
    %cst_10 = arith.constant 0.000000e+00 : f32
    %24 = vector.broadcast %cst_10 : f32 to vector<1x1x16x8xf32>
    %25 = tpu.concatenate %24, %23, %24 in 1 : vector<1x1x16x8xf32>, vector<1x16x16x8xf32>, vector<1x1x16x8xf32> -> vector<1x18x16x8xf32>
    %cst_11 = arith.constant 0.000000e+00 : f32
    %26 = vector.broadcast %cst_11 : f32 to vector<1x18x1x8xf32>
    %27 = tpu.concatenate %26, %25, %26 in 2 : vector<1x18x1x8xf32>, vector<1x18x16x8xf32>, vector<1x18x1x8xf32> -> vector<1x18x18x8xf32>
    %c0_12 = arith.constant 0 : index
    %c0_13 = arith.constant 0 : index
    %28 = vector.load %arg4[%c0_12, %c0_13] : memref<72x8xf32, #tpu.memory_space<vmem>>, vector<72x8xf32>
    %c0_14 = arith.constant 0 : index
    %c0_15 = arith.constant 0 : index
    %29 = vector.load %arg5[%c0_14, %c0_15] : memref<1x8xf32, #tpu.memory_space<vmem>>, vector<1x8xf32>
    %30 = vector.extract_strided_slice %27 {offsets = [0, 0, 0, 0], sizes = [1, 16, 16, 8], strides = [1, 1, 1, 1]} : vector<1x18x18x8xf32> to vector<1x16x16x8xf32>
    %31 = vector.extract_strided_slice %27 {offsets = [0, 0, 1, 0], sizes = [1, 16, 16, 8], strides = [1, 1, 1, 1]} : vector<1x18x18x8xf32> to vector<1x16x16x8xf32>
    %32 = vector.extract_strided_slice %27 {offsets = [0, 0, 2, 0], sizes = [1, 16, 16, 8], strides = [1, 1, 1, 1]} : vector<1x18x18x8xf32> to vector<1x16x16x8xf32>
    %33 = vector.extract_strided_slice %27 {offsets = [0, 1, 0, 0], sizes = [1, 16, 16, 8], strides = [1, 1, 1, 1]} : vector<1x18x18x8xf32> to vector<1x16x16x8xf32>
    %34 = vector.extract_strided_slice %27 {offsets = [0, 1, 1, 0], sizes = [1, 16, 16, 8], strides = [1, 1, 1, 1]} : vector<1x18x18x8xf32> to vector<1x16x16x8xf32>
    %35 = vector.extract_strided_slice %27 {offsets = [0, 1, 2, 0], sizes = [1, 16, 16, 8], strides = [1, 1, 1, 1]} : vector<1x18x18x8xf32> to vector<1x16x16x8xf32>
    %36 = vector.extract_strided_slice %27 {offsets = [0, 2, 0, 0], sizes = [1, 16, 16, 8], strides = [1, 1, 1, 1]} : vector<1x18x18x8xf32> to vector<1x16x16x8xf32>
    %37 = vector.extract_strided_slice %27 {offsets = [0, 2, 1, 0], sizes = [1, 16, 16, 8], strides = [1, 1, 1, 1]} : vector<1x18x18x8xf32> to vector<1x16x16x8xf32>
    %38 = vector.extract_strided_slice %27 {offsets = [0, 2, 2, 0], sizes = [1, 16, 16, 8], strides = [1, 1, 1, 1]} : vector<1x18x18x8xf32> to vector<1x16x16x8xf32>
    %39 = tpu.concatenate %30, %31, %32, %33, %34, %35, %36, %37, %38 in 3 : vector<1x16x16x8xf32>, vector<1x16x16x8xf32>, vector<1x16x16x8xf32>, vector<1x16x16x8xf32>, vector<1x16x16x8xf32>, vector<1x16x16x8xf32>, vector<1x16x16x8xf32>, vector<1x16x16x8xf32>, vector<1x16x16x8xf32> -> vector<1x16x16x72xf32>
    %40 = vector.shape_cast %39 : vector<1x16x16x72xf32> to vector<256x72xf32>
    %cst_16 = arith.constant dense<0.000000e+00> : vector<256x8xf32>
    %41 = tpu.matmul %40, %28, %cst_16 {dimension_numbers = #tpu.dot_dimension_numbers<[1], [0], [0], [1], [0, 0, 1, 1], [], []>} : vector<256x72xf32>, vector<72x8xf32>, vector<256x8xf32> -> vector<256x8xf32>
    %42 = vector.broadcast %29 : vector<1x8xf32> to vector<256x8xf32>
    %43 = arith.addf %41, %42 : vector<256x8xf32>
    %44 = tpu.iota {dimensions = array<i32: 1>} : vector<256x8xi32>
    %c3_i32 = arith.constant 3 : i32
    %45 = vector.broadcast %c3_i32 : i32 to vector<256x8xi32>
    %46 = arith.cmpi slt, %44, %45 : vector<256x8xi32>
    %47 = arith.negf %43 : vector<256x8xf32>
    %48 = math.exp %47 : vector<256x8xf32>
    %cst_17 = arith.constant 1.000000e+00 : f32
    %49 = vector.broadcast %cst_17 : f32 to vector<256x8xf32>
    %50 = arith.addf %49, %48 : vector<256x8xf32>
    %51 = arith.divf %49, %50 : vector<256x8xf32>
    %52 = math.tanh %43 : vector<256x8xf32>
    %53 = arith.select %46, %51, %52 : vector<256x8xi1>, vector<256x8xf32>
    %54 = tpu.transpose %53, [1, 0] : vector<256x8xf32> -> vector<8x256xf32>
    %55 = vector.shape_cast %54 : vector<8x256xf32> to vector<1x8x256xf32>
    %c0_18 = arith.constant 0 : index
    %c0_19 = arith.constant 0 : index
    %c0_20 = arith.constant 0 : index
    %56 = vector.load %arg6[%c0_18, %c0_19, %c0_20] : memref<1x8x256xf32, #tpu.memory_space<vmem>>, vector<1x8x256xf32>
    tpu.vector_store %arg6[%c0_18, %c0_19, %c0_20], %55 {strides = array<i32>} : memref<1x8x256xf32, #tpu.memory_space<vmem>>, vector<1x8x256xf32>,
    return
  }
  func.func @transform_0(%arg0: i32) -> (i32, i32, i32, i32) {
    %c0_i32 = arith.constant 0 : i32
    %c0_i32_0 = arith.constant 0 : i32
    %c0_i32_1 = arith.constant 0 : i32
    %c0_i32_2 = arith.constant 0 : i32
    return %arg0, %c0_i32, %c0_i32_0, %c0_i32_1 : i32, i32, i32, i32
  }
  func.func @transform_1(%arg0: i32) -> (i32, i32) {
    %c0_i32 = arith.constant 0 : i32
    %c0_i32_0 = arith.constant 0 : i32
    %c0_i32_1 = arith.constant 0 : i32
    return %c0_i32, %c0_i32_0 : i32, i32
  }
  func.func @transform_2(%arg0: i32) -> (i32, i32) {
    %c0_i32 = arith.constant 0 : i32
    %c0_i32_0 = arith.constant 0 : i32
    %c0_i32_1 = arith.constant 0 : i32
    return %c0_i32, %c0_i32_0 : i32, i32
  }
  func.func @transform_3(%arg0: i32) -> (i32, i32) {
    %c0_i32 = arith.constant 0 : i32
    %c0_i32_0 = arith.constant 0 : i32
    %c0_i32_1 = arith.constant 0 : i32
    return %c0_i32, %c0_i32_0 : i32, i32
  }
  func.func @transform_4(%arg0: i32) -> (i32, i32) {
    %c0_i32 = arith.constant 0 : i32
    %c0_i32_0 = arith.constant 0 : i32
    %c0_i32_1 = arith.constant 0 : i32
    return %c0_i32, %c0_i32_0 : i32, i32
  }
  func.func @transform_5(%arg0: i32) -> (i32, i32, i32) {
    %c0_i32 = arith.constant 0 : i32
    %c0_i32_0 = arith.constant 0 : i32
    %c0_i32_1 = arith.constant 0 : i32
    return %arg0, %c0_i32, %c0_i32_0 : i32, i32, i32
  }
}

</mosaic_0001>

<llo_original>
// kernel: tpu_custom_call.1
$region0: #{tpu_custom_call.1}
  #allocation0 [shape = 'u32[]', space=smem, size = 0x4, offset = 0x4, fixed_abs, tag = 'smem constant byte address 0x4 - core index']
  #allocation1 [shape = 'u32[144,128]{1,0:T(1,128)}', space=vmem, size = 0x12000, scoped, tag = 'internal scratch']
  %s0 = inlined_call_operand.vmem [shape: f32[2,16,16,4], index: 0, kind: input, shape index: {}]
  %s1 = inlined_call_operand.vmem [shape: f32[36,8], index: 1, kind: input, shape index: {}]
  %s2 = inlined_call_operand.vmem [shape: f32[1,8], index: 2, kind: input, shape index: {}]
  %s3 = inlined_call_operand.vmem [shape: f32[72,8], index: 3, kind: input, shape index: {}]
  %s4 = inlined_call_operand.vmem [shape: f32[1,8], index: 4, kind: input, shape index: {}]
  %s5 = inlined_call_operand.hbm [shape: f32[2,8,256], index: 5, kind: output, shape index: {}]
  %s6 = sld [smem:[#allocation0]]
  $region53: #{tpu_custom_call.1} parent=0
    _
  %s8 = ssub.s32 1, %s6
  %s9 = scalar_select 0, %s8, %s6
  $region1: #{tpu_custom_call.1} parent=0
    #allocation2 [shape = 'u8[16384]{0}', space=vmem, size = 0x4000, scoped, tag = 'output window, operand 0']
    #allocation3 [shape = 's32[2]{0}', space=sflag, size = 0x8, scoped, tag = 'scoped memory for tpu_custom_call.1']
    %10 = vsyncpa [#allocation3], 0
    %s11 = scalar_lea.sflag [#allocation3], 1
    %12 = vsyncpa %s11, 0
    loop: start=0, step=1, limit=4
    $region2: #{tpu_custom_call.1} parent=1 // loop_pre_header
      _
    $region3: #{tpu_custom_call.1} parent=1 // loop_header
      %s14 = sphi 0, %s18
      %p15 = scmp.ge.s32.totalorder %s14, 4
      %s24 = sphi 0, %s26
      %s27 = sphi 0, %s24
      %s28 = sphi 0, %s27
      %s44 = sphi 0, %s28
      %s48 = sphi 0, %s48
      %s50 = sphi 0, %s48
      %s51 = sphi 0, %s50
      %s65 = sphi 0, %s51
      %s69 = sphi 0, %s69
      %s71 = sphi 0, %s69
      %s72 = sphi 0, %s71
      %s86 = sphi 0, %s72
      %s90 = sphi 0, %s90
      %s92 = sphi 0, %s90
      %s93 = sphi 0, %s92
      %s107 = sphi 0, %s93
      %s111 = sphi 0, %s111
      %s113 = sphi 0, %s111
      %s114 = sphi 0, %s113
      %s128 = sphi 0, %s114
      %s134 = sphi 0, %s136
      %s137 = sphi 0, %s134
      %s138 = sphi 0, %s137
      %s154 = sphi 0, %s138
    $region4: #{tpu_custom_call.1} parent=1 // loop_header_branch
      %17 = sbr.rel (%p15) target = $region8
    $region5: #{tpu_custom_call.1} parent=1 // loop_body
      %s19 = ssub.s32 %s14, 1
      %s20 = ssub.s32 %s14, 2
      %s21 = sadd.s32 %s14, 1
      %s22 = ssub.s32 %s14, %s21
      %p23 = scmp.eq.s32.totalorder %s22, 0
      %s25 = sadd.s32 %s24, 1
      %s26 = scalar_select %p23, %s24, %s25
      %p29 = pneg %p23
      %p30 = scmp.eq.s32.totalorder %s14, 1
      %p31 = por %p29, %p30
      %p32 = scmp.ne.s32.totalorder %s24, %s27
      %p33 = scmp.eq.s32.totalorder %s14, 0
      %p34 = por %p32, %p33
      %p35 = scmp.ne.s32.totalorder %s24, %s27
      %p36 = scmp.eq.s32.totalorder %s19, 1
      %p37 = por %p35, %p36
      %p38 = scmp.ne.s32.totalorder %s27, %s28
      %p39 = scmp.eq.s32.totalorder %s19, 0
      %p40 = por %p38, %p39
      %p41 = scmp.ne.s32.totalorder %s27, %s28
      %p42 = scmp.eq.s32.totalorder %s20, 1
      %p43 = por %p41, %p42
      %p45 = scmp.ne.s32.totalorder %s28, %s44
      %p46 = scmp.eq.s32.totalorder %s20, 0
      %p47 = por %p45, %p46
      %s49 = sadd.s32 %s48, 1
      %p52 = scmp.eq.s32.totalorder %s14, 1
      %p53 = scmp.ne.s32.totalorder %s48, %s50
      %p54 = scmp.eq.s32.totalorder %s14, 0
      %p55 = por %p53, %p54
      %p56 = scmp.ne.s32.totalorder %s48, %s50
      %p57 = scmp.eq.s32.totalorder %s19, 1
      %p58 = por %p56, %p57
      %p59 = scmp.ne.s32.totalorder %s50, %s51
      %p60 = scmp.eq.s32.totalorder %s19, 0
      %p61 = por %p59, %p60
      %p62 = scmp.ne.s32.totalorder %s50, %s51
      %p63 = scmp.eq.s32.totalorder %s20, 1
      %p64 = por %p62, %p63
      %p66 = scmp.ne.s32.totalorder %s51, %s65
      %p67 = scmp.eq.s32.totalorder %s20, 0
      %p68 = por %p66, %p67
      %s70 = sadd.s32 %s69, 1
      %p73 = scmp.eq.s32.totalorder %s14, 1
      %p74 = scmp.ne.s32.totalorder %s69, %s71
      %p75 = scmp.eq.s32.totalorder %s14, 0
      %p76 = por %p74, %p75
      %p77 = scmp.ne.s32.totalorder %s69, %s71
      %p78 = scmp.eq.s32.totalorder %s19, 1
      %p79 = por %p77, %p78
      %p80 = scmp.ne.s32.totalorder %s71, %s72
      %p81 = scmp.eq.s32.totalorder %s19, 0
      %p82 = por %p80, %p81
      %p83 = scmp.ne.s32.totalorder %s71, %s72
      %p84 = scmp.eq.s32.totalorder %s20, 1
      %p85 = por %p83, %p84
      %p87 = scmp.ne.s32.totalorder %s72, %s86
      %p88 = scmp.eq.s32.totalorder %s20, 0
      %p89 = por %p87, %p88
      %s91 = sadd.s32 %s90, 1
      %p94 = scmp.eq.s32.totalorder %s14, 1
      %p95 = scmp.ne.s32.totalorder %s90, %s92
      %p96 = scmp.eq.s32.totalorder %s14, 0
      %p97 = por %p95, %p96
      %p98 = scmp.ne.s32.totalorder %s90, %s92
      %p99 = scmp.eq.s32.totalorder %s19, 1
      %p100 = por %p98, %p99
      %p101 = scmp.ne.s32.totalorder %s92, %s93
      %p102 = scmp.eq.s32.totalorder %s19, 0
      %p103 = por %p101, %p102
      %p104 = scmp.ne.s32.totalorder %s92, %s93
      %p105 = scmp.eq.s32.totalorder %s20, 1
      %p106 = por %p104, %p105
      %p108 = scmp.ne.s32.totalorder %s93, %s107
      %p109 = scmp.eq.s32.totalorder %s20, 0
      %p110 = por %p108, %p109
      %s112 = sadd.s32 %s111, 1
      %p115 = scmp.eq.s32.totalorder %s14, 1
      %p116 = scmp.ne.s32.totalorder %s111, %s113
      %p117 = scmp.eq.s32.totalorder %s14, 0
      %p118 = por %p116, %p117
      %p119 = scmp.ne.s32.totalorder %s111, %s113
      %p120 = scmp.eq.s32.totalorder %s19, 1
      %p121 = por %p119, %p120
      %p122 = scmp.ne.s32.totalorder %s113, %s114
      %p123 = scmp.eq.s32.totalorder %s19, 0
      %p124 = por %p122, %p123
      %p125 = scmp.ne.s32.totalorder %s113, %s114
      %p126 = scmp.eq.s32.totalorder %s20, 1
      %p127 = por %p125, %p126
      %p129 = scmp.ne.s32.totalorder %s114, %s128
      %p130 = scmp.eq.s32.totalorder %s20, 0
      %p131 = por %p129, %p130
      %s132 = ssub.s32 %s14, %s21
      %p133 = scmp.eq.s32.totalorder %s132, 0
      %s135 = sadd.s32 %s134, 1
      %s136 = scalar_select %p133, %s134, %s135
      %p139 = pneg %p133
      %p140 = scmp.eq.s32.totalorder %s14, 1
      %p141 = por %p139, %p140
      %p142 = scmp.ne.s32.totalorder %s134, %s137
      %p143 = scmp.eq.s32.totalorder %s14, 0
      %p144 = por %p142, %p143
      %p145 = scmp.ne.s32.totalorder %s134, %s137
      %p146 = scmp.eq.s32.totalorder %s19, 1
      %p147 = por %p145, %p146
      %p148 = scmp.ne.s32.totalorder %s137, %s138
      %p149 = scmp.eq.s32.totalorder %s19, 0
      %p150 = por %p148, %p149
      %p151 = scmp.ne.s32.totalorder %s137, %s138
      %p152 = scmp.eq.s32.totalorder %s20, 1
      %p153 = por %p151, %p152
      %p155 = scmp.ne.s32.totalorder %s138, %s154
      %p156 = scmp.eq.s32.totalorder %s20, 0
      %p157 = por %p155, %p156
      %p158 = scmp.le.s32.totalorder 1, %s14
      %p159 = scmp.lt.s32.totalorder %s14, 3
      %p160 = pnand %p158, %p159
      %p161 = pneg %p160
      // Predicated region
      $region9: #{tpu_custom_call.1} parent=5 // pred_check
        _
      $region10: #{tpu_custom_call.1} parent=5 // pred_check_branch
        %163 = sbr.rel (%p160) target = $region12
      $region11: #{tpu_custom_call.1} parent=5 // pred_region
        %s164 = ssub.s32 %s14, 1
        // Predicated region
        $region13: #{tpu_custom_call.1} parent=11 // pred_check
          %p165 = pneg %p61
        $region14: #{tpu_custom_call.1} parent=11 // pred_check_branch
          %167 = sbr.rel (%p165) target = $region16
        $region15: #{tpu_custom_call.1} parent=11 // pred_region
          _
        $region16: #{tpu_custom_call.1} parent=11 // pred_fallthru
          _
        // Predicated region
        $region17: #{tpu_custom_call.1} parent=11 // pred_check
          %p168 = pneg %p82
        $region18: #{tpu_custom_call.1} parent=11 // pred_check_branch
          %170 = sbr.rel (%p168) target = $region20
        $region19: #{tpu_custom_call.1} parent=11 // pred_region
          _
        $region20: #{tpu_custom_call.1} parent=11 // pred_fallthru
          _
        // Predicated region
        $region21: #{tpu_custom_call.1} parent=11 // pred_check
          %p171 = pneg %p103
        $region22: #{tpu_custom_call.1} parent=11 // pred_check_branch
          %173 = sbr.rel (%p171) target = $region24
        $region23: #{tpu_custom_call.1} parent=11 // pred_region
          _
        $region24: #{tpu_custom_call.1} parent=11 // pred_fallthru
          _
        // Predicated region
        $region25: #{tpu_custom_call.1} parent=11 // pred_check
          %p174 = pneg %p124
        $region26: #{tpu_custom_call.1} parent=11 // pred_check_branch
          %176 = sbr.rel (%p174) target = $region28
        $region27: #{tpu_custom_call.1} parent=11 // pred_region
          _
        $region28: #{tpu_custom_call.1} parent=11 // pred_fallthru
          _
      $region12: #{tpu_custom_call.1} parent=5 // pred_fallthru
        _
      %p177 = scmp.lt.s32.totalorder %s14, 2
      // Predicated region
      $region29: #{tpu_custom_call.1} parent=5 // pred_check
        %p178 = pneg %p177
      $region30: #{tpu_custom_call.1} parent=5 // pred_check_branch
        %180 = sbr.rel (%p178) target = $region32
      $region31: #{tpu_custom_call.1} parent=5 // pred_region
        // Predicated region
        $region33: #{tpu_custom_call.1} parent=31 // pred_check
          %p181 = pneg %p34
        $region34: #{tpu_custom_call.1} parent=31 // pred_check_branch
          %183 = sbr.rel (%p181) target = $region36
        $region35: #{tpu_custom_call.1} parent=31 // pred_region
          %p184 = scmp.lt.s32.totalorder %s14, 1
          %s185 = scalar_select %p184, %s14, 1
          %s186 = smul.addr %s185, 32
          %s187 = smul.addr %s186, 8
          %s188 = scalar_lea.vmem %s0, %s187
        $region36: #{tpu_custom_call.1} parent=31 // pred_fallthru
          _
      $region32: #{tpu_custom_call.1} parent=5 // pred_fallthru
        _
      %p189 = scmp.le.s32.totalorder 1, %s14
      %p190 = scmp.lt.s32.totalorder %s14, 3
      %p191 = pnand %p189, %p190
      %p192 = pneg %p191
      // Predicated region
      $region37: #{tpu_custom_call.1} parent=5 // pred_check
        _
      $region38: #{tpu_custom_call.1} parent=5 // pred_check_branch
        %194 = sbr.rel (%p191) target = $region40
      $region39: #{tpu_custom_call.1} parent=5 // pred_region
        %s195 = ssub.s32 %s14, 1
        %p196 = scmp.lt.s32.totalorder %s19, 1
        %s197 = scalar_select %p196, %s19, 1
        %s198 = smul.addr %s197, 32
        %s199 = smul.addr %s198, 8
        %s200 = scalar_lea.vmem %s0, %s199
        %p201 = pneg %p40
        %p202 = pneg %p37
        %p203 = pneg %p61
        %p204 = pneg %p58
        %p205 = pneg %p82
        %p206 = pneg %p79
        %p207 = pneg %p103
        %p208 = pneg %p100
        %p209 = pneg %p124
        %p210 = pneg %p121
        %p211 = pneg %p150
        %p212 = pneg %p147
        %s213 = sand.u32 %s137, 1
        %s214 = scalar_lea.sflag [#allocation3], %s213
        %s215 = sand.u32 %s137, 1
        %s216 = smul.addr %s215, 16
        %s217 = scalar_lea.vmem [#allocation2], %s216
        %p218 = scmp.lt.s32.totalorder %s19, 1
        %s219 = scalar_select %p218, %s19, 1
        %s220 = smul.addr %s219, 32
        %s221 = smul.addr %s220, 8
        %s222 = scalar_lea.vmem %s0, %s221
        %v223 = vld [vmem:[%s222] sm:$0xff]
        %v224 = vld [vmem:[%s222 + $0x8] sm:$0xff]
        %v225 = vld [vmem:[%s222 + $0x10] sm:$0xff]
        %v226 = vld [vmem:[%s222 + $0x18] sm:$0xff]
        %v227 = vld [vmem:[%s222 + $0x20] sm:$0xff]
        %v228 = vld [vmem:[%s222 + $0x28] sm:$0xff]
        %v229 = vld [vmem:[%s222 + $0x30] sm:$0xff]
        %v230 = vld [vmem:[%s222 + $0x38] sm:$0xff]
        %v231 = vld [vmem:[%s222 + $0x40] sm:$0xff]
        %v232 = vld [vmem:[%s222 + $0x48] sm:$0xff]
        %v233 = vld [vmem:[%s222 + $0x50] sm:$0xff]
        %v234 = vld [vmem:[%s222 + $0x58] sm:$0xff]
        %v235 = vld [vmem:[%s222 + $0x60] sm:$0xff]
        %v236 = vld [vmem:[%s222 + $0x68] sm:$0xff]
        %v237 = vld [vmem:[%s222 + $0x70] sm:$0xff]
        %v238 = vld [vmem:[%s222 + $0x78] sm:$0xff]
        %v239 = vld [vmem:[%s222 + $0x80] sm:$0xff]
        %v240 = vld [vmem:[%s222 + $0x88] sm:$0xff]
        %v241 = vld [vmem:[%s222 + $0x90] sm:$0xff]
        %v242 = vld [vmem:[%s222 + $0x98] sm:$0xff]
        %v243 = vld [vmem:[%s222 + $0xa0] sm:$0xff]
        %v244 = vld [vmem:[%s222 + $0xa8] sm:$0xff]
        %v245 = vld [vmem:[%s222 + $0xb0] sm:$0xff]
        %v246 = vld [vmem:[%s222 + $0xb8] sm:$0xff]
        %v247 = vld [vmem:[%s222 + $0xc0] sm:$0xff]
        %v248 = vld [vmem:[%s222 + $0xc8] sm:$0xff]
        %v249 = vld [vmem:[%s222 + $0xd0] sm:$0xff]
        %v250 = vld [vmem:[%s222 + $0xd8] sm:$0xff]
        %v251 = vld [vmem:[%s222 + $0xe0] sm:$0xff]
        %v252 = vld [vmem:[%s222 + $0xe8] sm:$0xff]
        %v253 = vld [vmem:[%s222 + $0xf0] sm:$0xff]
        %v254 = vld [vmem:[%s222 + $0xf8] sm:$0xff]
        %vm288 = vcmask 1040384
        %v289 = vrot.slane 0.0, 7
        %v290 = vsel %vm288, %v289, %v289
        %v291 = vrot.slane %v223, 7
        %v292 = vrot.slane %v224, 7
        %v293 = vsel %vm288, %v291, %v292
        %v294 = vrot.slane %v225, 7
        %v295 = vrot.slane %v226, 7
        %v296 = vsel %vm288, %v294, %v295
        %v297 = vrot.slane %v227, 7
        %v298 = vrot.slane %v228, 7
        %v299 = vsel %vm288, %v297, %v298
        %v300 = vrot.slane %v229, 7
        %v301 = vrot.slane %v230, 7
        %v302 = vsel %vm288, %v300, %v301
        %v303 = vrot.slane %v231, 7
        %v304 = vrot.slane %v232, 7
        %v305 = vsel %vm288, %v303, %v304
        %v306 = vrot.slane %v233, 7
        %v307 = vrot.slane %v234, 7
        %v308 = vsel %vm288, %v306, %v307
        %v309 = vrot.slane %v235, 7
        %v310 = vrot.slane %v236, 7
        %v311 = vsel %vm288, %v309, %v310
        %v312 = vrot.slane %v237, 7
        %v313 = vrot.slane %v238, 7
        %v314 = vsel %vm288, %v312, %v313
        %v315 = vrot.slane %v239, 7
        %v316 = vrot.slane %v240, 7
        %v317 = vsel %vm288, %v315, %v316
        %v318 = vrot.slane %v241, 7
        %v319 = vrot.slane %v242, 7
        %v320 = vsel %vm288, %v318, %v319
        %v321 = vrot.slane %v243, 7
        %v322 = vrot.slane %v244, 7
        %v323 = vsel %vm288, %v321, %v322
        %v324 = vrot.slane %v245, 7
        %v325 = vrot.slane %v246, 7
        %v326 = vsel %vm288, %v324, %v325
        %v327 = vrot.slane %v247, 7
        %v328 = vrot.slane %v248, 7
        %v329 = vsel %vm288, %v327, %v328
        %v330 = vrot.slane %v249, 7
        %v331 = vrot.slane %v250, 7
        %v332 = vsel %vm288, %v330, %v331
        %v333 = vrot.slane %v251, 7
        %v334 = vrot.slane %v252, 7
        %v335 = vsel %vm288, %v333, %v334
        %v336 = vrot.slane %v253, 7
        %v337 = vrot.slane %v254, 7
        %v338 = vsel %vm288, %v336, %v337
        %v388 = vsel %vm288, 0.0, %v289
        %v389 = vsel %vm288, 0.0, %v291
        %v390 = vsel %vm288, 0.0, %v294
        %v391 = vsel %vm288, 0.0, %v297
        %v392 = vsel %vm288, 0.0, %v300
        %v393 = vsel %vm288, 0.0, %v303
        %v394 = vsel %vm288, 0.0, %v306
        %v395 = vsel %vm288, 0.0, %v309
        %v396 = vsel %vm288, 0.0, %v312
        %v397 = vsel %vm288, 0.0, %v315
        %v398 = vsel %vm288, 0.0, %v318
        %v399 = vsel %vm288, 0.0, %v321
        %v400 = vsel %vm288, 0.0, %v324
        %v401 = vsel %vm288, 0.0, %v327
        %v402 = vsel %vm288, 0.0, %v330
        %v403 = vsel %vm288, 0.0, %v333
        %v404 = vsel %vm288, 0.0, %v336
        %v405 = vsel %vm288, %v289, 0.0
        %v406 = vsel %vm288, %v292, 0.0
        %v407 = vsel %vm288, %v295, 0.0
        %v408 = vsel %vm288, %v298, 0.0
        %v409 = vsel %vm288, %v301, 0.0
        %v410 = vsel %vm288, %v304, 0.0
        %v411 = vsel %vm288, %v307, 0.0
        %v412 = vsel %vm288, %v310, 0.0
        %v413 = vsel %vm288, %v313, 0.0
        %v414 = vsel %vm288, %v316, 0.0
        %v415 = vsel %vm288, %v319, 0.0
        %v416 = vsel %vm288, %v322, 0.0
        %v417 = vsel %vm288, %v325, 0.0
        %v418 = vsel %vm288, %v328, 0.0
        %v419 = vsel %vm288, %v331, 0.0
        %v420 = vsel %vm288, %v334, 0.0
        %v421 = vsel %vm288, %v337, 0.0
        %v422 = vld [vmem:[%s1] sm:$0xff]
        %v423 = vld [vmem:[%s1 + $0x8] sm:$0xff]
        %v424 = vld [vmem:[%s1 + $0x10] sm:$0xff]
        %v425 = vld [vmem:[%s1 + $0x18] sm:$0xff]
        %v426 = vld [vmem:[%s1 + $0x20] sm:$0xf]
        %v427 = vld [vmem:[%s2] sm:$0x1]
        %vm460 = vcmask 1046528
        %v461 = vrot.slane %v388, 1
        %v462 = vrot.slane %v290, 1
        %v463 = vsel %vm460, %v461, %v462
        %v464 = vrot.slane %v405, 1
        %v465 = vsel %vm460, %v462, %v464
        %v466 = vrot.slane %v389, 1
        %v467 = vrot.slane %v293, 1
        %v468 = vsel %vm460, %v466, %v467
        %v469 = vrot.slane %v406, 1
        %v470 = vsel %vm460, %v467, %v469
        %v471 = vrot.slane %v390, 1
        %v472 = vrot.slane %v296, 1
        %v473 = vsel %vm460, %v471, %v472
        %v474 = vrot.slane %v407, 1
        %v475 = vsel %vm460, %v472, %v474
        %v476 = vrot.slane %v391, 1
        %v477 = vrot.slane %v299, 1
        %v478 = vsel %vm460, %v476, %v477
        %v479 = vrot.slane %v408, 1
        %v480 = vsel %vm460, %v477, %v479
        %v481 = vrot.slane %v392, 1
        %v482 = vrot.slane %v302, 1
        %v483 = vsel %vm460, %v481, %v482
        %v484 = vrot.slane %v409, 1
        %v485 = vsel %vm460, %v482, %v484
        %v486 = vrot.slane %v393, 1
        %v487 = vrot.slane %v305, 1
        %v488 = vsel %vm460, %v486, %v487
        %v489 = vrot.slane %v410, 1
        %v490 = vsel %vm460, %v487, %v489
        %v491 = vrot.slane %v394, 1
        %v492 = vrot.slane %v308, 1
        %v493 = vsel %vm460, %v491, %v492
        %v494 = vrot.slane %v411, 1
        %v495 = vsel %vm460, %v492, %v494
        %v496 = vrot.slane %v395, 1
        %v497 = vrot.slane %v311, 1
        %v498 = vsel %vm460, %v496, %v497
        %v499 = vrot.slane %v412, 1
        %v500 = vsel %vm460, %v497, %v499
        %v501 = vrot.slane %v396, 1
        %v502 = vrot.slane %v314, 1
        %v503 = vsel %vm460, %v501, %v502
        %v504 = vrot.slane %v413, 1
        %v505 = vsel %vm460, %v502, %v504
        %v506 = vrot.slane %v397, 1
        %v507 = vrot.slane %v317, 1
        %v508 = vsel %vm460, %v506, %v507
        %v509 = vrot.slane %v414, 1
        %v510 = vsel %vm460, %v507, %v509
        %v511 = vrot.slane %v398, 1
        %v512 = vrot.slane %v320, 1
        %v513 = vsel %vm460, %v511, %v512
        %v514 = vrot.slane %v415, 1
        %v515 = vsel %vm460, %v512, %v514
        %v516 = vrot.slane %v399, 1
        %v517 = vrot.slane %v323, 1
        %v518 = vsel %vm460, %v516, %v517
        %v519 = vrot.slane %v416, 1
        %v520 = vsel %vm460, %v517, %v519
        %v521 = vrot.slane %v400, 1
        %v522 = vrot.slane %v326, 1
        %v523 = vsel %vm460, %v521, %v522
        %v524 = vrot.slane %v417, 1
        %v525 = vsel %vm460, %v522, %v524
        %v526 = vrot.slane %v401, 1
        %v527 = vrot.slane %v329, 1
        %v528 = vsel %vm460, %v526, %v527
        %v529 = vrot.slane %v418, 1
        %v530 = vsel %vm460, %v527, %v529
        %v531 = vrot.slane %v402, 1
        %v532 = vrot.slane %v332, 1
        %v533 = vsel %vm460, %v531, %v532
        %v534 = vrot.slane %v419, 1
        %v535 = vsel %vm460, %v532, %v534
        %v536 = vrot.slane %v403, 1
        %v537 = vrot.slane %v335, 1
        %v538 = vsel %vm460, %v536, %v537
        %v539 = vrot.slane %v420, 1
        %v540 = vsel %vm460, %v537, %v539
        %541 = vrot.lane.b32.xlu0 %v463, 4
        %v542 = vpop.permute.xlu0 %541
        %543 = vrot.lane.b32.xlu0 %v465, 4
        %v544 = vpop.permute.xlu0 %543
        %545 = vrot.lane.b32.xlu0 %v468, 4
        %v546 = vpop.permute.xlu0 %545
        %547 = vrot.lane.b32.xlu0 %v470, 4
        %v548 = vpop.permute.xlu0 %547
        %549 = vrot.lane.b32.xlu0 %v473, 4
        %v550 = vpop.permute.xlu0 %549
        %551 = vrot.lane.b32.xlu0 %v475, 4
        %v552 = vpop.permute.xlu0 %551
        %553 = vrot.lane.b32.xlu0 %v478, 4
        %v554 = vpop.permute.xlu0 %553
        %555 = vrot.lane.b32.xlu0 %v480, 4
        %v556 = vpop.permute.xlu0 %555
        %557 = vrot.lane.b32.xlu0 %v483, 4
        %v558 = vpop.permute.xlu0 %557
        %559 = vrot.lane.b32.xlu0 %v485, 4
        %v560 = vpop.permute.xlu0 %559
        %561 = vrot.lane.b32.xlu0 %v488, 4
        %v562 = vpop.permute.xlu0 %561
        %563 = vrot.lane.b32.xlu0 %v490, 4
        %v564 = vpop.permute.xlu0 %563
        %565 = vrot.lane.b32.xlu0 %v493, 4
        %v566 = vpop.permute.xlu0 %565
        %567 = vrot.lane.b32.xlu0 %v495, 4
        %v568 = vpop.permute.xlu0 %567
        %569 = vrot.lane.b32.xlu0 %v498, 4
        %v570 = vpop.permute.xlu0 %569
        %571 = vrot.lane.b32.xlu0 %v500, 4
        %v572 = vpop.permute.xlu0 %571
        %573 = vrot.lane.b32.xlu0 %v503, 4
        %v574 = vpop.permute.xlu0 %573
        %575 = vrot.lane.b32.xlu0 %v505, 4
        %v576 = vpop.permute.xlu0 %575
        %577 = vrot.lane.b32.xlu0 %v508, 4
        %v578 = vpop.permute.xlu0 %577
        %579 = vrot.lane.b32.xlu0 %v510, 4
        %v580 = vpop.permute.xlu0 %579
        %581 = vrot.lane.b32.xlu0 %v513, 4
        %v582 = vpop.permute.xlu0 %581
        %583 = vrot.lane.b32.xlu0 %v515, 4
        %v584 = vpop.permute.xlu0 %583
        %585 = vrot.lane.b32.xlu0 %v518, 4
        %v586 = vpop.permute.xlu0 %585
        %587 = vrot.lane.b32.xlu0 %v520, 4
        %v588 = vpop.permute.xlu0 %587
        %589 = vrot.lane.b32.xlu0 %v523, 4
        %v590 = vpop.permute.xlu0 %589
        %591 = vrot.lane.b32.xlu0 %v525, 4
        %v592 = vpop.permute.xlu0 %591
        %593 = vrot.lane.b32.xlu0 %v528, 4
        %v594 = vpop.permute.xlu0 %593
        %595 = vrot.lane.b32.xlu0 %v530, 4
        %v596 = vpop.permute.xlu0 %595
        %597 = vrot.lane.b32.xlu0 %v533, 4
        %v598 = vpop.permute.xlu0 %597
        %599 = vrot.lane.b32.xlu0 %v535, 4
        %v600 = vpop.permute.xlu0 %599
        %601 = vrot.lane.b32.xlu0 %v538, 4
        %v602 = vpop.permute.xlu0 %601
        %603 = vrot.lane.b32.xlu0 %v540, 4
        %v604 = vpop.permute.xlu0 %603
        %vm637 = vcmask 1045504
        %v638 = vrot.slane %v388, 2
        %v639 = vrot.slane %v290, 2
        %v640 = vsel %vm637, %v638, %v639
        %v641 = vrot.slane %v405, 2
        %v642 = vsel %vm637, %v639, %v641
        %v643 = vrot.slane %v389, 2
        %v644 = vrot.slane %v293, 2
        %v645 = vsel %vm637, %v643, %v644
        %v646 = vrot.slane %v406, 2
        %v647 = vsel %vm637, %v644, %v646
        %v648 = vrot.slane %v390, 2
        %v649 = vrot.slane %v296, 2
        %v650 = vsel %vm637, %v648, %v649
        %v651 = vrot.slane %v407, 2
        %v652 = vsel %vm637, %v649, %v651
        %v653 = vrot.slane %v391, 2
        %v654 = vrot.slane %v299, 2
        %v655 = vsel %vm637, %v653, %v654
        %v656 = vrot.slane %v408, 2
        %v657 = vsel %vm637, %v654, %v656
        %v658 = vrot.slane %v392, 2
        %v659 = vrot.slane %v302, 2
        %v660 = vsel %vm637, %v658, %v659
        %v661 = vrot.slane %v409, 2
        %v662 = vsel %vm637, %v659, %v661
        %v663 = vrot.slane %v393, 2
        %v664 = vrot.slane %v305, 2
        %v665 = vsel %vm637, %v663, %v664
        %v666 = vrot.slane %v410, 2
        %v667 = vsel %vm637, %v664, %v666
        %v668 = vrot.slane %v394, 2
        %v669 = vrot.slane %v308, 2
        %v670 = vsel %vm637, %v668, %v669
        %v671 = vrot.slane %v411, 2
        %v672 = vsel %vm637, %v669, %v671
        %v673 = vrot.slane %v395, 2
        %v674 = vrot.slane %v311, 2
        %v675 = vsel %vm637, %v673, %v674
        %v676 = vrot.slane %v412, 2
        %v677 = vsel %vm637, %v674, %v676
        %v678 = vrot.slane %v396, 2
        %v679 = vrot.slane %v314, 2
        %v680 = vsel %vm637, %v678, %v679
        %v681 = vrot.slane %v413, 2
        %v682 = vsel %vm637, %v679, %v681
        %v683 = vrot.slane %v397, 2
        %v684 = vrot.slane %v317, 2
        %v685 = vsel %vm637, %v683, %v684
        %v686 = vrot.slane %v414, 2
        %v687 = vsel %vm637, %v684, %v686
        %v688 = vrot.slane %v398, 2
        %v689 = vrot.slane %v320, 2
        %v690 = vsel %vm637, %v688, %v689
        %v691 = vrot.slane %v415, 2
        %v692 = vsel %vm637, %v689, %v691
        %v693 = vrot.slane %v399, 2
        %v694 = vrot.slane %v323, 2
        %v695 = vsel %vm637, %v693, %v694
        %v696 = vrot.slane %v416, 2
        %v697 = vsel %vm637, %v694, %v696
        %v698 = vrot.slane %v400, 2
        %v699 = vrot.slane %v326, 2
        %v700 = vsel %vm637, %v698, %v699
        %v701 = vrot.slane %v417, 2
        %v702 = vsel %vm637, %v699, %v701
        %v703 = vrot.slane %v401, 2
        %v704 = vrot.slane %v329, 2
        %v705 = vsel %vm637, %v703, %v704
        %v706 = vrot.slane %v418, 2
        %v707 = vsel %vm637, %v704, %v706
        %v708 = vrot.slane %v402, 2
        %v709 = vrot.slane %v332, 2
        %v710 = vsel %vm637, %v708, %v709
        %v711 = vrot.slane %v419, 2
        %v712 = vsel %vm637, %v709, %v711
        %v713 = vrot.slane %v403, 2
        %v714 = vrot.slane %v335, 2
        %v715 = vsel %vm637, %v713, %v714
        %v716 = vrot.slane %v420, 2
        %v717 = vsel %vm637, %v714, %v716
        %718 = vrot.lane.b32.xlu0 %v640, 8
        %v719 = vpop.permute.xlu0 %718
        %720 = vrot.lane.b32.xlu0 %v642, 8
        %v721 = vpop.permute.xlu0 %720
        %722 = vrot.lane.b32.xlu0 %v645, 8
        %v723 = vpop.permute.xlu0 %722
        %724 = vrot.lane.b32.xlu0 %v647, 8
        %v725 = vpop.permute.xlu0 %724
        %726 = vrot.lane.b32.xlu0 %v650, 8
        %v727 = vpop.permute.xlu0 %726
        %728 = vrot.lane.b32.xlu0 %v652, 8
        %v729 = vpop.permute.xlu0 %728
        %730 = vrot.lane.b32.xlu0 %v655, 8
        %v731 = vpop.permute.xlu0 %730
        %732 = vrot.lane.b32.xlu0 %v657, 8
        %v733 = vpop.permute.xlu0 %732
        %734 = vrot.lane.b32.xlu0 %v660, 8
        %v735 = vpop.permute.xlu0 %734
        %736 = vrot.lane.b32.xlu0 %v662, 8
        %v737 = vpop.permute.xlu0 %736
        %738 = vrot.lane.b32.xlu0 %v665, 8
        %v739 = vpop.permute.xlu0 %738
        %740 = vrot.lane.b32.xlu0 %v667, 8
        %v741 = vpop.permute.xlu0 %740
        %742 = vrot.lane.b32.xlu0 %v670, 8
        %v743 = vpop.permute.xlu0 %742
        %744 = vrot.lane.b32.xlu0 %v672, 8
        %v745 = vpop.permute.xlu0 %744
        %746 = vrot.lane.b32.xlu0 %v675, 8
        %v747 = vpop.permute.xlu0 %746
        %748 = vrot.lane.b32.xlu0 %v677, 8
        %v749 = vpop.permute.xlu0 %748
        %750 = vrot.lane.b32.xlu0 %v680, 8
        %v751 = vpop.permute.xlu0 %750
        %752 = vrot.lane.b32.xlu0 %v682, 8
        %v753 = vpop.permute.xlu0 %752
        %754 = vrot.lane.b32.xlu0 %v685, 8
        %v755 = vpop.permute.xlu0 %754
        %756 = vrot.lane.b32.xlu0 %v687, 8
        %v757 = vpop.permute.xlu0 %756
        %758 = vrot.lane.b32.xlu0 %v690, 8
        %v759 = vpop.permute.xlu0 %758
        %760 = vrot.lane.b32.xlu0 %v692, 8
        %v761 = vpop.permute.xlu0 %760
        %762 = vrot.lane.b32.xlu0 %v695, 8
        %v763 = vpop.permute.xlu0 %762
        %764 = vrot.lane.b32.xlu0 %v697, 8
        %v765 = vpop.permute.xlu0 %764
        %766 = vrot.lane.b32.xlu0 %v700, 8
        %v767 = vpop.permute.xlu0 %766
        %768 = vrot.lane.b32.xlu0 %v702, 8
        %v769 = vpop.permute.xlu0 %768
        %770 = vrot.lane.b32.xlu0 %v705, 8
        %v771 = vpop.permute.xlu0 %770
        %772 = vrot.lane.b32.xlu0 %v707, 8
        %v773 = vpop.permute.xlu0 %772
        %774 = vrot.lane.b32.xlu0 %v710, 8
        %v775 = vpop.permute.xlu0 %774
        %776 = vrot.lane.b32.xlu0 %v712, 8
        %v777 = vpop.permute.xlu0 %776
        %778 = vrot.lane.b32.xlu0 %v715, 8
        %v779 = vpop.permute.xlu0 %778
        %780 = vrot.lane.b32.xlu0 %v717, 8
        %v781 = vpop.permute.xlu0 %780
        %815 = vrot.lane.b32.xlu0 %v389, 12
        %v816 = vpop.permute.xlu0 %815
        %817 = vrot.lane.b32.xlu0 %v293, 12
        %v818 = vpop.permute.xlu0 %817
        %819 = vrot.lane.b32.xlu0 %v390, 12
        %v820 = vpop.permute.xlu0 %819
        %821 = vrot.lane.b32.xlu0 %v296, 12
        %v822 = vpop.permute.xlu0 %821
        %823 = vrot.lane.b32.xlu0 %v391, 12
        %v824 = vpop.permute.xlu0 %823
        %825 = vrot.lane.b32.xlu0 %v299, 12
        %v826 = vpop.permute.xlu0 %825
        %827 = vrot.lane.b32.xlu0 %v392, 12
        %v828 = vpop.permute.xlu0 %827
        %829 = vrot.lane.b32.xlu0 %v302, 12
        %v830 = vpop.permute.xlu0 %829
        %831 = vrot.lane.b32.xlu0 %v393, 12
        %v832 = vpop.permute.xlu0 %831
        %833 = vrot.lane.b32.xlu0 %v305, 12
        %v834 = vpop.permute.xlu0 %833
        %835 = vrot.lane.b32.xlu0 %v394, 12
        %v836 = vpop.permute.xlu0 %835
        %837 = vrot.lane.b32.xlu0 %v308, 12
        %v838 = vpop.permute.xlu0 %837
        %839 = vrot.lane.b32.xlu0 %v395, 12
        %v840 = vpop.permute.xlu0 %839
        %841 = vrot.lane.b32.xlu0 %v311, 12
        %v842 = vpop.permute.xlu0 %841
        %843 = vrot.lane.b32.xlu0 %v396, 12
        %v844 = vpop.permute.xlu0 %843
        %845 = vrot.lane.b32.xlu0 %v314, 12
        %v846 = vpop.permute.xlu0 %845
        %847 = vrot.lane.b32.xlu0 %v397, 12
        %v848 = vpop.permute.xlu0 %847
        %849 = vrot.lane.b32.xlu0 %v317, 12
        %v850 = vpop.permute.xlu0 %849
        %851 = vrot.lane.b32.xlu0 %v398, 12
        %v852 = vpop.permute.xlu0 %851
        %853 = vrot.lane.b32.xlu0 %v320, 12
        %v854 = vpop.permute.xlu0 %853
        %855 = vrot.lane.b32.xlu0 %v399, 12
        %v856 = vpop.permute.xlu0 %855
        %857 = vrot.lane.b32.xlu0 %v323, 12
        %v858 = vpop.permute.xlu0 %857
        %859 = vrot.lane.b32.xlu0 %v400, 12
        %v860 = vpop.permute.xlu0 %859
        %861 = vrot.lane.b32.xlu0 %v326, 12
        %v862 = vpop.permute.xlu0 %861
        %863 = vrot.lane.b32.xlu0 %v401, 12
        %v864 = vpop.permute.xlu0 %863
        %865 = vrot.lane.b32.xlu0 %v329, 12
        %v866 = vpop.permute.xlu0 %865
        %867 = vrot.lane.b32.xlu0 %v402, 12
        %v868 = vpop.permute.xlu0 %867
        %869 = vrot.lane.b32.xlu0 %v332, 12
        %v870 = vpop.permute.xlu0 %869
        %871 = vrot.lane.b32.xlu0 %v403, 12
        %v872 = vpop.permute.xlu0 %871
        %873 = vrot.lane.b32.xlu0 %v335, 12
        %v874 = vpop.permute.xlu0 %873
        %875 = vrot.lane.b32.xlu0 %v404, 12
        %v876 = vpop.permute.xlu0 %875
        %877 = vrot.lane.b32.xlu0 %v338, 12
        %v878 = vpop.permute.xlu0 %877
        %v912 = vrot.slane %v404, 1
        %v913 = vrot.slane %v338, 1
        %v914 = vsel %vm460, %v912, %v913
        %v915 = vrot.slane %v421, 1
        %v916 = vsel %vm460, %v913, %v915
        %917 = vrot.lane.b32.xlu0 %v468, 16
        %v918 = vpop.permute.xlu0 %917
        %919 = vrot.lane.b32.xlu0 %v470, 16
        %v920 = vpop.permute.xlu0 %919
        %921 = vrot.lane.b32.xlu0 %v473, 16
        %v922 = vpop.permute.xlu0 %921
        %923 = vrot.lane.b32.xlu0 %v475, 16
        %v924 = vpop.permute.xlu0 %923
        %925 = vrot.lane.b32.xlu0 %v478, 16
        %v926 = vpop.permute.xlu0 %925
        %927 = vrot.lane.b32.xlu0 %v480, 16
        %v928 = vpop.permute.xlu0 %927
        %929 = vrot.lane.b32.xlu0 %v483, 16
        %v930 = vpop.permute.xlu0 %929
        %931 = vrot.lane.b32.xlu0 %v485, 16
        %v932 = vpop.permute.xlu0 %931
        %933 = vrot.lane.b32.xlu0 %v488, 16
        %v934 = vpop.permute.xlu0 %933
        %935 = vrot.lane.b32.xlu0 %v490, 16
        %v936 = vpop.permute.xlu0 %935
        %937 = vrot.lane.b32.xlu0 %v493, 16
        %v938 = vpop.permute.xlu0 %937
        %939 = vrot.lane.b32.xlu0 %v495, 16
        %v940 = vpop.permute.xlu0 %939
        %941 = vrot.lane.b32.xlu0 %v498, 16
        %v942 = vpop.permute.xlu0 %941
        %943 = vrot.lane.b32.xlu0 %v500, 16
        %v944 = vpop.permute.xlu0 %943
        %945 = vrot.lane.b32.xlu0 %v503, 16
        %v946 = vpop.permute.xlu0 %945
        %947 = vrot.lane.b32.xlu0 %v505, 16
        %v948 = vpop.permute.xlu0 %947
        %949 = vrot.lane.b32.xlu0 %v508, 16
        %v950 = vpop.permute.xlu0 %949
        %951 = vrot.lane.b32.xlu0 %v510, 16
        %v952 = vpop.permute.xlu0 %951
        %953 = vrot.lane.b32.xlu0 %v513, 16
        %v954 = vpop.permute.xlu0 %953
        %955 = vrot.lane.b32.xlu0 %v515, 16
        %v956 = vpop.permute.xlu0 %955
        %957 = vrot.lane.b32.xlu0 %v518, 16
        %v958 = vpop.permute.xlu0 %957
        %959 = vrot.lane.b32.xlu0 %v520, 16
        %v960 = vpop.permute.xlu0 %959
        %961 = vrot.lane.b32.xlu0 %v523, 16
        %v962 = vpop.permute.xlu0 %961
        %963 = vrot.lane.b32.xlu0 %v525, 16
        %v964 = vpop.permute.xlu0 %963
        %965 = vrot.lane.b32.xlu0 %v528, 16
        %v966 = vpop.permute.xlu0 %965
        %967 = vrot.lane.b32.xlu0 %v530, 16
        %v968 = vpop.permute.xlu0 %967
        %969 = vrot.lane.b32.xlu0 %v533, 16
        %v970 = vpop.permute.xlu0 %969
        %971 = vrot.lane.b32.xlu0 %v535, 16
        %v972 = vpop.permute.xlu0 %971
        %973 = vrot.lane.b32.xlu0 %v538, 16
        %v974 = vpop.permute.xlu0 %973
        %975 = vrot.lane.b32.xlu0 %v540, 16
        %v976 = vpop.permute.xlu0 %975
        %977 = vrot.lane.b32.xlu0 %v914, 16
        %v978 = vpop.permute.xlu0 %977
        %979 = vrot.lane.b32.xlu0 %v916, 16
        %v980 = vpop.permute.xlu0 %979
        %v1013 = vrot.slane %v404, 2
        %v1014 = vrot.slane %v338, 2
        %v1015 = vsel %vm637, %v1013, %v1014
        %v1016 = vrot.slane %v421, 2
        %v1017 = vsel %vm637, %v1014, %v1016
        %1018 = vrot.lane.b32.xlu0 %v645, 20
        %v1019 = vpop.permute.xlu0 %1018
        %1020 = vrot.lane.b32.xlu0 %v647, 20
        %v1021 = vpop.permute.xlu0 %1020
        %1022 = vrot.lane.b32.xlu0 %v650, 20
        %v1023 = vpop.permute.xlu0 %1022
        %1024 = vrot.lane.b32.xlu0 %v652, 20
        %v1025 = vpop.permute.xlu0 %1024
        %1026 = vrot.lane.b32.xlu0 %v655, 20
        %v1027 = vpop.permute.xlu0 %1026
        %1028 = vrot.lane.b32.xlu0 %v657, 20
        %v1029 = vpop.permute.xlu0 %1028
        %1030 = vrot.lane.b32.xlu0 %v660, 20
        %v1031 = vpop.permute.xlu0 %1030
        %1032 = vrot.lane.b32.xlu0 %v662, 20
        %v1033 = vpop.permute.xlu0 %1032
        %1034 = vrot.lane.b32.xlu0 %v665, 20
        %v1035 = vpop.permute.xlu0 %1034
        %1036 = vrot.lane.b32.xlu0 %v667, 20
        %v1037 = vpop.permute.xlu0 %1036
        %1038 = vrot.lane.b32.xlu0 %v670, 20
        %v1039 = vpop.permute.xlu0 %1038
        %1040 = vrot.lane.b32.xlu0 %v672, 20
        %v1041 = vpop.permute.xlu0 %1040
        %1042 = vrot.lane.b32.xlu0 %v675, 20
        %v1043 = vpop.permute.xlu0 %1042
        %1044 = vrot.lane.b32.xlu0 %v677, 20
        %v1045 = vpop.permute.xlu0 %1044
        %1046 = vrot.lane.b32.xlu0 %v680, 20
        %v1047 = vpop.permute.xlu0 %1046
        %1048 = vrot.lane.b32.xlu0 %v682, 20
        %v1049 = vpop.permute.xlu0 %1048
        %1050 = vrot.lane.b32.xlu0 %v685, 20
        %v1051 = vpop.permute.xlu0 %1050
        %1052 = vrot.lane.b32.xlu0 %v687, 20
        %v1053 = vpop.permute.xlu0 %1052
        %1054 = vrot.lane.b32.xlu0 %v690, 20
        %v1055 = vpop.permute.xlu0 %1054
        %1056 = vrot.lane.b32.xlu0 %v692, 20
        %v1057 = vpop.permute.xlu0 %1056
        %1058 = vrot.lane.b32.xlu0 %v695, 20
        %v1059 = vpop.permute.xlu0 %1058
        %1060 = vrot.lane.b32.xlu0 %v697, 20
        %v1061 = vpop.permute.xlu0 %1060
        %1062 = vrot.lane.b32.xlu0 %v700, 20
        %v1063 = vpop.permute.xlu0 %1062
        %1064 = vrot.lane.b32.xlu0 %v702, 20
        %v1065 = vpop.permute.xlu0 %1064
        %1066 = vrot.lane.b32.xlu0 %v705, 20
        %v1067 = vpop.permute.xlu0 %1066
        %1068 = vrot.lane.b32.xlu0 %v707, 20
        %v1069 = vpop.permute.xlu0 %1068
        %1070 = vrot.lane.b32.xlu0 %v710, 20
        %v1071 = vpop.permute.xlu0 %1070
        %1072 = vrot.lane.b32.xlu0 %v712, 20
        %v1073 = vpop.permute.xlu0 %1072
        %1074 = vrot.lane.b32.xlu0 %v715, 20
        %v1075 = vpop.permute.xlu0 %1074
        %1076 = vrot.lane.b32.xlu0 %v717, 20
        %v1077 = vpop.permute.xlu0 %1076
        %1078 = vrot.lane.b32.xlu0 %v1015, 20
        %v1079 = vpop.permute.xlu0 %1078
        %1080 = vrot.lane.b32.xlu0 %v1017, 20
        %v1081 = vpop.permute.xlu0 %1080
        %1114 = vrot.lane.b32.xlu0 %v390, 24
        %v1115 = vpop.permute.xlu0 %1114
        %1116 = vrot.lane.b32.xlu0 %v296, 24
        %v1117 = vpop.permute.xlu0 %1116
        %1118 = vrot.lane.b32.xlu0 %v391, 24
        %v1119 = vpop.permute.xlu0 %1118
        %1120 = vrot.lane.b32.xlu0 %v299, 24
        %v1121 = vpop.permute.xlu0 %1120
        %1122 = vrot.lane.b32.xlu0 %v392, 24
        %v1123 = vpop.permute.xlu0 %1122
        %1124 = vrot.lane.b32.xlu0 %v302, 24
        %v1125 = vpop.permute.xlu0 %1124
        %1126 = vrot.lane.b32.xlu0 %v393, 24
        %v1127 = vpop.permute.xlu0 %1126
        %1128 = vrot.lane.b32.xlu0 %v305, 24
        %v1129 = vpop.permute.xlu0 %1128
        %1130 = vrot.lane.b32.xlu0 %v394, 24
        %v1131 = vpop.permute.xlu0 %1130
        %1132 = vrot.lane.b32.xlu0 %v308, 24
        %v1133 = vpop.permute.xlu0 %1132
        %1134 = vrot.lane.b32.xlu0 %v395, 24
        %v1135 = vpop.permute.xlu0 %1134
        %1136 = vrot.lane.b32.xlu0 %v311, 24
        %v1137 = vpop.permute.xlu0 %1136
        %1138 = vrot.lane.b32.xlu0 %v396, 24
        %v1139 = vpop.permute.xlu0 %1138
        %1140 = vrot.lane.b32.xlu0 %v314, 24
        %v1141 = vpop.permute.xlu0 %1140
        %1142 = vrot.lane.b32.xlu0 %v397, 24
        %v1143 = vpop.permute.xlu0 %1142
        %1144 = vrot.lane.b32.xlu0 %v317, 24
        %v1145 = vpop.permute.xlu0 %1144
        %1146 = vrot.lane.b32.xlu0 %v398, 24
        %v1147 = vpop.permute.xlu0 %1146
        %1148 = vrot.lane.b32.xlu0 %v320, 24
        %v1149 = vpop.permute.xlu0 %1148
        %1150 = vrot.lane.b32.xlu0 %v399, 24
        %v1151 = vpop.permute.xlu0 %1150
        %1152 = vrot.lane.b32.xlu0 %v323, 24
        %v1153 = vpop.permute.xlu0 %1152
        %1154 = vrot.lane.b32.xlu0 %v400, 24
        %v1155 = vpop.permute.xlu0 %1154
        %1156 = vrot.lane.b32.xlu0 %v326, 24
        %v1157 = vpop.permute.xlu0 %1156
        %1158 = vrot.lane.b32.xlu0 %v401, 24
        %v1159 = vpop.permute.xlu0 %1158
        %1160 = vrot.lane.b32.xlu0 %v329, 24
        %v1161 = vpop.permute.xlu0 %1160
        %1162 = vrot.lane.b32.xlu0 %v402, 24
        %v1163 = vpop.permute.xlu0 %1162
        %1164 = vrot.lane.b32.xlu0 %v332, 24
        %v1165 = vpop.permute.xlu0 %1164
        %1166 = vrot.lane.b32.xlu0 %v403, 24
        %v1167 = vpop.permute.xlu0 %1166
        %1168 = vrot.lane.b32.xlu0 %v335, 24
        %v1169 = vpop.permute.xlu0 %1168
        %1170 = vrot.lane.b32.xlu0 %v404, 24
        %v1171 = vpop.permute.xlu0 %1170
        %1172 = vrot.lane.b32.xlu0 %v338, 24
        %v1173 = vpop.permute.xlu0 %1172
        %1174 = vrot.lane.b32.xlu0 %v388, 24
        %v1175 = vpop.permute.xlu0 %1174
        %1176 = vrot.lane.b32.xlu0 %v290, 24
        %v1177 = vpop.permute.xlu0 %1176
        %1210 = vrot.lane.b32.xlu0 %v473, 28
        %v1211 = vpop.permute.xlu0 %1210
        %1212 = vrot.lane.b32.xlu0 %v475, 28
        %v1213 = vpop.permute.xlu0 %1212
        %1214 = vrot.lane.b32.xlu0 %v478, 28
        %v1215 = vpop.permute.xlu0 %1214
        %1216 = vrot.lane.b32.xlu0 %v480, 28
        %v1217 = vpop.permute.xlu0 %1216
        %1218 = vrot.lane.b32.xlu0 %v483, 28
        %v1219 = vpop.permute.xlu0 %1218
        %1220 = vrot.lane.b32.xlu0 %v485, 28
        %v1221 = vpop.permute.xlu0 %1220
        %1222 = vrot.lane.b32.xlu0 %v488, 28
        %v1223 = vpop.permute.xlu0 %1222
        %1224 = vrot.lane.b32.xlu0 %v490, 28
        %v1225 = vpop.permute.xlu0 %1224
        %1226 = vrot.lane.b32.xlu0 %v493, 28
        %v1227 = vpop.permute.xlu0 %1226
        %1228 = vrot.lane.b32.xlu0 %v495, 28
        %v1229 = vpop.permute.xlu0 %1228
        %1230 = vrot.lane.b32.xlu0 %v498, 28
        %v1231 = vpop.permute.xlu0 %1230
        %1232 = vrot.lane.b32.xlu0 %v500, 28
        %v1233 = vpop.permute.xlu0 %1232
        %1234 = vrot.lane.b32.xlu0 %v503, 28
        %v1235 = vpop.permute.xlu0 %1234
        %1236 = vrot.lane.b32.xlu0 %v505, 28
        %v1237 = vpop.permute.xlu0 %1236
        %1238 = vrot.lane.b32.xlu0 %v508, 28
        %v1239 = vpop.permute.xlu0 %1238
        %1240 = vrot.lane.b32.xlu0 %v510, 28
        %v1241 = vpop.permute.xlu0 %1240
        %1242 = vrot.lane.b32.xlu0 %v513, 28
        %v1243 = vpop.permute.xlu0 %1242
        %1244 = vrot.lane.b32.xlu0 %v515, 28
        %v1245 = vpop.permute.xlu0 %1244
        %1246 = vrot.lane.b32.xlu0 %v518, 28
        %v1247 = vpop.permute.xlu0 %1246
        %1248 = vrot.lane.b32.xlu0 %v520, 28
        %v1249 = vpop.permute.xlu0 %1248
        %1250 = vrot.lane.b32.xlu0 %v523, 28
        %v1251 = vpop.permute.xlu0 %1250
        %1252 = vrot.lane.b32.xlu0 %v525, 28
        %v1253 = vpop.permute.xlu0 %1252
        %1254 = vrot.lane.b32.xlu0 %v528, 28
        %v1255 = vpop.permute.xlu0 %1254
        %1256 = vrot.lane.b32.xlu0 %v530, 28
        %v1257 = vpop.permute.xlu0 %1256
        %1258 = vrot.lane.b32.xlu0 %v533, 28
        %v1259 = vpop.permute.xlu0 %1258
        %1260 = vrot.lane.b32.xlu0 %v535, 28
        %v1261 = vpop.permute.xlu0 %1260
        %1262 = vrot.lane.b32.xlu0 %v538, 28
        %v1263 = vpop.permute.xlu0 %1262
        %1264 = vrot.lane.b32.xlu0 %v540, 28
        %v1265 = vpop.permute.xlu0 %1264
        %1266 = vrot.lane.b32.xlu0 %v914, 28
        %v1267 = vpop.permute.xlu0 %1266
        %1268 = vrot.lane.b32.xlu0 %v916, 28
        %v1269 = vpop.permute.xlu0 %1268
        %1270 = vrot.lane.b32.xlu0 %v463, 28
        %v1271 = vpop.permute.xlu0 %1270
        %1272 = vrot.lane.b32.xlu0 %v465, 28
        %v1273 = vpop.permute.xlu0 %1272
        %1306 = vrot.lane.b32.xlu0 %v650, 32
        %v1307 = vpop.permute.xlu0 %1306
        %1308 = vrot.lane.b32.xlu0 %v652, 32
        %v1309 = vpop.permute.xlu0 %1308
        %1310 = vrot.lane.b32.xlu0 %v655, 32
        %v1311 = vpop.permute.xlu0 %1310
        %1312 = vrot.lane.b32.xlu0 %v657, 32
        %v1313 = vpop.permute.xlu0 %1312
        %1314 = vrot.lane.b32.xlu0 %v660, 32
        %v1315 = vpop.permute.xlu0 %1314
        %1316 = vrot.lane.b32.xlu0 %v662, 32
        %v1317 = vpop.permute.xlu0 %1316
        %1318 = vrot.lane.b32.xlu0 %v665, 32
        %v1319 = vpop.permute.xlu0 %1318
        %1320 = vrot.lane.b32.xlu0 %v667, 32
        %v1321 = vpop.permute.xlu0 %1320
        %1322 = vrot.lane.b32.xlu0 %v670, 32
        %v1323 = vpop.permute.xlu0 %1322
        %1324 = vrot.lane.b32.xlu0 %v672, 32
        %v1325 = vpop.permute.xlu0 %1324
        %1326 = vrot.lane.b32.xlu0 %v675, 32
        %v1327 = vpop.permute.xlu0 %1326
        %1328 = vrot.lane.b32.xlu0 %v677, 32
        %v1329 = vpop.permute.xlu0 %1328
        %1330 = vrot.lane.b32.xlu0 %v680, 32
        %v1331 = vpop.permute.xlu0 %1330
        %1332 = vrot.lane.b32.xlu0 %v682, 32
        %v1333 = vpop.permute.xlu0 %1332
        %1334 = vrot.lane.b32.xlu0 %v685, 32
        %v1335 = vpop.permute.xlu0 %1334
        %1336 = vrot.lane.b32.xlu0 %v687, 32
        %v1337 = vpop.permute.xlu0 %1336
        %1338 = vrot.lane.b32.xlu0 %v690, 32
        %v1339 = vpop.permute.xlu0 %1338
        %1340 = vrot.lane.b32.xlu0 %v692, 32
        %v1341 = vpop.permute.xlu0 %1340
        %1342 = vrot.lane.b32.xlu0 %v695, 32
        %v1343 = vpop.permute.xlu0 %1342
        %1344 = vrot.lane.b32.xlu0 %v697, 32
        %v1345 = vpop.permute.xlu0 %1344
        %1346 = vrot.lane.b32.xlu0 %v700, 32
        %v1347 = vpop.permute.xlu0 %1346
        %1348 = vrot.lane.b32.xlu0 %v702, 32
        %v1349 = vpop.permute.xlu0 %1348
        %1350 = vrot.lane.b32.xlu0 %v705, 32
        %v1351 = vpop.permute.xlu0 %1350
        %1352 = vrot.lane.b32.xlu0 %v707, 32
        %v1353 = vpop.permute.xlu0 %1352
        %1354 = vrot.lane.b32.xlu0 %v710, 32
        %v1355 = vpop.permute.xlu0 %1354
        %1356 = vrot.lane.b32.xlu0 %v712, 32
        %v1357 = vpop.permute.xlu0 %1356
        %1358 = vrot.lane.b32.xlu0 %v715, 32
        %v1359 = vpop.permute.xlu0 %1358
        %1360 = vrot.lane.b32.xlu0 %v717, 32
        %v1361 = vpop.permute.xlu0 %1360
        %1362 = vrot.lane.b32.xlu0 %v1015, 32
        %v1363 = vpop.permute.xlu0 %1362
        %1364 = vrot.lane.b32.xlu0 %v1017, 32
        %v1365 = vpop.permute.xlu0 %1364
        %1366 = vrot.lane.b32.xlu0 %v640, 32
        %v1367 = vpop.permute.xlu0 %1366
        %1368 = vrot.lane.b32.xlu0 %v642, 32
        %v1369 = vpop.permute.xlu0 %1368
        %vm1402 = vcmask 31744
        %v1403 = vsel %vm1402, %v388, %v542
        %v1404 = vsel %vm1402, %v290, %v544
        %v1405 = vsel %vm1402, %v389, %v546
        %v1406 = vsel %vm1402, %v293, %v548
        %v1407 = vsel %vm1402, %v390, %v550
        %v1408 = vsel %vm1402, %v296, %v552
        %v1409 = vsel %vm1402, %v391, %v554
        %v1410 = vsel %vm1402, %v299, %v556
        %v1411 = vsel %vm1402, %v392, %v558
        %v1412 = vsel %vm1402, %v302, %v560
        %v1413 = vsel %vm1402, %v393, %v562
        %v1414 = vsel %vm1402, %v305, %v564
        %v1415 = vsel %vm1402, %v394, %v566
        %v1416 = vsel %vm1402, %v308, %v568
        %v1417 = vsel %vm1402, %v395, %v570
        %v1418 = vsel %vm1402, %v311, %v572
        %v1419 = vsel %vm1402, %v396, %v574
        %v1420 = vsel %vm1402, %v314, %v576
        %v1421 = vsel %vm1402, %v397, %v578
        %v1422 = vsel %vm1402, %v317, %v580
        %v1423 = vsel %vm1402, %v398, %v582
        %v1424 = vsel %vm1402, %v320, %v584
        %v1425 = vsel %vm1402, %v399, %v586
        %v1426 = vsel %vm1402, %v323, %v588
        %v1427 = vsel %vm1402, %v400, %v590
        %v1428 = vsel %vm1402, %v326, %v592
        %v1429 = vsel %vm1402, %v401, %v594
        %v1430 = vsel %vm1402, %v329, %v596
        %v1431 = vsel %vm1402, %v402, %v598
        %v1432 = vsel %vm1402, %v332, %v600
        %v1433 = vsel %vm1402, %v403, %v602
        %v1434 = vsel %vm1402, %v335, %v604
        %vm1435 = vcmask 64512
        %v1436 = vsel %vm1435, %v1403, %v719
        %v1437 = vsel %vm1435, %v1404, %v721
        %v1438 = vsel %vm1435, %v1405, %v723
        %v1439 = vsel %vm1435, %v1406, %v725
        %v1440 = vsel %vm1435, %v1407, %v727
        %v1441 = vsel %vm1435, %v1408, %v729
        %v1442 = vsel %vm1435, %v1409, %v731
        %v1443 = vsel %vm1435, %v1410, %v733
        %v1444 = vsel %vm1435, %v1411, %v735
        %v1445 = vsel %vm1435, %v1412, %v737
        %v1446 = vsel %vm1435, %v1413, %v739
        %v1447 = vsel %vm1435, %v1414, %v741
        %v1448 = vsel %vm1435, %v1415, %v743
        %v1449 = vsel %vm1435, %v1416, %v745
        %v1450 = vsel %vm1435, %v1417, %v747
        %v1451 = vsel %vm1435, %v1418, %v749
        %v1452 = vsel %vm1435, %v1419, %v751
        %v1453 = vsel %vm1435, %v1420, %v753
        %v1454 = vsel %vm1435, %v1421, %v755
        %v1455 = vsel %vm1435, %v1422, %v757
        %v1456 = vsel %vm1435, %v1423, %v759
        %v1457 = vsel %vm1435, %v1424, %v761
        %v1458 = vsel %vm1435, %v1425, %v763
        %v1459 = vsel %vm1435, %v1426, %v765
        %v1460 = vsel %vm1435, %v1427, %v767
        %v1461 = vsel %vm1435, %v1428, %v769
        %v1462 = vsel %vm1435, %v1429, %v771
        %v1463 = vsel %vm1435, %v1430, %v773
        %v1464 = vsel %vm1435, %v1431, %v775
        %v1465 = vsel %vm1435, %v1432, %v777
        %v1466 = vsel %vm1435, %v1433, %v779
        %v1467 = vsel %vm1435, %v1434, %v781
        %vm1468 = vcmask 97280
        %v1469 = vsel %vm1468, %v1436, %v816
        %v1470 = vsel %vm1468, %v1437, %v818
        %v1471 = vsel %vm1468, %v1438, %v820
        %v1472 = vsel %vm1468, %v1439, %v822
        %v1473 = vsel %vm1468, %v1440, %v824
        %v1474 = vsel %vm1468, %v1441, %v826
        %v1475 = vsel %vm1468, %v1442, %v828
        %v1476 = vsel %vm1468, %v1443, %v830
        %v1477 = vsel %vm1468, %v1444, %v832
        %v1478 = vsel %vm1468, %v1445, %v834
        %v1479 = vsel %vm1468, %v1446, %v836
        %v1480 = vsel %vm1468, %v1447, %v838
        %v1481 = vsel %vm1468, %v1448, %v840
        %v1482 = vsel %vm1468, %v1449, %v842
        %v1483 = vsel %vm1468, %v1450, %v844
        %v1484 = vsel %vm1468, %v1451, %v846
        %v1485 = vsel %vm1468, %v1452, %v848
        %v1486 = vsel %vm1468, %v1453, %v850
        %v1487 = vsel %vm1468, %v1454, %v852
        %v1488 = vsel %vm1468, %v1455, %v854
        %v1489 = vsel %vm1468, %v1456, %v856
        %v1490 = vsel %vm1468, %v1457, %v858
        %v1491 = vsel %vm1468, %v1458, %v860
        %v1492 = vsel %vm1468, %v1459, %v862
        %v1493 = vsel %vm1468, %v1460, %v864
        %v1494 = vsel %vm1468, %v1461, %v866
        %v1495 = vsel %vm1468, %v1462, %v868
        %v1496 = vsel %vm1468, %v1463, %v870
        %v1497 = vsel %vm1468, %v1464, %v872
        %v1498 = vsel %vm1468, %v1465, %v874
        %v1499 = vsel %vm1468, %v1466, %v876
        %v1500 = vsel %vm1468, %v1467, %v878
        %vm1501 = vcmask 130048
        %v1502 = vsel %vm1501, %v1469, %v918
        %v1503 = vsel %vm1501, %v1470, %v920
        %v1504 = vsel %vm1501, %v1471, %v922
        %v1505 = vsel %vm1501, %v1472, %v924
        %v1506 = vsel %vm1501, %v1473, %v926
        %v1507 = vsel %vm1501, %v1474, %v928
        %v1508 = vsel %vm1501, %v1475, %v930
        %v1509 = vsel %vm1501, %v1476, %v932
        %v1510 = vsel %vm1501, %v1477, %v934
        %v1511 = vsel %vm1501, %v1478, %v936
        %v1512 = vsel %vm1501, %v1479, %v938
        %v1513 = vsel %vm1501, %v1480, %v940
        %v1514 = vsel %vm1501, %v1481, %v942
        %v1515 = vsel %vm1501, %v1482, %v944
        %v1516 = vsel %vm1501, %v1483, %v946
        %v1517 = vsel %vm1501, %v1484, %v948
        %v1518 = vsel %vm1501, %v1485, %v950
        %v1519 = vsel %vm1501, %v1486, %v952
        %v1520 = vsel %vm1501, %v1487, %v954
        %v1521 = vsel %vm1501, %v1488, %v956
        %v1522 = vsel %vm1501, %v1489, %v958
        %v1523 = vsel %vm1501, %v1490, %v960
        %v1524 = vsel %vm1501, %v1491, %v962
        %v1525 = vsel %vm1501, %v1492, %v964
        %v1526 = vsel %vm1501, %v1493, %v966
        %v1527 = vsel %vm1501, %v1494, %v968
        %v1528 = vsel %vm1501, %v1495, %v970
        %v1529 = vsel %vm1501, %v1496, %v972
        %v1530 = vsel %vm1501, %v1497, %v974
        %v1531 = vsel %vm1501, %v1498, %v976
        %v1532 = vsel %vm1501, %v1499, %v978
        %v1533 = vsel %vm1501, %v1500, %v980
        %vm1534 = vcmask 162816
        %v1535 = vsel %vm1534, %v1502, %v1019
        %v1536 = vsel %vm1534, %v1503, %v1021
        %v1537 = vsel %vm1534, %v1504, %v1023
        %v1538 = vsel %vm1534, %v1505, %v1025
        %v1539 = vsel %vm1534, %v1506, %v1027
        %v1540 = vsel %vm1534, %v1507, %v1029
        %v1541 = vsel %vm1534, %v1508, %v1031
        %v1542 = vsel %vm1534, %v1509, %v1033
        %v1543 = vsel %vm1534, %v1510, %v1035
        %v1544 = vsel %vm1534, %v1511, %v1037
        %v1545 = vsel %vm1534, %v1512, %v1039
        %v1546 = vsel %vm1534, %v1513, %v1041
        %v1547 = vsel %vm1534, %v1514, %v1043
        %v1548 = vsel %vm1534, %v1515, %v1045
        %v1549 = vsel %vm1534, %v1516, %v1047
        %v1550 = vsel %vm1534, %v1517, %v1049
        %v1551 = vsel %vm1534, %v1518, %v1051
        %v1552 = vsel %vm1534, %v1519, %v1053
        %v1553 = vsel %vm1534, %v1520, %v1055
        %v1554 = vsel %vm1534, %v1521, %v1057
        %v1555 = vsel %vm1534, %v1522, %v1059
        %v1556 = vsel %vm1534, %v1523, %v1061
        %v1557 = vsel %vm1534, %v1524, %v1063
        %v1558 = vsel %vm1534, %v1525, %v1065
        %v1559 = vsel %vm1534, %v1526, %v1067
        %v1560 = vsel %vm1534, %v1527, %v1069
        %v1561 = vsel %vm1534, %v1528, %v1071
        %v1562 = vsel %vm1534, %v1529, %v1073
        %v1563 = vsel %vm1534, %v1530, %v1075
        %v1564 = vsel %vm1534, %v1531, %v1077
        %v1565 = vsel %vm1534, %v1532, %v1079
        %v1566 = vsel %vm1534, %v1533, %v1081
        %vm1567 = vcmask 195584
        %v1568 = vsel %vm1567, %v1535, %v1115
        %v1569 = vsel %vm1567, %v1536, %v1117
        %v1570 = vsel %vm1567, %v1537, %v1119
        %v1571 = vsel %vm1567, %v1538, %v1121
        %v1572 = vsel %vm1567, %v1539, %v1123
        %v1573 = vsel %vm1567, %v1540, %v1125
        %v1574 = vsel %vm1567, %v1541, %v1127
        %v1575 = vsel %vm1567, %v1542, %v1129
        %v1576 = vsel %vm1567, %v1543, %v1131
        %v1577 = vsel %vm1567, %v1544, %v1133
        %v1578 = vsel %vm1567, %v1545, %v1135
        %v1579 = vsel %vm1567, %v1546, %v1137
        %v1580 = vsel %vm1567, %v1547, %v1139
        %v1581 = vsel %vm1567, %v1548, %v1141
        %v1582 = vsel %vm1567, %v1549, %v1143
        %v1583 = vsel %vm1567, %v1550, %v1145
        %v1584 = vsel %vm1567, %v1551, %v1147
        %v1585 = vsel %vm1567, %v1552, %v1149
        %v1586 = vsel %vm1567, %v1553, %v1151
        %v1587 = vsel %vm1567, %v1554, %v1153
        %v1588 = vsel %vm1567, %v1555, %v1155
        %v1589 = vsel %vm1567, %v1556, %v1157
        %v1590 = vsel %vm1567, %v1557, %v1159
        %v1591 = vsel %vm1567, %v1558, %v1161
        %v1592 = vsel %vm1567, %v1559, %v1163
        %v1593 = vsel %vm1567, %v1560, %v1165
        %v1594 = vsel %vm1567, %v1561, %v1167
        %v1595 = vsel %vm1567, %v1562, %v1169
        %v1596 = vsel %vm1567, %v1563, %v1171
        %v1597 = vsel %vm1567, %v1564, %v1173
        %v1598 = vsel %vm1567, %v1565, %v1175
        %v1599 = vsel %vm1567, %v1566, %v1177
        %vm1600 = vcmask 228352
        %v1601 = vsel %vm1600, %v1568, %v1211
        %v1602 = vsel %vm1600, %v1569, %v1213
        %v1603 = vsel %vm1600, %v1570, %v1215
        %v1604 = vsel %vm1600, %v1571, %v1217
        %v1605 = vsel %vm1600, %v1572, %v1219
        %v1606 = vsel %vm1600, %v1573, %v1221
        %v1607 = vsel %vm1600, %v1574, %v1223
        %v1608 = vsel %vm1600, %v1575, %v1225
        %v1609 = vsel %vm1600, %v1576, %v1227
        %v1610 = vsel %vm1600, %v1577, %v1229
        %v1611 = vsel %vm1600, %v1578, %v1231
        %v1612 = vsel %vm1600, %v1579, %v1233
        %v1613 = vsel %vm1600, %v1580, %v1235
        %v1614 = vsel %vm1600, %v1581, %v1237
        %v1615 = vsel %vm1600, %v1582, %v1239
        %v1616 = vsel %vm1600, %v1583, %v1241
        %v1617 = vsel %vm1600, %v1584, %v1243
        %v1618 = vsel %vm1600, %v1585, %v1245
        %v1619 = vsel %vm1600, %v1586, %v1247
        %v1620 = vsel %vm1600, %v1587, %v1249
        %v1621 = vsel %vm1600, %v1588, %v1251
        %v1622 = vsel %vm1600, %v1589, %v1253
        %v1623 = vsel %vm1600, %v1590, %v1255
        %v1624 = vsel %vm1600, %v1591, %v1257
        %v1625 = vsel %vm1600, %v1592, %v1259
        %v1626 = vsel %vm1600, %v1593, %v1261
        %v1627 = vsel %vm1600, %v1594, %v1263
        %v1628 = vsel %vm1600, %v1595, %v1265
        %v1629 = vsel %vm1600, %v1596, %v1267
        %v1630 = vsel %vm1600, %v1597, %v1269
        %v1631 = vsel %vm1600, %v1598, %v1271
        %v1632 = vsel %vm1600, %v1599, %v1273
        %vm1633 = vcmask 261120
        %v1634 = vsel %vm1633, %v1601, %v1307
        %v1635 = vsel %vm1633, %v1602, %v1309
        %v1636 = vsel %vm1633, %v1603, %v1311
        %v1637 = vsel %vm1633, %v1604, %v1313
        %v1638 = vsel %vm1633, %v1605, %v1315
        %v1639 = vsel %vm1633, %v1606, %v1317
        %v1640 = vsel %vm1633, %v1607, %v1319
        %v1641 = vsel %vm1633, %v1608, %v1321
        %v1642 = vsel %vm1633, %v1609, %v1323
        %v1643 = vsel %vm1633, %v1610, %v1325
        %v1644 = vsel %vm1633, %v1611, %v1327
        %v1645 = vsel %vm1633, %v1612, %v1329
        %v1646 = vsel %vm1633, %v1613, %v1331
        %v1647 = vsel %vm1633, %v1614, %v1333
        %v1648 = vsel %vm1633, %v1615, %v1335
        %v1649 = vsel %vm1633, %v1616, %v1337
        %v1650 = vsel %vm1633, %v1617, %v1339
        %v1651 = vsel %vm1633, %v1618, %v1341
        %v1652 = vsel %vm1633, %v1619, %v1343
        %v1653 = vsel %vm1633, %v1620, %v1345
        %v1654 = vsel %vm1633, %v1621, %v1347
        %v1655 = vsel %vm1633, %v1622, %v1349
        %v1656 = vsel %vm1633, %v1623, %v1351
        %v1657 = vsel %vm1633, %v1624, %v1353
        %v1658 = vsel %vm1633, %v1625, %v1355
        %v1659 = vsel %vm1633, %v1626, %v1357
        %v1660 = vsel %vm1633, %v1627, %v1359
        %v1661 = vsel %vm1633, %v1628, %v1361
        %v1662 = vsel %vm1633, %v1629, %v1363
        %v1663 = vsel %vm1633, %v1630, %v1365
        %v1664 = vsel %vm1633, %v1631, %v1367
        %v1665 = vsel %vm1633, %v1632, %v1369
        %v1667 = vlaneseq
        %v1668 = vshrl.u32 %v1667, 7
        %v1669 = vsub.s32 0, %v1668
        %v1670 = vrot.slane %v427, %v1669
        %vm1672 = vcmask 293888
        %v1674 = vsel %vm1672, %v1634, 0
        %v1677 = vsel %vm1672, %v1635, 0
        %v1680 = vsel %vm1672, %v1636, 0
        %v1683 = vsel %vm1672, %v1637, 0
        %v1686 = vsel %vm1672, %v1638, 0
        %v1689 = vsel %vm1672, %v1639, 0
        %v1692 = vsel %vm1672, %v1640, 0
        %v1695 = vsel %vm1672, %v1641, 0
        %v1698 = vsel %vm1672, %v1642, 0
        %v1701 = vsel %vm1672, %v1643, 0
        %v1704 = vsel %vm1672, %v1644, 0
        %v1707 = vsel %vm1672, %v1645, 0
        %v1710 = vsel %vm1672, %v1646, 0
        %v1713 = vsel %vm1672, %v1647, 0
        %v1716 = vsel %vm1672, %v1648, 0
        %v1719 = vsel %vm1672, %v1649, 0
        %v1722 = vsel %vm1672, %v1650, 0
        %v1725 = vsel %vm1672, %v1651, 0
        %v1728 = vsel %vm1672, %v1652, 0
        %v1731 = vsel %vm1672, %v1653, 0
        %v1734 = vsel %vm1672, %v1654, 0
        %v1737 = vsel %vm1672, %v1655, 0
        %v1740 = vsel %vm1672, %v1656, 0
        %v1743 = vsel %vm1672, %v1657, 0
        %v1746 = vsel %vm1672, %v1658, 0
        %v1749 = vsel %vm1672, %v1659, 0
        %v1752 = vsel %vm1672, %v1660, 0
        %v1755 = vsel %vm1672, %v1661, 0
        %v1758 = vsel %vm1672, %v1662, 0
        %v1761 = vsel %vm1672, %v1663, 0
        %v1764 = vsel %vm1672, %v1664, 0
        %v1767 = vsel %vm1672, %v1665, 0
        %vm1769 = vcmask 1043456
        %v1771 = vsel %vm1769, %v426, 0
        %1773 = vmatprep.subr.mxu0 0.0
        %1774 = vmatpush1.msra.mxu0 %v422
        %1775 = vmatprep.subr.mxu0 0.0
        %1776 = vmatpush1.msra.mxu0 %v423
        %1777 = vmatprep.subr.mxu0 0.0
        %1778 = vmatpush1.msra.mxu0 %v424
        %1779 = vmatprep.subr.mxu0 0.0
        %1780 = vmatpush1.msra.mxu0 %v425
        %1781 = vmatprep.subr.mxu0 0.0
        %1782 = vmatpush1.msra.mxu0 %v1771
        %1783 = vmatprep.subr.mxu0 0.0
        %1784 = vmatpush1.msra.mxu0 0.0
        %1785 = vmatprep.subr.mxu0 0.0
        %1786 = vmatpush1.msra.mxu0 0.0
        %1787 = vmatprep.subr.mxu0 0.0
        %1788 = vmatpush1.msra.mxu0 0.0
        %1789 = vmatprep.subr.mxu0 0.0
        %1790 = vmatpush1.msra.mxu0 0.0
        %1791 = vmatprep.subr.mxu0 0.0
        %1792 = vmatpush1.msra.mxu0 0.0
        %1793 = vmatprep.subr.mxu0 0.0
        %1794 = vmatpush1.msra.mxu0 0.0
        %1795 = vmatprep.subr.mxu0 0.0
        %1796 = vmatpush1.msra.mxu0 0.0
        %1797 = vmatprep.subr.mxu0 0.0
        %1798 = vmatpush1.msra.mxu0 0.0
        %1799 = vmatprep.subr.mxu0 0.0
        %1800 = vmatpush1.msra.mxu0 0.0
        %1801 = vmatprep.subr.mxu0 0.0
        %1802 = vmatpush1.msra.mxu0 0.0
        %1803 = vmatprep.subr.mxu0 0.0
        %1804 = vmatpush1.msra.mxu0 0.0
        %1805 = vmatprep.subr.mxu0 0.0
        %1806 = vmatpush1.msra.mxu0 0.0
        %1807 = vmatprep.subr.mxu0 0.0
        %1808 = vmatpush1.msra.mxu0 0.0
        %1809 = vmatprep.subr.mxu0 0.0
        %1810 = vmatpush1.msra.mxu0 0.0
        %1811 = vmatprep.subr.mxu0 0.0
        %1812 = vmatpush1.msra.mxu0 0.0
        %1813 = vmatprep.subr.mxu0 0.0
        %1814 = vmatpush1.msra.mxu0 0.0
        %1815 = vmatprep.subr.mxu0 0.0
        %1816 = vmatpush1.msra.mxu0 0.0
        %1817 = vmatprep.subr.mxu0 0.0
        %1818 = vmatpush1.msra.mxu0 0.0
        %1819 = vmatprep.subr.mxu0 0.0
        %1820 = vmatpush1.msra.mxu0 0.0
        %1821 = vmatprep.subr.mxu0 0.0
        %1822 = vmatpush1.msra.mxu0 0.0
        %1823 = vmatprep.subr.mxu0 0.0
        %1824 = vmatpush1.msra.mxu0 0.0
        %1825 = vmatprep.subr.mxu0 0.0
        %1826 = vmatpush1.msra.mxu0 0.0
        %1827 = vmatprep.subr.mxu0 0.0
        %1828 = vmatpush1.msra.mxu0 0.0
        %1829 = vmatprep.subr.mxu0 0.0
        %1830 = vmatpush1.msra.mxu0 0.0
        %1831 = vmatprep.subr.mxu0 0.0
        %1832 = vmatpush1.msra.mxu0 0.0
        %1833 = vmatprep.subr.mxu0 0.0
        %1834 = vmatpush1.msra.mxu0 0.0
        %1835 = vmatprep.subr.mxu0 0.0
        %1836 = vmatpush1.msra.mxu0 0.0
        %1837 = vmatprep.mubr.f32.mxu0 0.0
        %1838 = vmatmul.mubr.f32.gmra.mrb[0].mxu0 %v1674
        %v1839 = vpop.f32.mrb[0].mxu0
        %v1840 = vadd.f32 %v1670, %v1839
        %v1841 = vpop.f32.mrb[0].mxu0
        %1842 = vmatprep.mubr.f32.mxu0 0.0
        %1843 = vmatmul.mubr.f32.gmra.mrb[0].mxu0 %v1677
        %v1844 = vpop.f32.mrb[0].mxu0
        %v1845 = vadd.f32 %v1670, %v1844
        %v1846 = vpop.f32.mrb[0].mxu0
        %1847 = vmatprep.mubr.f32.mxu0 0.0
        %1848 = vmatmul.mubr.f32.gmra.mrb[0].mxu0 %v1680
        %v1849 = vpop.f32.mrb[0].mxu0
        %v1850 = vadd.f32 %v1670, %v1849
        %v1851 = vpop.f32.mrb[0].mxu0
        %1852 = vmatprep.mubr.f32.mxu0 0.0
        %1853 = vmatmul.mubr.f32.gmra.mrb[0].mxu0 %v1683
        %v1854 = vpop.f32.mrb[0].mxu0
        %v1855 = vadd.f32 %v1670, %v1854
        %v1856 = vpop.f32.mrb[0].mxu0
        %1857 = vmatprep.mubr.f32.mxu0 0.0
        %1858 = vmatmul.mubr.f32.gmra.mrb[0].mxu0 %v1686
        %v1859 = vpop.f32.mrb[0].mxu0
        %v1860 = vadd.f32 %v1670, %v1859
        %v1861 = vpop.f32.mrb[0].mxu0
        %1862 = vmatprep.mubr.f32.mxu0 0.0
        %1863 = vmatmul.mubr.f32.gmra.mrb[0].mxu0 %v1689
        %v1864 = vpop.f32.mrb[0].mxu0
        %v1865 = vadd.f32 %v1670, %v1864
        %v1866 = vpop.f32.mrb[0].mxu0
        %1867 = vmatprep.mubr.f32.mxu0 0.0
        %1868 = vmatmul.mubr.f32.gmra.mrb[0].mxu0 %v1692
        %v1869 = vpop.f32.mrb[0].mxu0
        %v1870 = vadd.f32 %v1670, %v1869
        %v1871 = vpop.f32.mrb[0].mxu0
        %1872 = vmatprep.mubr.f32.mxu0 0.0
        %1873 = vmatmul.mubr.f32.gmra.mrb[0].mxu0 %v1695
        %v1874 = vpop.f32.mrb[0].mxu0
        %v1875 = vadd.f32 %v1670, %v1874
        %v1876 = vpop.f32.mrb[0].mxu0
        %1877 = vmatprep.mubr.f32.mxu0 0.0
        %1878 = vmatmul.mubr.f32.gmra.mrb[0].mxu0 %v1698
        %v1879 = vpop.f32.mrb[0].mxu0
        %v1880 = vadd.f32 %v1670, %v1879
        %v1881 = vpop.f32.mrb[0].mxu0
        %1882 = vmatprep.mubr.f32.mxu0 0.0
        %1883 = vmatmul.mubr.f32.gmra.mrb[0].mxu0 %v1701
        %v1884 = vpop.f32.mrb[0].mxu0
        %v1885 = vadd.f32 %v1670, %v1884
        %v1886 = vpop.f32.mrb[0].mxu0
        %1887 = vmatprep.mubr.f32.mxu0 0.0
        %1888 = vmatmul.mubr.f32.gmra.mrb[0].mxu0 %v1704
        %v1889 = vpop.f32.mrb[0].mxu0
        %v1890 = vadd.f32 %v1670, %v1889
        %v1891 = vpop.f32.mrb[0].mxu0
        %1892 = vmatprep.mubr.f32.mxu0 0.0
        %1893 = vmatmul.mubr.f32.gmra.mrb[0].mxu0 %v1707
        %v1894 = vpop.f32.mrb[0].mxu0
        %v1895 = vadd.f32 %v1670, %v1894
        %v1896 = vpop.f32.mrb[0].mxu0
        %1897 = vmatprep.mubr.f32.mxu0 0.0
        %1898 = vmatmul.mubr.f32.gmra.mrb[0].mxu0 %v1710
        %v1899 = vpop.f32.mrb[0].mxu0
        %v1900 = vadd.f32 %v1670, %v1899
        %v1901 = vpop.f32.mrb[0].mxu0
        %1902 = vmatprep.mubr.f32.mxu0 0.0
        %1903 = vmatmul.mubr.f32.gmra.mrb[0].mxu0 %v1713
        %v1904 = vpop.f32.mrb[0].mxu0
        %v1905 = vadd.f32 %v1670, %v1904
        %v1906 = vpop.f32.mrb[0].mxu0
        %1907 = vmatprep.mubr.f32.mxu0 0.0
        %1908 = vmatmul.mubr.f32.gmra.mrb[0].mxu0 %v1716
        %v1909 = vpop.f32.mrb[0].mxu0
        %v1910 = vadd.f32 %v1670, %v1909
        %v1911 = vpop.f32.mrb[0].mxu0
        %1912 = vmatprep.mubr.f32.mxu0 0.0
        %1913 = vmatmul.mubr.f32.gmra.mrb[0].mxu0 %v1719
        %v1914 = vpop.f32.mrb[0].mxu0
        %v1915 = vadd.f32 %v1670, %v1914
        %v1916 = vpop.f32.mrb[0].mxu0
        %1917 = vmatprep.mubr.f32.mxu0 0.0
        %1918 = vmatmul.mubr.f32.gmra.mrb[0].mxu0 %v1722
        %v1919 = vpop.f32.mrb[0].mxu0
        %v1920 = vadd.f32 %v1670, %v1919
        %v1921 = vpop.f32.mrb[0].mxu0
        %1922 = vmatprep.mubr.f32.mxu0 0.0
        %1923 = vmatmul.mubr.f32.gmra.mrb[0].mxu0 %v1725
        %v1924 = vpop.f32.mrb[0].mxu0
        %v1925 = vadd.f32 %v1670, %v1924
        %v1926 = vpop.f32.mrb[0].mxu0
        %1927 = vmatprep.mubr.f32.mxu0 0.0
        %1928 = vmatmul.mubr.f32.gmra.mrb[0].mxu0 %v1728
        %v1929 = vpop.f32.mrb[0].mxu0
        %v1930 = vadd.f32 %v1670, %v1929
        %v1931 = vpop.f32.mrb[0].mxu0
        %1932 = vmatprep.mubr.f32.mxu0 0.0
        %1933 = vmatmul.mubr.f32.gmra.mrb[0].mxu0 %v1731
        %v1934 = vpop.f32.mrb[0].mxu0
        %v1935 = vadd.f32 %v1670, %v1934
        %v1936 = vpop.f32.mrb[0].mxu0
        %1937 = vmatprep.mubr.f32.mxu0 0.0
        %1938 = vmatmul.mubr.f32.gmra.mrb[0].mxu0 %v1734
        %v1939 = vpop.f32.mrb[0].mxu0
        %v1940 = vadd.f32 %v1670, %v1939
        %v1941 = vpop.f32.mrb[0].mxu0
        %1942 = vmatprep.mubr.f32.mxu0 0.0
        %1943 = vmatmul.mubr.f32.gmra.mrb[0].mxu0 %v1737
        %v1944 = vpop.f32.mrb[0].mxu0
        %v1945 = vadd.f32 %v1670, %v1944
        %v1946 = vpop.f32.mrb[0].mxu0
        %1947 = vmatprep.mubr.f32.mxu0 0.0
        %1948 = vmatmul.mubr.f32.gmra.mrb[0].mxu0 %v1740
        %v1949 = vpop.f32.mrb[0].mxu0
        %v1950 = vadd.f32 %v1670, %v1949
        %v1951 = vpop.f32.mrb[0].mxu0
        %1952 = vmatprep.mubr.f32.mxu0 0.0
        %1953 = vmatmul.mubr.f32.gmra.mrb[0].mxu0 %v1743
        %v1954 = vpop.f32.mrb[0].mxu0
        %v1955 = vadd.f32 %v1670, %v1954
        %v1956 = vpop.f32.mrb[0].mxu0
        %1957 = vmatprep.mubr.f32.mxu0 0.0
        %1958 = vmatmul.mubr.f32.gmra.mrb[0].mxu0 %v1746
        %v1959 = vpop.f32.mrb[0].mxu0
        %v1960 = vadd.f32 %v1670, %v1959
        %v1961 = vpop.f32.mrb[0].mxu0
        %1962 = vmatprep.mubr.f32.mxu0 0.0
        %1963 = vmatmul.mubr.f32.gmra.mrb[0].mxu0 %v1749
        %v1964 = vpop.f32.mrb[0].mxu0
        %v1965 = vadd.f32 %v1670, %v1964
        %v1966 = vpop.f32.mrb[0].mxu0
        %1967 = vmatprep.mubr.f32.mxu0 0.0
        %1968 = vmatmul.mubr.f32.gmra.mrb[0].mxu0 %v1752
        %v1969 = vpop.f32.mrb[0].mxu0
        %v1970 = vadd.f32 %v1670, %v1969
        %v1971 = vpop.f32.mrb[0].mxu0
        %1972 = vmatprep.mubr.f32.mxu0 0.0
        %1973 = vmatmul.mubr.f32.gmra.mrb[0].mxu0 %v1755
        %v1974 = vpop.f32.mrb[0].mxu0
        %v1975 = vadd.f32 %v1670, %v1974
        %v1976 = vpop.f32.mrb[0].mxu0
        %1977 = vmatprep.mubr.f32.mxu0 0.0
        %1978 = vmatmul.mubr.f32.gmra.mrb[0].mxu0 %v1758
        %v1979 = vpop.f32.mrb[0].mxu0
        %v1980 = vadd.f32 %v1670, %v1979
        %v1981 = vpop.f32.mrb[0].mxu0
        %1982 = vmatprep.mubr.f32.mxu0 0.0
        %1983 = vmatmul.mubr.f32.gmra.mrb[0].mxu0 %v1761
        %v1984 = vpop.f32.mrb[0].mxu0
        %v1985 = vadd.f32 %v1670, %v1984
        %v1986 = vpop.f32.mrb[0].mxu0
        %1987 = vmatprep.mubr.f32.mxu0 0.0
        %1988 = vmatmul.mubr.f32.gmra.mrb[0].mxu0 %v1764
        %v1989 = vpop.f32.mrb[0].mxu0
        %v1990 = vadd.f32 %v1670, %v1989
        %v1991 = vpop.f32.mrb[0].mxu0
        %1992 = vmatprep.mubr.f32.mxu0 0.0
        %1993 = vmatmul.mubr.f32.gmra.mrb[0].mxu0 %v1767
        %v1994 = vpop.f32.mrb[0].mxu0
        %v1995 = vadd.f32 %v1670, %v1994
        %v1996 = vpop.f32.mrb[0].mxu0
        %1997 = vdwg.mxu0
        %v1998 = vmax.f32 %v1840, 0.0
        %v1999 = vmax.f32 %v1845, 0.0
        %v2000 = vmax.f32 %v1850, 0.0
        %v2001 = vmax.f32 %v1855, 0.0
        %v2002 = vmax.f32 %v1860, 0.0
        %v2003 = vmax.f32 %v1865, 0.0
        %v2004 = vmax.f32 %v1870, 0.0
        %v2005 = vmax.f32 %v1875, 0.0
        %v2006 = vmax.f32 %v1880, 0.0
        %v2007 = vmax.f32 %v1885, 0.0
        %v2008 = vmax.f32 %v1890, 0.0
        %v2009 = vmax.f32 %v1895, 0.0
        %v2010 = vmax.f32 %v1900, 0.0
        %v2011 = vmax.f32 %v1905, 0.0
        %v2012 = vmax.f32 %v1910, 0.0
        %v2013 = vmax.f32 %v1915, 0.0
        %v2014 = vmax.f32 %v1920, 0.0
        %v2015 = vmax.f32 %v1925, 0.0
        %v2016 = vmax.f32 %v1930, 0.0
        %v2017 = vmax.f32 %v1935, 0.0
        %v2018 = vmax.f32 %v1940, 0.0
        %v2019 = vmax.f32 %v1945, 0.0
        %v2020 = vmax.f32 %v1950, 0.0
        %v2021 = vmax.f32 %v1955, 0.0
        %v2022 = vmax.f32 %v1960, 0.0
        %v2023 = vmax.f32 %v1965, 0.0
        %v2024 = vmax.f32 %v1970, 0.0
        %v2025 = vmax.f32 %v1975, 0.0
        %v2026 = vmax.f32 %v1980, 0.0
        %v2027 = vmax.f32 %v1985, 0.0
        %v2028 = vmax.f32 %v1990, 0.0
        %v2029 = vmax.f32 %v1995, 0.0
        %v2062 = vrot.slane %v1998, 7
        %v2063 = vrot.slane %v1999, 7
        %v2064 = vsel %vm288, %v2062, %v2063
        %v2065 = vrot.slane %v2000, 7
        %v2066 = vrot.slane %v2001, 7
        %v2067 = vsel %vm288, %v2065, %v2066
        %v2068 = vrot.slane %v2002, 7
        %v2069 = vrot.slane %v2003, 7
        %v2070 = vsel %vm288, %v2068, %v2069
        %v2071 = vrot.slane %v2004, 7
        %v2072 = vrot.slane %v2005, 7
        %v2073 = vsel %vm288, %v2071, %v2072
        %v2074 = vrot.slane %v2006, 7
        %v2075 = vrot.slane %v2007, 7
        %v2076 = vsel %vm288, %v2074, %v2075
        %v2077 = vrot.slane %v2008, 7
        %v2078 = vrot.slane %v2009, 7
        %v2079 = vsel %vm288, %v2077, %v2078
        %v2080 = vrot.slane %v2010, 7
        %v2081 = vrot.slane %v2011, 7
        %v2082 = vsel %vm288, %v2080, %v2081
        %v2083 = vrot.slane %v2012, 7
        %v2084 = vrot.slane %v2013, 7
        %v2085 = vsel %vm288, %v2083, %v2084
        %v2086 = vrot.slane %v2014, 7
        %v2087 = vrot.slane %v2015, 7
        %v2088 = vsel %vm288, %v2086, %v2087
        %v2089 = vrot.slane %v2016, 7
        %v2090 = vrot.slane %v2017, 7
        %v2091 = vsel %vm288, %v2089, %v2090
        %v2092 = vrot.slane %v2018, 7
        %v2093 = vrot.slane %v2019, 7
        %v2094 = vsel %vm288, %v2092, %v2093
        %v2095 = vrot.slane %v2020, 7
        %v2096 = vrot.slane %v2021, 7
        %v2097 = vsel %vm288, %v2095, %v2096
        %v2098 = vrot.slane %v2022, 7
        %v2099 = vrot.slane %v2023, 7
        %v2100 = vsel %vm288, %v2098, %v2099
        %v2101 = vrot.slane %v2024, 7
        %v2102 = vrot.slane %v2025, 7
        %v2103 = vsel %vm288, %v2101, %v2102
        %v2104 = vrot.slane %v2026, 7
        %v2105 = vrot.slane %v2027, 7
        %v2106 = vsel %vm288, %v2104, %v2105
        %v2107 = vrot.slane %v2028, 7
        %v2108 = vrot.slane %v2029, 7
        %v2109 = vsel %vm288, %v2107, %v2108
        %v2157 = vsel %vm288, 0.0, %v2062
        %v2158 = vsel %vm288, 0.0, %v2065
        %v2159 = vsel %vm288, 0.0, %v2068
        %v2160 = vsel %vm288, 0.0, %v2071
        %v2161 = vsel %vm288, 0.0, %v2074
        %v2162 = vsel %vm288, 0.0, %v2077
        %v2163 = vsel %vm288, 0.0, %v2080
        %v2164 = vsel %vm288, 0.0, %v2083
        %v2165 = vsel %vm288, 0.0, %v2086
        %v2166 = vsel %vm288, 0.0, %v2089
        %v2167 = vsel %vm288, 0.0, %v2092
        %v2168 = vsel %vm288, 0.0, %v2095
        %v2169 = vsel %vm288, 0.0, %v2098
        %v2170 = vsel %vm288, 0.0, %v2101
        %v2171 = vsel %vm288, 0.0, %v2104
        %v2172 = vsel %vm288, 0.0, %v2107
        %v2173 = vsel %vm288, %v2063, 0.0
        %v2174 = vsel %vm288, %v2066, 0.0
        %v2175 = vsel %vm288, %v2069, 0.0
        %v2176 = vsel %vm288, %v2072, 0.0
        %v2177 = vsel %vm288, %v2075, 0.0
        %v2178 = vsel %vm288, %v2078, 0.0
        %v2179 = vsel %vm288, %v2081, 0.0
        %v2180 = vsel %vm288, %v2084, 0.0
        %v2181 = vsel %vm288, %v2087, 0.0
        %v2182 = vsel %vm288, %v2090, 0.0
        %v2183 = vsel %vm288, %v2093, 0.0
        %v2184 = vsel %vm288, %v2096, 0.0
        %v2185 = vsel %vm288, %v2099, 0.0
        %v2186 = vsel %vm288, %v2102, 0.0
        %v2187 = vsel %vm288, %v2105, 0.0
        %v2188 = vsel %vm288, %v2108, 0.0
        %v2189 = vld [vmem:[%s3] sm:$0xff]
        %v2190 = vld [vmem:[%s3 + $0x8] sm:$0xff]
        %v2191 = vld [vmem:[%s3 + $0x10] sm:$0xff]
        %v2192 = vld [vmem:[%s3 + $0x18] sm:$0xff]
        %v2193 = vld [vmem:[%s3 + $0x20] sm:$0xff]
        %v2194 = vld [vmem:[%s3 + $0x28] sm:$0xff]
        %v2195 = vld [vmem:[%s3 + $0x30] sm:$0xff]
        %v2196 = vld [vmem:[%s3 + $0x38] sm:$0xff]
        %v2197 = vld [vmem:[%s3 + $0x40] sm:$0xff]
        %v2198 = vld [vmem:[%s4] sm:$0x1]
        %v2229 = vrot.slane %v2157, 1
        %v2230 = vrot.slane %v2064, 1
        %v2231 = vsel %vm460, %v2229, %v2230
        %v2232 = vrot.slane %v2173, 1
        %v2233 = vsel %vm460, %v2230, %v2232
        %v2234 = vrot.slane %v2158, 1
        %v2235 = vrot.slane %v2067, 1
        %v2236 = vsel %vm460, %v2234, %v2235
        %v2237 = vrot.slane %v2174, 1
        %v2238 = vsel %vm460, %v2235, %v2237
        %v2239 = vrot.slane %v2159, 1
        %v2240 = vrot.slane %v2070, 1
        %v2241 = vsel %vm460, %v2239, %v2240
        %v2242 = vrot.slane %v2175, 1
        %v2243 = vsel %vm460, %v2240, %v2242
        %v2244 = vrot.slane %v2160, 1
        %v2245 = vrot.slane %v2073, 1
        %v2246 = vsel %vm460, %v2244, %v2245
        %v2247 = vrot.slane %v2176, 1
        %v2248 = vsel %vm460, %v2245, %v2247
        %v2249 = vrot.slane %v2161, 1
        %v2250 = vrot.slane %v2076, 1
        %v2251 = vsel %vm460, %v2249, %v2250
        %v2252 = vrot.slane %v2177, 1
        %v2253 = vsel %vm460, %v2250, %v2252
        %v2254 = vrot.slane %v2162, 1
        %v2255 = vrot.slane %v2079, 1
        %v2256 = vsel %vm460, %v2254, %v2255
        %v2257 = vrot.slane %v2178, 1
        %v2258 = vsel %vm460, %v2255, %v2257
        %v2259 = vrot.slane %v2163, 1
        %v2260 = vrot.slane %v2082, 1
        %v2261 = vsel %vm460, %v2259, %v2260
        %v2262 = vrot.slane %v2179, 1
        %v2263 = vsel %vm460, %v2260, %v2262
        %v2264 = vrot.slane %v2164, 1
        %v2265 = vrot.slane %v2085, 1
        %v2266 = vsel %vm460, %v2264, %v2265
        %v2267 = vrot.slane %v2180, 1
        %v2268 = vsel %vm460, %v2265, %v2267
        %v2269 = vrot.slane %v2165, 1
        %v2270 = vrot.slane %v2088, 1
        %v2271 = vsel %vm460, %v2269, %v2270
        %v2272 = vrot.slane %v2181, 1
        %v2273 = vsel %vm460, %v2270, %v2272
        %v2274 = vrot.slane %v2166, 1
        %v2275 = vrot.slane %v2091, 1
        %v2276 = vsel %vm460, %v2274, %v2275
        %v2277 = vrot.slane %v2182, 1
        %v2278 = vsel %vm460, %v2275, %v2277
        %v2279 = vrot.slane %v2167, 1
        %v2280 = vrot.slane %v2094, 1
        %v2281 = vsel %vm460, %v2279, %v2280
        %v2282 = vrot.slane %v2183, 1
        %v2283 = vsel %vm460, %v2280, %v2282
        %v2284 = vrot.slane %v2168, 1
        %v2285 = vrot.slane %v2097, 1
        %v2286 = vsel %vm460, %v2284, %v2285
        %v2287 = vrot.slane %v2184, 1
        %v2288 = vsel %vm460, %v2285, %v2287
        %v2289 = vrot.slane %v2169, 1
        %v2290 = vrot.slane %v2100, 1
        %v2291 = vsel %vm460, %v2289, %v2290
        %v2292 = vrot.slane %v2185, 1
        %v2293 = vsel %vm460, %v2290, %v2292
        %v2294 = vrot.slane %v2170, 1
        %v2295 = vrot.slane %v2103, 1
        %v2296 = vsel %vm460, %v2294, %v2295
        %v2297 = vrot.slane %v2186, 1
        %v2298 = vsel %vm460, %v2295, %v2297
        %v2299 = vrot.slane %v2171, 1
        %v2300 = vrot.slane %v2106, 1
        %v2301 = vsel %vm460, %v2299, %v2300
        %v2302 = vrot.slane %v2187, 1
        %v2303 = vsel %vm460, %v2300, %v2302
        %2304 = vrot.lane.b32.xlu0 %v463, 8
        %v2305 = vpop.permute.xlu0 %2304
        %2306 = vrot.lane.b32.xlu0 %v465, 8
        %v2307 = vpop.permute.xlu0 %2306
        %2308 = vrot.lane.b32.xlu0 %v2231, 8
        %v2309 = vpop.permute.xlu0 %2308
        %2310 = vrot.lane.b32.xlu0 %v2233, 8
        %v2311 = vpop.permute.xlu0 %2310
        %2312 = vrot.lane.b32.xlu0 %v2236, 8
        %v2313 = vpop.permute.xlu0 %2312
        %2314 = vrot.lane.b32.xlu0 %v2238, 8
        %v2315 = vpop.permute.xlu0 %2314
        %2316 = vrot.lane.b32.xlu0 %v2241, 8
        %v2317 = vpop.permute.xlu0 %2316
        %2318 = vrot.lane.b32.xlu0 %v2243, 8
        %v2319 = vpop.permute.xlu0 %2318
        %2320 = vrot.lane.b32.xlu0 %v2246, 8
        %v2321 = vpop.permute.xlu0 %2320
        %2322 = vrot.lane.b32.xlu0 %v2248, 8
        %v2323 = vpop.permute.xlu0 %2322
        %2324 = vrot.lane.b32.xlu0 %v2251, 8
        %v2325 = vpop.permute.xlu0 %2324
        %2326 = vrot.lane.b32.xlu0 %v2253, 8
        %v2327 = vpop.permute.xlu0 %2326
        %2328 = vrot.lane.b32.xlu0 %v2256, 8
        %v2329 = vpop.permute.xlu0 %2328
        %2330 = vrot.lane.b32.xlu0 %v2258, 8
        %v2331 = vpop.permute.xlu0 %2330
        %2332 = vrot.lane.b32.xlu0 %v2261, 8
        %v2333 = vpop.permute.xlu0 %2332
        %2334 = vrot.lane.b32.xlu0 %v2263, 8
        %v2335 = vpop.permute.xlu0 %2334
        %2336 = vrot.lane.b32.xlu0 %v2266, 8
        %v2337 = vpop.permute.xlu0 %2336
        %2338 = vrot.lane.b32.xlu0 %v2268, 8
        %v2339 = vpop.permute.xlu0 %2338
        %2340 = vrot.lane.b32.xlu0 %v2271, 8
        %v2341 = vpop.permute.xlu0 %2340
        %2342 = vrot.lane.b32.xlu0 %v2273, 8
        %v2343 = vpop.permute.xlu0 %2342
        %2344 = vrot.lane.b32.xlu0 %v2276, 8
        %v2345 = vpop.permute.xlu0 %2344
        %2346 = vrot.lane.b32.xlu0 %v2278, 8
        %v2347 = vpop.permute.xlu0 %2346
        %2348 = vrot.lane.b32.xlu0 %v2281, 8
        %v2349 = vpop.permute.xlu0 %2348
        %2350 = vrot.lane.b32.xlu0 %v2283, 8
        %v2351 = vpop.permute.xlu0 %2350
        %2352 = vrot.lane.b32.xlu0 %v2286, 8
        %v2353 = vpop.permute.xlu0 %2352
        %2354 = vrot.lane.b32.xlu0 %v2288, 8
        %v2355 = vpop.permute.xlu0 %2354
        %2356 = vrot.lane.b32.xlu0 %v2291, 8
        %v2357 = vpop.permute.xlu0 %2356
        %2358 = vrot.lane.b32.xlu0 %v2293, 8
        %v2359 = vpop.permute.xlu0 %2358
        %2360 = vrot.lane.b32.xlu0 %v2296, 8
        %v2361 = vpop.permute.xlu0 %2360
        %2362 = vrot.lane.b32.xlu0 %v2298, 8
        %v2363 = vpop.permute.xlu0 %2362
        %2364 = vrot.lane.b32.xlu0 %v2301, 8
        %v2365 = vpop.permute.xlu0 %2364
        %2366 = vrot.lane.b32.xlu0 %v2303, 8
        %v2367 = vpop.permute.xlu0 %2366
        %v2400 = vrot.slane %v2157, 2
        %v2401 = vrot.slane %v2064, 2
        %v2402 = vsel %vm637, %v2400, %v2401
        %v2403 = vrot.slane %v2173, 2
        %v2404 = vsel %vm637, %v2401, %v2403
        %v2405 = vrot.slane %v2158, 2
        %v2406 = vrot.slane %v2067, 2
        %v2407 = vsel %vm637, %v2405, %v2406
        %v2408 = vrot.slane %v2174, 2
        %v2409 = vsel %vm637, %v2406, %v2408
        %v2410 = vrot.slane %v2159, 2
        %v2411 = vrot.slane %v2070, 2
        %v2412 = vsel %vm637, %v2410, %v2411
        %v2413 = vrot.slane %v2175, 2
        %v2414 = vsel %vm637, %v2411, %v2413
        %v2415 = vrot.slane %v2160, 2
        %v2416 = vrot.slane %v2073, 2
        %v2417 = vsel %vm637, %v2415, %v2416
        %v2418 = vrot.slane %v2176, 2
        %v2419 = vsel %vm637, %v2416, %v2418
        %v2420 = vrot.slane %v2161, 2
        %v2421 = vrot.slane %v2076, 2
        %v2422 = vsel %vm637, %v2420, %v2421
        %v2423 = vrot.slane %v2177, 2
        %v2424 = vsel %vm637, %v2421, %v2423
        %v2425 = vrot.slane %v2162, 2
        %v2426 = vrot.slane %v2079, 2
        %v2427 = vsel %vm637, %v2425, %v2426
        %v2428 = vrot.slane %v2178, 2
        %v2429 = vsel %vm637, %v2426, %v2428
        %v2430 = vrot.slane %v2163, 2
        %v2431 = vrot.slane %v2082, 2
        %v2432 = vsel %vm637, %v2430, %v2431
        %v2433 = vrot.slane %v2179, 2
        %v2434 = vsel %vm637, %v2431, %v2433
        %v2435 = vrot.slane %v2164, 2
        %v2436 = vrot.slane %v2085, 2
        %v2437 = vsel %vm637, %v2435, %v2436
        %v2438 = vrot.slane %v2180, 2
        %v2439 = vsel %vm637, %v2436, %v2438
        %v2440 = vrot.slane %v2165, 2
        %v2441 = vrot.slane %v2088, 2
        %v2442 = vsel %vm637, %v2440, %v2441
        %v2443 = vrot.slane %v2181, 2
        %v2444 = vsel %vm637, %v2441, %v2443
        %v2445 = vrot.slane %v2166, 2
        %v2446 = vrot.slane %v2091, 2
        %v2447 = vsel %vm637, %v2445, %v2446
        %v2448 = vrot.slane %v2182, 2
        %v2449 = vsel %vm637, %v2446, %v2448
        %v2450 = vrot.slane %v2167, 2
        %v2451 = vrot.slane %v2094, 2
        %v2452 = vsel %vm637, %v2450, %v2451
        %v2453 = vrot.slane %v2183, 2
        %v2454 = vsel %vm637, %v2451, %v2453
        %v2455 = vrot.slane %v2168, 2
        %v2456 = vrot.slane %v2097, 2
        %v2457 = vsel %vm637, %v2455, %v2456
        %v2458 = vrot.slane %v2184, 2
        %v2459 = vsel %vm637, %v2456, %v2458
        %v2460 = vrot.slane %v2169, 2
        %v2461 = vrot.slane %v2100, 2
        %v2462 = vsel %vm637, %v2460, %v2461
        %v2463 = vrot.slane %v2185, 2
        %v2464 = vsel %vm637, %v2461, %v2463
        %v2465 = vrot.slane %v2170, 2
        %v2466 = vrot.slane %v2103, 2
        %v2467 = vsel %vm637, %v2465, %v2466
        %v2468 = vrot.slane %v2186, 2
        %v2469 = vsel %vm637, %v2466, %v2468
        %v2470 = vrot.slane %v2171, 2
        %v2471 = vrot.slane %v2106, 2
        %v2472 = vsel %vm637, %v2470, %v2471
        %v2473 = vrot.slane %v2187, 2
        %v2474 = vsel %vm637, %v2471, %v2473
        %2475 = vrot.lane.b32.xlu0 %v640, 16
        %v2476 = vpop.permute.xlu0 %2475
        %2477 = vrot.lane.b32.xlu0 %v642, 16
        %v2478 = vpop.permute.xlu0 %2477
        %2479 = vrot.lane.b32.xlu0 %v2402, 16
        %v2480 = vpop.permute.xlu0 %2479
        %2481 = vrot.lane.b32.xlu0 %v2404, 16
        %v2482 = vpop.permute.xlu0 %2481
        %2483 = vrot.lane.b32.xlu0 %v2407, 16
        %v2484 = vpop.permute.xlu0 %2483
        %2485 = vrot.lane.b32.xlu0 %v2409, 16
        %v2486 = vpop.permute.xlu0 %2485
        %2487 = vrot.lane.b32.xlu0 %v2412, 16
        %v2488 = vpop.permute.xlu0 %2487
        %2489 = vrot.lane.b32.xlu0 %v2414, 16
        %v2490 = vpop.permute.xlu0 %2489
        %2491 = vrot.lane.b32.xlu0 %v2417, 16
        %v2492 = vpop.permute.xlu0 %2491
        %2493 = vrot.lane.b32.xlu0 %v2419, 16
        %v2494 = vpop.permute.xlu0 %2493
        %2495 = vrot.lane.b32.xlu0 %v2422, 16
        %v2496 = vpop.permute.xlu0 %2495
        %2497 = vrot.lane.b32.xlu0 %v2424, 16
        %v2498 = vpop.permute.xlu0 %2497
        %2499 = vrot.lane.b32.xlu0 %v2427, 16
        %v2500 = vpop.permute.xlu0 %2499
        %2501 = vrot.lane.b32.xlu0 %v2429, 16
        %v2502 = vpop.permute.xlu0 %2501
        %2503 = vrot.lane.b32.xlu0 %v2432, 16
        %v2504 = vpop.permute.xlu0 %2503
        %2505 = vrot.lane.b32.xlu0 %v2434, 16
        %v2506 = vpop.permute.xlu0 %2505
        %2507 = vrot.lane.b32.xlu0 %v2437, 16
        %v2508 = vpop.permute.xlu0 %2507
        %2509 = vrot.lane.b32.xlu0 %v2439, 16
        %v2510 = vpop.permute.xlu0 %2509
        %2511 = vrot.lane.b32.xlu0 %v2442, 16
        %v2512 = vpop.permute.xlu0 %2511
        %2513 = vrot.lane.b32.xlu0 %v2444, 16
        %v2514 = vpop.permute.xlu0 %2513
        %2515 = vrot.lane.b32.xlu0 %v2447, 16
        %v2516 = vpop.permute.xlu0 %2515
        %2517 = vrot.lane.b32.xlu0 %v2449, 16
        %v2518 = vpop.permute.xlu0 %2517
        %2519 = vrot.lane.b32.xlu0 %v2452, 16
        %v2520 = vpop.permute.xlu0 %2519
        %2521 = vrot.lane.b32.xlu0 %v2454, 16
        %v2522 = vpop.permute.xlu0 %2521
        %2523 = vrot.lane.b32.xlu0 %v2457, 16
        %v2524 = vpop.permute.xlu0 %2523
        %2525 = vrot.lane.b32.xlu0 %v2459, 16
        %v2526 = vpop.permute.xlu0 %2525
        %2527 = vrot.lane.b32.xlu0 %v2462, 16
        %v2528 = vpop.permute.xlu0 %2527
        %2529 = vrot.lane.b32.xlu0 %v2464, 16
        %v2530 = vpop.permute.xlu0 %2529
        %2531 = vrot.lane.b32.xlu0 %v2467, 16
        %v2532 = vpop.permute.xlu0 %2531
        %2533 = vrot.lane.b32.xlu0 %v2469, 16
        %v2534 = vpop.permute.xlu0 %2533
        %2535 = vrot.lane.b32.xlu0 %v2472, 16
        %v2536 = vpop.permute.xlu0 %2535
        %2537 = vrot.lane.b32.xlu0 %v2474, 16
        %v2538 = vpop.permute.xlu0 %2537
        %2572 = vrot.lane.b32.xlu0 %v2157, 24
        %v2573 = vpop.permute.xlu0 %2572
        %2574 = vrot.lane.b32.xlu0 %v2064, 24
        %v2575 = vpop.permute.xlu0 %2574
        %2576 = vrot.lane.b32.xlu0 %v2158, 24
        %v2577 = vpop.permute.xlu0 %2576
        %2578 = vrot.lane.b32.xlu0 %v2067, 24
        %v2579 = vpop.permute.xlu0 %2578
        %2580 = vrot.lane.b32.xlu0 %v2159, 24
        %v2581 = vpop.permute.xlu0 %2580
        %2582 = vrot.lane.b32.xlu0 %v2070, 24
        %v2583 = vpop.permute.xlu0 %2582
        %2584 = vrot.lane.b32.xlu0 %v2160, 24
        %v2585 = vpop.permute.xlu0 %2584
        %2586 = vrot.lane.b32.xlu0 %v2073, 24
        %v2587 = vpop.permute.xlu0 %2586
        %2588 = vrot.lane.b32.xlu0 %v2161, 24
        %v2589 = vpop.permute.xlu0 %2588
        %2590 = vrot.lane.b32.xlu0 %v2076, 24
        %v2591 = vpop.permute.xlu0 %2590
        %2592 = vrot.lane.b32.xlu0 %v2162, 24
        %v2593 = vpop.permute.xlu0 %2592
        %2594 = vrot.lane.b32.xlu0 %v2079, 24
        %v2595 = vpop.permute.xlu0 %2594
        %2596 = vrot.lane.b32.xlu0 %v2163, 24
        %v2597 = vpop.permute.xlu0 %2596
        %2598 = vrot.lane.b32.xlu0 %v2082, 24
        %v2599 = vpop.permute.xlu0 %2598
        %2600 = vrot.lane.b32.xlu0 %v2164, 24
        %v2601 = vpop.permute.xlu0 %2600
        %2602 = vrot.lane.b32.xlu0 %v2085, 24
        %v2603 = vpop.permute.xlu0 %2602
        %2604 = vrot.lane.b32.xlu0 %v2165, 24
        %v2605 = vpop.permute.xlu0 %2604
        %2606 = vrot.lane.b32.xlu0 %v2088, 24
        %v2607 = vpop.permute.xlu0 %2606
        %2608 = vrot.lane.b32.xlu0 %v2166, 24
        %v2609 = vpop.permute.xlu0 %2608
        %2610 = vrot.lane.b32.xlu0 %v2091, 24
        %v2611 = vpop.permute.xlu0 %2610
        %2612 = vrot.lane.b32.xlu0 %v2167, 24
        %v2613 = vpop.permute.xlu0 %2612
        %2614 = vrot.lane.b32.xlu0 %v2094, 24
        %v2615 = vpop.permute.xlu0 %2614
        %2616 = vrot.lane.b32.xlu0 %v2168, 24
        %v2617 = vpop.permute.xlu0 %2616
        %2618 = vrot.lane.b32.xlu0 %v2097, 24
        %v2619 = vpop.permute.xlu0 %2618
        %2620 = vrot.lane.b32.xlu0 %v2169, 24
        %v2621 = vpop.permute.xlu0 %2620
        %2622 = vrot.lane.b32.xlu0 %v2100, 24
        %v2623 = vpop.permute.xlu0 %2622
        %2624 = vrot.lane.b32.xlu0 %v2170, 24
        %v2625 = vpop.permute.xlu0 %2624
        %2626 = vrot.lane.b32.xlu0 %v2103, 24
        %v2627 = vpop.permute.xlu0 %2626
        %2628 = vrot.lane.b32.xlu0 %v2171, 24
        %v2629 = vpop.permute.xlu0 %2628
        %2630 = vrot.lane.b32.xlu0 %v2106, 24
        %v2631 = vpop.permute.xlu0 %2630
        %2632 = vrot.lane.b32.xlu0 %v2172, 24
        %v2633 = vpop.permute.xlu0 %2632
        %2634 = vrot.lane.b32.xlu0 %v2109, 24
        %v2635 = vpop.permute.xlu0 %2634
        %v2669 = vrot.slane %v2172, 1
        %v2670 = vrot.slane %v2109, 1
        %v2671 = vsel %vm460, %v2669, %v2670
        %v2672 = vrot.slane %v2188, 1
        %v2673 = vsel %vm460, %v2670, %v2672
        %2674 = vrot.lane.b32.xlu0 %v2231, 32
        %v2675 = vpop.permute.xlu0 %2674
        %2676 = vrot.lane.b32.xlu0 %v2233, 32
        %v2677 = vpop.permute.xlu0 %2676
        %2678 = vrot.lane.b32.xlu0 %v2236, 32
        %v2679 = vpop.permute.xlu0 %2678
        %2680 = vrot.lane.b32.xlu0 %v2238, 32
        %v2681 = vpop.permute.xlu0 %2680
        %2682 = vrot.lane.b32.xlu0 %v2241, 32
        %v2683 = vpop.permute.xlu0 %2682
        %2684 = vrot.lane.b32.xlu0 %v2243, 32
        %v2685 = vpop.permute.xlu0 %2684
        %2686 = vrot.lane.b32.xlu0 %v2246, 32
        %v2687 = vpop.permute.xlu0 %2686
        %2688 = vrot.lane.b32.xlu0 %v2248, 32
        %v2689 = vpop.permute.xlu0 %2688
        %2690 = vrot.lane.b32.xlu0 %v2251, 32
        %v2691 = vpop.permute.xlu0 %2690
        %2692 = vrot.lane.b32.xlu0 %v2253, 32
        %v2693 = vpop.permute.xlu0 %2692
        %2694 = vrot.lane.b32.xlu0 %v2256, 32
        %v2695 = vpop.permute.xlu0 %2694
        %2696 = vrot.lane.b32.xlu0 %v2258, 32
        %v2697 = vpop.permute.xlu0 %2696
        %2698 = vrot.lane.b32.xlu0 %v2261, 32
        %v2699 = vpop.permute.xlu0 %2698
        %2700 = vrot.lane.b32.xlu0 %v2263, 32
        %v2701 = vpop.permute.xlu0 %2700
        %2702 = vrot.lane.b32.xlu0 %v2266, 32
        %v2703 = vpop.permute.xlu0 %2702
        %2704 = vrot.lane.b32.xlu0 %v2268, 32
        %v2705 = vpop.permute.xlu0 %2704
        %2706 = vrot.lane.b32.xlu0 %v2271, 32
        %v2707 = vpop.permute.xlu0 %2706
        %2708 = vrot.lane.b32.xlu0 %v2273, 32
        %v2709 = vpop.permute.xlu0 %2708
        %2710 = vrot.lane.b32.xlu0 %v2276, 32
        %v2711 = vpop.permute.xlu0 %2710
        %2712 = vrot.lane.b32.xlu0 %v2278, 32
        %v2713 = vpop.permute.xlu0 %2712
        %2714 = vrot.lane.b32.xlu0 %v2281, 32
        %v2715 = vpop.permute.xlu0 %2714
        %2716 = vrot.lane.b32.xlu0 %v2283, 32
        %v2717 = vpop.permute.xlu0 %2716
        %2718 = vrot.lane.b32.xlu0 %v2286, 32
        %v2719 = vpop.permute.xlu0 %2718
        %2720 = vrot.lane.b32.xlu0 %v2288, 32
        %v2721 = vpop.permute.xlu0 %2720
        %2722 = vrot.lane.b32.xlu0 %v2291, 32
        %v2723 = vpop.permute.xlu0 %2722
        %2724 = vrot.lane.b32.xlu0 %v2293, 32
        %v2725 = vpop.permute.xlu0 %2724
        %2726 = vrot.lane.b32.xlu0 %v2296, 32
        %v2727 = vpop.permute.xlu0 %2726
        %2728 = vrot.lane.b32.xlu0 %v2298, 32
        %v2729 = vpop.permute.xlu0 %2728
        %2730 = vrot.lane.b32.xlu0 %v2301, 32
        %v2731 = vpop.permute.xlu0 %2730
        %2732 = vrot.lane.b32.xlu0 %v2303, 32
        %v2733 = vpop.permute.xlu0 %2732
        %2734 = vrot.lane.b32.xlu0 %v2671, 32
        %v2735 = vpop.permute.xlu0 %2734
        %2736 = vrot.lane.b32.xlu0 %v2673, 32
        %v2737 = vpop.permute.xlu0 %2736
        %v2770 = vrot.slane %v2172, 2
        %v2771 = vrot.slane %v2109, 2
        %v2772 = vsel %vm637, %v2770, %v2771
        %v2773 = vrot.slane %v2188, 2
        %v2774 = vsel %vm637, %v2771, %v2773
        %2775 = vrot.lane.b32.xlu0 %v2402, 40
        %v2776 = vpop.permute.xlu0 %2775
        %2777 = vrot.lane.b32.xlu0 %v2404, 40
        %v2778 = vpop.permute.xlu0 %2777
        %2779 = vrot.lane.b32.xlu0 %v2407, 40
        %v2780 = vpop.permute.xlu0 %2779
        %2781 = vrot.lane.b32.xlu0 %v2409, 40
        %v2782 = vpop.permute.xlu0 %2781
        %2783 = vrot.lane.b32.xlu0 %v2412, 40
        %v2784 = vpop.permute.xlu0 %2783
        %2785 = vrot.lane.b32.xlu0 %v2414, 40
        %v2786 = vpop.permute.xlu0 %2785
        %2787 = vrot.lane.b32.xlu0 %v2417, 40
        %v2788 = vpop.permute.xlu0 %2787
        %2789 = vrot.lane.b32.xlu0 %v2419, 40
        %v2790 = vpop.permute.xlu0 %2789
        %2791 = vrot.lane.b32.xlu0 %v2422, 40
        %v2792 = vpop.permute.xlu0 %2791
        %2793 = vrot.lane.b32.xlu0 %v2424, 40
        %v2794 = vpop.permute.xlu0 %2793
        %2795 = vrot.lane.b32.xlu0 %v2427, 40
        %v2796 = vpop.permute.xlu0 %2795
        %2797 = vrot.lane.b32.xlu0 %v2429, 40
        %v2798 = vpop.permute.xlu0 %2797
        %2799 = vrot.lane.b32.xlu0 %v2432, 40
        %v2800 = vpop.permute.xlu0 %2799
        %2801 = vrot.lane.b32.xlu0 %v2434, 40
        %v2802 = vpop.permute.xlu0 %2801
        %2803 = vrot.lane.b32.xlu0 %v2437, 40
        %v2804 = vpop.permute.xlu0 %2803
        %2805 = vrot.lane.b32.xlu0 %v2439, 40
        %v2806 = vpop.permute.xlu0 %2805
        %2807 = vrot.lane.b32.xlu0 %v2442, 40
        %v2808 = vpop.permute.xlu0 %2807
        %2809 = vrot.lane.b32.xlu0 %v2444, 40
        %v2810 = vpop.permute.xlu0 %2809
        %2811 = vrot.lane.b32.xlu0 %v2447, 40
        %v2812 = vpop.permute.xlu0 %2811
        %2813 = vrot.lane.b32.xlu0 %v2449, 40
        %v2814 = vpop.permute.xlu0 %2813
        %2815 = vrot.lane.b32.xlu0 %v2452, 40
        %v2816 = vpop.permute.xlu0 %2815
        %2817 = vrot.lane.b32.xlu0 %v2454, 40
        %v2818 = vpop.permute.xlu0 %2817
        %2819 = vrot.lane.b32.xlu0 %v2457, 40
        %v2820 = vpop.permute.xlu0 %2819
        %2821 = vrot.lane.b32.xlu0 %v2459, 40
        %v2822 = vpop.permute.xlu0 %2821
        %2823 = vrot.lane.b32.xlu0 %v2462, 40
        %v2824 = vpop.permute.xlu0 %2823
        %2825 = vrot.lane.b32.xlu0 %v2464, 40
        %v2826 = vpop.permute.xlu0 %2825
        %2827 = vrot.lane.b32.xlu0 %v2467, 40
        %v2828 = vpop.permute.xlu0 %2827
        %2829 = vrot.lane.b32.xlu0 %v2469, 40
        %v2830 = vpop.permute.xlu0 %2829
        %2831 = vrot.lane.b32.xlu0 %v2472, 40
        %v2832 = vpop.permute.xlu0 %2831
        %2833 = vrot.lane.b32.xlu0 %v2474, 40
        %v2834 = vpop.permute.xlu0 %2833
        %2835 = vrot.lane.b32.xlu0 %v2772, 40
        %v2836 = vpop.permute.xlu0 %2835
        %2837 = vrot.lane.b32.xlu0 %v2774, 40
        %v2838 = vpop.permute.xlu0 %2837
        %2871 = vrot.lane.b32.xlu0 %v2158, 48
        %v2872 = vpop.permute.xlu0 %2871
        %2873 = vrot.lane.b32.xlu0 %v2067, 48
        %v2874 = vpop.permute.xlu0 %2873
        %2875 = vrot.lane.b32.xlu0 %v2159, 48
        %v2876 = vpop.permute.xlu0 %2875
        %2877 = vrot.lane.b32.xlu0 %v2070, 48
        %v2878 = vpop.permute.xlu0 %2877
        %2879 = vrot.lane.b32.xlu0 %v2160, 48
        %v2880 = vpop.permute.xlu0 %2879
        %2881 = vrot.lane.b32.xlu0 %v2073, 48
        %v2882 = vpop.permute.xlu0 %2881
        %2883 = vrot.lane.b32.xlu0 %v2161, 48
        %v2884 = vpop.permute.xlu0 %2883
        %2885 = vrot.lane.b32.xlu0 %v2076, 48
        %v2886 = vpop.permute.xlu0 %2885
        %2887 = vrot.lane.b32.xlu0 %v2162, 48
        %v2888 = vpop.permute.xlu0 %2887
        %2889 = vrot.lane.b32.xlu0 %v2079, 48
        %v2890 = vpop.permute.xlu0 %2889
        %2891 = vrot.lane.b32.xlu0 %v2163, 48
        %v2892 = vpop.permute.xlu0 %2891
        %2893 = vrot.lane.b32.xlu0 %v2082, 48
        %v2894 = vpop.permute.xlu0 %2893
        %2895 = vrot.lane.b32.xlu0 %v2164, 48
        %v2896 = vpop.permute.xlu0 %2895
        %2897 = vrot.lane.b32.xlu0 %v2085, 48
        %v2898 = vpop.permute.xlu0 %2897
        %2899 = vrot.lane.b32.xlu0 %v2165, 48
        %v2900 = vpop.permute.xlu0 %2899
        %2901 = vrot.lane.b32.xlu0 %v2088, 48
        %v2902 = vpop.permute.xlu0 %2901
        %2903 = vrot.lane.b32.xlu0 %v2166, 48
        %v2904 = vpop.permute.xlu0 %2903
        %2905 = vrot.lane.b32.xlu0 %v2091, 48
        %v2906 = vpop.permute.xlu0 %2905
        %2907 = vrot.lane.b32.xlu0 %v2167, 48
        %v2908 = vpop.permute.xlu0 %2907
        %2909 = vrot.lane.b32.xlu0 %v2094, 48
        %v2910 = vpop.permute.xlu0 %2909
        %2911 = vrot.lane.b32.xlu0 %v2168, 48
        %v2912 = vpop.permute.xlu0 %2911
        %2913 = vrot.lane.b32.xlu0 %v2097, 48
        %v2914 = vpop.permute.xlu0 %2913
        %2915 = vrot.lane.b32.xlu0 %v2169, 48
        %v2916 = vpop.permute.xlu0 %2915
        %2917 = vrot.lane.b32.xlu0 %v2100, 48
        %v2918 = vpop.permute.xlu0 %2917
        %2919 = vrot.lane.b32.xlu0 %v2170, 48
        %v2920 = vpop.permute.xlu0 %2919
        %2921 = vrot.lane.b32.xlu0 %v2103, 48
        %v2922 = vpop.permute.xlu0 %2921
        %2923 = vrot.lane.b32.xlu0 %v2171, 48
        %v2924 = vpop.permute.xlu0 %2923
        %2925 = vrot.lane.b32.xlu0 %v2106, 48
        %v2926 = vpop.permute.xlu0 %2925
        %2927 = vrot.lane.b32.xlu0 %v2172, 48
        %v2928 = vpop.permute.xlu0 %2927
        %2929 = vrot.lane.b32.xlu0 %v2109, 48
        %v2930 = vpop.permute.xlu0 %2929
        %2931 = vrot.lane.b32.xlu0 %v388, 48
        %v2932 = vpop.permute.xlu0 %2931
        %2933 = vrot.lane.b32.xlu0 %v290, 48
        %v2934 = vpop.permute.xlu0 %2933
        %2967 = vrot.lane.b32.xlu0 %v2236, 56
        %v2968 = vpop.permute.xlu0 %2967
        %2969 = vrot.lane.b32.xlu0 %v2238, 56
        %v2970 = vpop.permute.xlu0 %2969
        %2971 = vrot.lane.b32.xlu0 %v2241, 56
        %v2972 = vpop.permute.xlu0 %2971
        %2973 = vrot.lane.b32.xlu0 %v2243, 56
        %v2974 = vpop.permute.xlu0 %2973
        %2975 = vrot.lane.b32.xlu0 %v2246, 56
        %v2976 = vpop.permute.xlu0 %2975
        %2977 = vrot.lane.b32.xlu0 %v2248, 56
        %v2978 = vpop.permute.xlu0 %2977
        %2979 = vrot.lane.b32.xlu0 %v2251, 56
        %v2980 = vpop.permute.xlu0 %2979
        %2981 = vrot.lane.b32.xlu0 %v2253, 56
        %v2982 = vpop.permute.xlu0 %2981
        %2983 = vrot.lane.b32.xlu0 %v2256, 56
        %v2984 = vpop.permute.xlu0 %2983
        %2985 = vrot.lane.b32.xlu0 %v2258, 56
        %v2986 = vpop.permute.xlu0 %2985
        %2987 = vrot.lane.b32.xlu0 %v2261, 56
        %v2988 = vpop.permute.xlu0 %2987
        %2989 = vrot.lane.b32.xlu0 %v2263, 56
        %v2990 = vpop.permute.xlu0 %2989
        %2991 = vrot.lane.b32.xlu0 %v2266, 56
        %v2992 = vpop.permute.xlu0 %2991
        %2993 = vrot.lane.b32.xlu0 %v2268, 56
        %v2994 = vpop.permute.xlu0 %2993
        %2995 = vrot.lane.b32.xlu0 %v2271, 56
        %v2996 = vpop.permute.xlu0 %2995
        %2997 = vrot.lane.b32.xlu0 %v2273, 56
        %v2998 = vpop.permute.xlu0 %2997
        %2999 = vrot.lane.b32.xlu0 %v2276, 56
        %v3000 = vpop.permute.xlu0 %2999
        %3001 = vrot.lane.b32.xlu0 %v2278, 56
        %v3002 = vpop.permute.xlu0 %3001
        %3003 = vrot.lane.b32.xlu0 %v2281, 56
        %v3004 = vpop.permute.xlu0 %3003
        %3005 = vrot.lane.b32.xlu0 %v2283, 56
        %v3006 = vpop.permute.xlu0 %3005
        %3007 = vrot.lane.b32.xlu0 %v2286, 56
        %v3008 = vpop.permute.xlu0 %3007
        %3009 = vrot.lane.b32.xlu0 %v2288, 56
        %v3010 = vpop.permute.xlu0 %3009
        %3011 = vrot.lane.b32.xlu0 %v2291, 56
        %v3012 = vpop.permute.xlu0 %3011
        %3013 = vrot.lane.b32.xlu0 %v2293, 56
        %v3014 = vpop.permute.xlu0 %3013
        %3015 = vrot.lane.b32.xlu0 %v2296, 56
        %v3016 = vpop.permute.xlu0 %3015
        %3017 = vrot.lane.b32.xlu0 %v2298, 56
        %v3018 = vpop.permute.xlu0 %3017
        %3019 = vrot.lane.b32.xlu0 %v2301, 56
        %v3020 = vpop.permute.xlu0 %3019
        %3021 = vrot.lane.b32.xlu0 %v2303, 56
        %v3022 = vpop.permute.xlu0 %3021
        %3023 = vrot.lane.b32.xlu0 %v2671, 56
        %v3024 = vpop.permute.xlu0 %3023
        %3025 = vrot.lane.b32.xlu0 %v2673, 56
        %v3026 = vpop.permute.xlu0 %3025
        %3027 = vrot.lane.b32.xlu0 %v463, 56
        %v3028 = vpop.permute.xlu0 %3027
        %3029 = vrot.lane.b32.xlu0 %v465, 56
        %v3030 = vpop.permute.xlu0 %3029
        %3063 = vrot.lane.b32.xlu0 %v2407, 64
        %v3064 = vpop.permute.xlu0 %3063
        %3065 = vrot.lane.b32.xlu0 %v2409, 64
        %v3066 = vpop.permute.xlu0 %3065
        %3067 = vrot.lane.b32.xlu0 %v2412, 64
        %v3068 = vpop.permute.xlu0 %3067
        %3069 = vrot.lane.b32.xlu0 %v2414, 64
        %v3070 = vpop.permute.xlu0 %3069
        %3071 = vrot.lane.b32.xlu0 %v2417, 64
        %v3072 = vpop.permute.xlu0 %3071
        %3073 = vrot.lane.b32.xlu0 %v2419, 64
        %v3074 = vpop.permute.xlu0 %3073
        %3075 = vrot.lane.b32.xlu0 %v2422, 64
        %v3076 = vpop.permute.xlu0 %3075
        %3077 = vrot.lane.b32.xlu0 %v2424, 64
        %v3078 = vpop.permute.xlu0 %3077
        %3079 = vrot.lane.b32.xlu0 %v2427, 64
        %v3080 = vpop.permute.xlu0 %3079
        %3081 = vrot.lane.b32.xlu0 %v2429, 64
        %v3082 = vpop.permute.xlu0 %3081
        %3083 = vrot.lane.b32.xlu0 %v2432, 64
        %v3084 = vpop.permute.xlu0 %3083
        %3085 = vrot.lane.b32.xlu0 %v2434, 64
        %v3086 = vpop.permute.xlu0 %3085
        %3087 = vrot.lane.b32.xlu0 %v2437, 64
        %v3088 = vpop.permute.xlu0 %3087
        %3089 = vrot.lane.b32.xlu0 %v2439, 64
        %v3090 = vpop.permute.xlu0 %3089
        %3091 = vrot.lane.b32.xlu0 %v2442, 64
        %v3092 = vpop.permute.xlu0 %3091
        %3093 = vrot.lane.b32.xlu0 %v2444, 64
        %v3094 = vpop.permute.xlu0 %3093
        %3095 = vrot.lane.b32.xlu0 %v2447, 64
        %v3096 = vpop.permute.xlu0 %3095
        %3097 = vrot.lane.b32.xlu0 %v2449, 64
        %v3098 = vpop.permute.xlu0 %3097
        %3099 = vrot.lane.b32.xlu0 %v2452, 64
        %v3100 = vpop.permute.xlu0 %3099
        %3101 = vrot.lane.b32.xlu0 %v2454, 64
        %v3102 = vpop.permute.xlu0 %3101
        %3103 = vrot.lane.b32.xlu0 %v2457, 64
        %v3104 = vpop.permute.xlu0 %3103
        %3105 = vrot.lane.b32.xlu0 %v2459, 64
        %v3106 = vpop.permute.xlu0 %3105
        %3107 = vrot.lane.b32.xlu0 %v2462, 64
        %v3108 = vpop.permute.xlu0 %3107
        %3109 = vrot.lane.b32.xlu0 %v2464, 64
        %v3110 = vpop.permute.xlu0 %3109
        %3111 = vrot.lane.b32.xlu0 %v2467, 64
        %v3112 = vpop.permute.xlu0 %3111
        %3113 = vrot.lane.b32.xlu0 %v2469, 64
        %v3114 = vpop.permute.xlu0 %3113
        %3115 = vrot.lane.b32.xlu0 %v2472, 64
        %v3116 = vpop.permute.xlu0 %3115
        %3117 = vrot.lane.b32.xlu0 %v2474, 64
        %v3118 = vpop.permute.xlu0 %3117
        %3119 = vrot.lane.b32.xlu0 %v2772, 64
        %v3120 = vpop.permute.xlu0 %3119
        %3121 = vrot.lane.b32.xlu0 %v2774, 64
        %v3122 = vpop.permute.xlu0 %3121
        %3123 = vrot.lane.b32.xlu0 %v640, 64
        %v3124 = vpop.permute.xlu0 %3123
        %3125 = vrot.lane.b32.xlu0 %v642, 64
        %v3126 = vpop.permute.xlu0 %3125
        %v3159 = vsel %vm1435, %v388, %v2305
        %v3160 = vsel %vm1435, %v290, %v2307
        %v3161 = vsel %vm1435, %v2157, %v2309
        %v3162 = vsel %vm1435, %v2064, %v2311
        %v3163 = vsel %vm1435, %v2158, %v2313
        %v3164 = vsel %vm1435, %v2067, %v2315
        %v3165 = vsel %vm1435, %v2159, %v2317
        %v3166 = vsel %vm1435, %v2070, %v2319
        %v3167 = vsel %vm1435, %v2160, %v2321
        %v3168 = vsel %vm1435, %v2073, %v2323
        %v3169 = vsel %vm1435, %v2161, %v2325
        %v3170 = vsel %vm1435, %v2076, %v2327
        %v3171 = vsel %vm1435, %v2162, %v2329
        %v3172 = vsel %vm1435, %v2079, %v2331
        %v3173 = vsel %vm1435, %v2163, %v2333
        %v3174 = vsel %vm1435, %v2082, %v2335
        %v3175 = vsel %vm1435, %v2164, %v2337
        %v3176 = vsel %vm1435, %v2085, %v2339
        %v3177 = vsel %vm1435, %v2165, %v2341
        %v3178 = vsel %vm1435, %v2088, %v2343
        %v3179 = vsel %vm1435, %v2166, %v2345
        %v3180 = vsel %vm1435, %v2091, %v2347
        %v3181 = vsel %vm1435, %v2167, %v2349
        %v3182 = vsel %vm1435, %v2094, %v2351
        %v3183 = vsel %vm1435, %v2168, %v2353
        %v3184 = vsel %vm1435, %v2097, %v2355
        %v3185 = vsel %vm1435, %v2169, %v2357
        %v3186 = vsel %vm1435, %v2100, %v2359
        %v3187 = vsel %vm1435, %v2170, %v2361
        %v3188 = vsel %vm1435, %v2103, %v2363
        %v3189 = vsel %vm1435, %v2171, %v2365
        %v3190 = vsel %vm1435, %v2106, %v2367
        %v3191 = vsel %vm1501, %v3159, %v2476
        %v3192 = vsel %vm1501, %v3160, %v2478
        %v3193 = vsel %vm1501, %v3161, %v2480
        %v3194 = vsel %vm1501, %v3162, %v2482
        %v3195 = vsel %vm1501, %v3163, %v2484
        %v3196 = vsel %vm1501, %v3164, %v2486
        %v3197 = vsel %vm1501, %v3165, %v2488
        %v3198 = vsel %vm1501, %v3166, %v2490
        %v3199 = vsel %vm1501, %v3167, %v2492
        %v3200 = vsel %vm1501, %v3168, %v2494
        %v3201 = vsel %vm1501, %v3169, %v2496
        %v3202 = vsel %vm1501, %v3170, %v2498
        %v3203 = vsel %vm1501, %v3171, %v2500
        %v3204 = vsel %vm1501, %v3172, %v2502
        %v3205 = vsel %vm1501, %v3173, %v2504
        %v3206 = vsel %vm1501, %v3174, %v2506
        %v3207 = vsel %vm1501, %v3175, %v2508
        %v3208 = vsel %vm1501, %v3176, %v2510
        %v3209 = vsel %vm1501, %v3177, %v2512
        %v3210 = vsel %vm1501, %v3178, %v2514
        %v3211 = vsel %vm1501, %v3179, %v2516
        %v3212 = vsel %vm1501, %v3180, %v2518
        %v3213 = vsel %vm1501, %v3181, %v2520
        %v3214 = vsel %vm1501, %v3182, %v2522
        %v3215 = vsel %vm1501, %v3183, %v2524
        %v3216 = vsel %vm1501, %v3184, %v2526
        %v3217 = vsel %vm1501, %v3185, %v2528
        %v3218 = vsel %vm1501, %v3186, %v2530
        %v3219 = vsel %vm1501, %v3187, %v2532
        %v3220 = vsel %vm1501, %v3188, %v2534
        %v3221 = vsel %vm1501, %v3189, %v2536
        %v3222 = vsel %vm1501, %v3190, %v2538
        %v3223 = vsel %vm1567, %v3191, %v2573
        %v3224 = vsel %vm1567, %v3192, %v2575
        %v3225 = vsel %vm1567, %v3193, %v2577
        %v3226 = vsel %vm1567, %v3194, %v2579
        %v3227 = vsel %vm1567, %v3195, %v2581
        %v3228 = vsel %vm1567, %v3196, %v2583
        %v3229 = vsel %vm1567, %v3197, %v2585
        %v3230 = vsel %vm1567, %v3198, %v2587
        %v3231 = vsel %vm1567, %v3199, %v2589
        %v3232 = vsel %vm1567, %v3200, %v2591
        %v3233 = vsel %vm1567, %v3201, %v2593
        %v3234 = vsel %vm1567, %v3202, %v2595
        %v3235 = vsel %vm1567, %v3203, %v2597
        %v3236 = vsel %vm1567, %v3204, %v2599
        %v3237 = vsel %vm1567, %v3205, %v2601
        %v3238 = vsel %vm1567, %v3206, %v2603
        %v3239 = vsel %vm1567, %v3207, %v2605
        %v3240 = vsel %vm1567, %v3208, %v2607
        %v3241 = vsel %vm1567, %v3209, %v2609
        %v3242 = vsel %vm1567, %v3210, %v2611
        %v3243 = vsel %vm1567, %v3211, %v2613
        %v3244 = vsel %vm1567, %v3212, %v2615
        %v3245 = vsel %vm1567, %v3213, %v2617
        %v3246 = vsel %vm1567, %v3214, %v2619
        %v3247 = vsel %vm1567, %v3215, %v2621
        %v3248 = vsel %vm1567, %v3216, %v2623
        %v3249 = vsel %vm1567, %v3217, %v2625
        %v3250 = vsel %vm1567, %v3218, %v2627
        %v3251 = vsel %vm1567, %v3219, %v2629
        %v3252 = vsel %vm1567, %v3220, %v2631
        %v3253 = vsel %vm1567, %v3221, %v2633
        %v3254 = vsel %vm1567, %v3222, %v2635
        %v3255 = vsel %vm1633, %v3223, %v2675
        %v3256 = vsel %vm1633, %v3224, %v2677
        %v3257 = vsel %vm1633, %v3225, %v2679
        %v3258 = vsel %vm1633, %v3226, %v2681
        %v3259 = vsel %vm1633, %v3227, %v2683
        %v3260 = vsel %vm1633, %v3228, %v2685
        %v3261 = vsel %vm1633, %v3229, %v2687
        %v3262 = vsel %vm1633, %v3230, %v2689
        %v3263 = vsel %vm1633, %v3231, %v2691
        %v3264 = vsel %vm1633, %v3232, %v2693
        %v3265 = vsel %vm1633, %v3233, %v2695
        %v3266 = vsel %vm1633, %v3234, %v2697
        %v3267 = vsel %vm1633, %v3235, %v2699
        %v3268 = vsel %vm1633, %v3236, %v2701
        %v3269 = vsel %vm1633, %v3237, %v2703
        %v3270 = vsel %vm1633, %v3238, %v2705
        %v3271 = vsel %vm1633, %v3239, %v2707
        %v3272 = vsel %vm1633, %v3240, %v2709
        %v3273 = vsel %vm1633, %v3241, %v2711
        %v3274 = vsel %vm1633, %v3242, %v2713
        %v3275 = vsel %vm1633, %v3243, %v2715
        %v3276 = vsel %vm1633, %v3244, %v2717
        %v3277 = vsel %vm1633, %v3245, %v2719
        %v3278 = vsel %vm1633, %v3246, %v2721
        %v3279 = vsel %vm1633, %v3247, %v2723
        %v3280 = vsel %vm1633, %v3248, %v2725
        %v3281 = vsel %vm1633, %v3249, %v2727
        %v3282 = vsel %vm1633, %v3250, %v2729
        %v3283 = vsel %vm1633, %v3251, %v2731
        %v3284 = vsel %vm1633, %v3252, %v2733
        %v3285 = vsel %vm1633, %v3253, %v2735
        %v3286 = vsel %vm1633, %v3254, %v2737
        %vm3287 = vcmask 326656
        %v3288 = vsel %vm3287, %v3255, %v2776
        %v3289 = vsel %vm3287, %v3256, %v2778
        %v3290 = vsel %vm3287, %v3257, %v2780
        %v3291 = vsel %vm3287, %v3258, %v2782
        %v3292 = vsel %vm3287, %v3259, %v2784
        %v3293 = vsel %vm3287, %v3260, %v2786
        %v3294 = vsel %vm3287, %v3261, %v2788
        %v3295 = vsel %vm3287, %v3262, %v2790
        %v3296 = vsel %vm3287, %v3263, %v2792
        %v3297 = vsel %vm3287, %v3264, %v2794
        %v3298 = vsel %vm3287, %v3265, %v2796
        %v3299 = vsel %vm3287, %v3266, %v2798
        %v3300 = vsel %vm3287, %v3267, %v2800
        %v3301 = vsel %vm3287, %v3268, %v2802
        %v3302 = vsel %vm3287, %v3269, %v2804
        %v3303 = vsel %vm3287, %v3270, %v2806
        %v3304 = vsel %vm3287, %v3271, %v2808
        %v3305 = vsel %vm3287, %v3272, %v2810
        %v3306 = vsel %vm3287, %v3273, %v2812
        %v3307 = vsel %vm3287, %v3274, %v2814
        %v3308 = vsel %vm3287, %v3275, %v2816
        %v3309 = vsel %vm3287, %v3276, %v2818
        %v3310 = vsel %vm3287, %v3277, %v2820
        %v3311 = vsel %vm3287, %v3278, %v2822
        %v3312 = vsel %vm3287, %v3279, %v2824
        %v3313 = vsel %vm3287, %v3280, %v2826
        %v3314 = vsel %vm3287, %v3281, %v2828
        %v3315 = vsel %vm3287, %v3282, %v2830
        %v3316 = vsel %vm3287, %v3283, %v2832
        %v3317 = vsel %vm3287, %v3284, %v2834
        %v3318 = vsel %vm3287, %v3285, %v2836
        %v3319 = vsel %vm3287, %v3286, %v2838
        %vm3320 = vcmask 392192
        %v3321 = vsel %vm3320, %v3288, %v2872
        %v3322 = vsel %vm3320, %v3289, %v2874
        %v3323 = vsel %vm3320, %v3290, %v2876
        %v3324 = vsel %vm3320, %v3291, %v2878
        %v3325 = vsel %vm3320, %v3292, %v2880
        %v3326 = vsel %vm3320, %v3293, %v2882
        %v3327 = vsel %vm3320, %v3294, %v2884
        %v3328 = vsel %vm3320, %v3295, %v2886
        %v3329 = vsel %vm3320, %v3296, %v2888
        %v3330 = vsel %vm3320, %v3297, %v2890
        %v3331 = vsel %vm3320, %v3298, %v2892
        %v3332 = vsel %vm3320, %v3299, %v2894
        %v3333 = vsel %vm3320, %v3300, %v2896
        %v3334 = vsel %vm3320, %v3301, %v2898
        %v3335 = vsel %vm3320, %v3302, %v2900
        %v3336 = vsel %vm3320, %v3303, %v2902
        %v3337 = vsel %vm3320, %v3304, %v2904
        %v3338 = vsel %vm3320, %v3305, %v2906
        %v3339 = vsel %vm3320, %v3306, %v2908
        %v3340 = vsel %vm3320, %v3307, %v2910
        %v3341 = vsel %vm3320, %v3308, %v2912
        %v3342 = vsel %vm3320, %v3309, %v2914
        %v3343 = vsel %vm3320, %v3310, %v2916
        %v3344 = vsel %vm3320, %v3311, %v2918
        %v3345 = vsel %vm3320, %v3312, %v2920
        %v3346 = vsel %vm3320, %v3313, %v2922
        %v3347 = vsel %vm3320, %v3314, %v2924
        %v3348 = vsel %vm3320, %v3315, %v2926
        %v3349 = vsel %vm3320, %v3316, %v2928
        %v3350 = vsel %vm3320, %v3317, %v2930
        %v3351 = vsel %vm3320, %v3318, %v2932
        %v3352 = vsel %vm3320, %v3319, %v2934
        %vm3353 = vcmask 457728
        %v3354 = vsel %vm3353, %v3321, %v2968
        %v3355 = vsel %vm3353, %v3322, %v2970
        %v3356 = vsel %vm3353, %v3323, %v2972
        %v3357 = vsel %vm3353, %v3324, %v2974
        %v3358 = vsel %vm3353, %v3325, %v2976
        %v3359 = vsel %vm3353, %v3326, %v2978
        %v3360 = vsel %vm3353, %v3327, %v2980
        %v3361 = vsel %vm3353, %v3328, %v2982
        %v3362 = vsel %vm3353, %v3329, %v2984
        %v3363 = vsel %vm3353, %v3330, %v2986
        %v3364 = vsel %vm3353, %v3331, %v2988
        %v3365 = vsel %vm3353, %v3332, %v2990
        %v3366 = vsel %vm3353, %v3333, %v2992
        %v3367 = vsel %vm3353, %v3334, %v2994
        %v3368 = vsel %vm3353, %v3335, %v2996
        %v3369 = vsel %vm3353, %v3336, %v2998
        %v3370 = vsel %vm3353, %v3337, %v3000
        %v3371 = vsel %vm3353, %v3338, %v3002
        %v3372 = vsel %vm3353, %v3339, %v3004
        %v3373 = vsel %vm3353, %v3340, %v3006
        %v3374 = vsel %vm3353, %v3341, %v3008
        %v3375 = vsel %vm3353, %v3342, %v3010
        %v3376 = vsel %vm3353, %v3343, %v3012
        %v3377 = vsel %vm3353, %v3344, %v3014
        %v3378 = vsel %vm3353, %v3345, %v3016
        %v3379 = vsel %vm3353, %v3346, %v3018
        %v3380 = vsel %vm3353, %v3347, %v3020
        %v3381 = vsel %vm3353, %v3348, %v3022
        %v3382 = vsel %vm3353, %v3349, %v3024
        %v3383 = vsel %vm3353, %v3350, %v3026
        %v3384 = vsel %vm3353, %v3351, %v3028
        %v3385 = vsel %vm3353, %v3352, %v3030
        %vm3386 = vcmask 523264
        %v3387 = vsel %vm3386, %v3354, %v3064
        %v3388 = vsel %vm3386, %v3355, %v3066
        %v3389 = vsel %vm3386, %v3356, %v3068
        %v3390 = vsel %vm3386, %v3357, %v3070
        %v3391 = vsel %vm3386, %v3358, %v3072
        %v3392 = vsel %vm3386, %v3359, %v3074
        %v3393 = vsel %vm3386, %v3360, %v3076
        %v3394 = vsel %vm3386, %v3361, %v3078
        %v3395 = vsel %vm3386, %v3362, %v3080
        %v3396 = vsel %vm3386, %v3363, %v3082
        %v3397 = vsel %vm3386, %v3364, %v3084
        %v3398 = vsel %vm3386, %v3365, %v3086
        %v3399 = vsel %vm3386, %v3366, %v3088
        %v3400 = vsel %vm3386, %v3367, %v3090
        %v3401 = vsel %vm3386, %v3368, %v3092
        %v3402 = vsel %vm3386, %v3369, %v3094
        %v3403 = vsel %vm3386, %v3370, %v3096
        %v3404 = vsel %vm3386, %v3371, %v3098
        %v3405 = vsel %vm3386, %v3372, %v3100
        %v3406 = vsel %vm3386, %v3373, %v3102
        %v3407 = vsel %vm3386, %v3374, %v3104
        %v3408 = vsel %vm3386, %v3375, %v3106
        %v3409 = vsel %vm3386, %v3376, %v3108
        %v3410 = vsel %vm3386, %v3377, %v3110
        %v3411 = vsel %vm3386, %v3378, %v3112
        %v3412 = vsel %vm3386, %v3379, %v3114
        %v3413 = vsel %vm3386, %v3380, %v3116
        %v3414 = vsel %vm3386, %v3381, %v3118
        %v3415 = vsel %vm3386, %v3382, %v3120
        %v3416 = vsel %vm3386, %v3383, %v3122
        %v3417 = vsel %vm3386, %v3384, %v3124
        %v3418 = vsel %vm3386, %v3385, %v3126
        %v3420 = vlaneseq
        %v3421 = vshrl.u32 %v3420, 7
        %v3422 = vsub.s32 0, %v3421
        %v3423 = vrot.slane %v2198, %v3422
        %vm3425 = vcmask 588800
        %v3427 = vsel %vm3425, %v3387, 0
        %v3430 = vsel %vm3425, %v3388, 0
        %v3433 = vsel %vm3425, %v3389, 0
        %v3436 = vsel %vm3425, %v3390, 0
        %v3439 = vsel %vm3425, %v3391, 0
        %v3442 = vsel %vm3425, %v3392, 0
        %v3445 = vsel %vm3425, %v3393, 0
        %v3448 = vsel %vm3425, %v3394, 0
        %v3451 = vsel %vm3425, %v3395, 0
        %v3454 = vsel %vm3425, %v3396, 0
        %v3457 = vsel %vm3425, %v3397, 0
        %v3460 = vsel %vm3425, %v3398, 0
        %v3463 = vsel %vm3425, %v3399, 0
        %v3466 = vsel %vm3425, %v3400, 0
        %v3469 = vsel %vm3425, %v3401, 0
        %v3472 = vsel %vm3425, %v3402, 0
        %v3475 = vsel %vm3425, %v3403, 0
        %v3478 = vsel %vm3425, %v3404, 0
        %v3481 = vsel %vm3425, %v3405, 0
        %v3484 = vsel %vm3425, %v3406, 0
        %v3487 = vsel %vm3425, %v3407, 0
        %v3490 = vsel %vm3425, %v3408, 0
        %v3493 = vsel %vm3425, %v3409, 0
        %v3496 = vsel %vm3425, %v3410, 0
        %v3499 = vsel %vm3425, %v3411, 0
        %v3502 = vsel %vm3425, %v3412, 0
        %v3505 = vsel %vm3425, %v3413, 0
        %v3508 = vsel %vm3425, %v3414, 0
        %v3511 = vsel %vm3425, %v3415, 0
        %v3514 = vsel %vm3425, %v3416, 0
        %v3517 = vsel %vm3425, %v3417, 0
        %v3520 = vsel %vm3425, %v3418, 0
        %3522 = vmatprep.subr.mxu0 0.0
        %3523 = vmatpush1.msra.mxu0 %v2189
        %3524 = vmatprep.subr.mxu0 0.0
        %3525 = vmatpush1.msra.mxu0 %v2190
        %3526 = vmatprep.subr.mxu0 0.0
        %3527 = vmatpush1.msra.mxu0 %v2191
        %3528 = vmatprep.subr.mxu0 0.0
        %3529 = vmatpush1.msra.mxu0 %v2192
        %3530 = vmatprep.subr.mxu0 0.0
        %3531 = vmatpush1.msra.mxu0 %v2193
        %3532 = vmatprep.subr.mxu0 0.0
        %3533 = vmatpush1.msra.mxu0 %v2194
        %3534 = vmatprep.subr.mxu0 0.0
        %3535 = vmatpush1.msra.mxu0 %v2195
        %3536 = vmatprep.subr.mxu0 0.0
        %3537 = vmatpush1.msra.mxu0 %v2196
        %3538 = vmatprep.subr.mxu0 0.0
        %3539 = vmatpush1.msra.mxu0 %v2197
        %3540 = vmatprep.subr.mxu0 0.0
        %3541 = vmatpush1.msra.mxu0 0.0
        %3542 = vmatprep.subr.mxu0 0.0
        %3543 = vmatpush1.msra.mxu0 0.0
        %3544 = vmatprep.subr.mxu0 0.0
        %3545 = vmatpush1.msra.mxu0 0.0
        %3546 = vmatprep.subr.mxu0 0.0
        %3547 = vmatpush1.msra.mxu0 0.0
        %3548 = vmatprep.subr.mxu0 0.0
        %3549 = vmatpush1.msra.mxu0 0.0
        %3550 = vmatprep.subr.mxu0 0.0
        %3551 = vmatpush1.msra.mxu0 0.0
        %3552 = vmatprep.subr.mxu0 0.0
        %3553 = vmatpush1.msra.mxu0 0.0
        %3554 = vmatprep.subr.mxu0 0.0
        %3555 = vmatpush1.msra.mxu0 0.0
        %3556 = vmatprep.subr.mxu0 0.0
        %3557 = vmatpush1.msra.mxu0 0.0
        %3558 = vmatprep.subr.mxu0 0.0
        %3559 = vmatpush1.msra.mxu0 0.0
        %3560 = vmatprep.subr.mxu0 0.0
        %3561 = vmatpush1.msra.mxu0 0.0
        %3562 = vmatprep.subr.mxu0 0.0
        %3563 = vmatpush1.msra.mxu0 0.0
        %3564 = vmatprep.subr.mxu0 0.0
        %3565 = vmatpush1.msra.mxu0 0.0
        %3566 = vmatprep.subr.mxu0 0.0
        %3567 = vmatpush1.msra.mxu0 0.0
        %3568 = vmatprep.subr.mxu0 0.0
        %3569 = vmatpush1.msra.mxu0 0.0
        %3570 = vmatprep.subr.mxu0 0.0
        %3571 = vmatpush1.msra.mxu0 0.0
        %3572 = vmatprep.subr.mxu0 0.0
        %3573 = vmatpush1.msra.mxu0 0.0
        %3574 = vmatprep.subr.mxu0 0.0
        %3575 = vmatpush1.msra.mxu0 0.0
        %3576 = vmatprep.subr.mxu0 0.0
        %3577 = vmatpush1.msra.mxu0 0.0
        %3578 = vmatprep.subr.mxu0 0.0
        %3579 = vmatpush1.msra.mxu0 0.0
        %3580 = vmatprep.subr.mxu0 0.0
        %3581 = vmatpush1.msra.mxu0 0.0
        %3582 = vmatprep.subr.mxu0 0.0
        %3583 = vmatpush1.msra.mxu0 0.0
        %3584 = vmatprep.subr.mxu0 0.0
        %3585 = vmatpush1.msra.mxu0 0.0
        %3586 = vmatprep.mubr.f32.mxu0 0.0
        %3587 = vmatmul.mubr.f32.gmra.mrb[0].mxu0 %v3427
        %v3588 = vpop.f32.mrb[0].mxu0
        %v3589 = vadd.f32 %v3423, %v3588
        %v3590 = vpop.f32.mrb[0].mxu0
        %3591 = vmatprep.mubr.f32.mxu0 0.0
        %3592 = vmatmul.mubr.f32.gmra.mrb[0].mxu0 %v3430
        %v3593 = vpop.f32.mrb[0].mxu0
        %v3594 = vadd.f32 %v3423, %v3593
        %v3595 = vpop.f32.mrb[0].mxu0
        %3596 = vmatprep.mubr.f32.mxu0 0.0
        %3597 = vmatmul.mubr.f32.gmra.mrb[0].mxu0 %v3433
        %v3598 = vpop.f32.mrb[0].mxu0
        %v3599 = vadd.f32 %v3423, %v3598
        %v3600 = vpop.f32.mrb[0].mxu0
        %3601 = vmatprep.mubr.f32.mxu0 0.0
        %3602 = vmatmul.mubr.f32.gmra.mrb[0].mxu0 %v3436
        %v3603 = vpop.f32.mrb[0].mxu0
        %v3604 = vadd.f32 %v3423, %v3603
        %v3605 = vpop.f32.mrb[0].mxu0
        %3606 = vmatprep.mubr.f32.mxu0 0.0
        %3607 = vmatmul.mubr.f32.gmra.mrb[0].mxu0 %v3439
        %v3608 = vpop.f32.mrb[0].mxu0
        %v3609 = vadd.f32 %v3423, %v3608
        %v3610 = vpop.f32.mrb[0].mxu0
        %3611 = vmatprep.mubr.f32.mxu0 0.0
        %3612 = vmatmul.mubr.f32.gmra.mrb[0].mxu0 %v3442
        %v3613 = vpop.f32.mrb[0].mxu0
        %v3614 = vadd.f32 %v3423, %v3613
        %v3615 = vpop.f32.mrb[0].mxu0
        %3616 = vmatprep.mubr.f32.mxu0 0.0
        %3617 = vmatmul.mubr.f32.gmra.mrb[0].mxu0 %v3445
        %v3618 = vpop.f32.mrb[0].mxu0
        %v3619 = vadd.f32 %v3423, %v3618
        %v3620 = vpop.f32.mrb[0].mxu0
        %3621 = vmatprep.mubr.f32.mxu0 0.0
        %3622 = vmatmul.mubr.f32.gmra.mrb[0].mxu0 %v3448
        %v3623 = vpop.f32.mrb[0].mxu0
        %v3624 = vadd.f32 %v3423, %v3623
        %v3625 = vpop.f32.mrb[0].mxu0
        %3626 = vmatprep.mubr.f32.mxu0 0.0
        %3627 = vmatmul.mubr.f32.gmra.mrb[0].mxu0 %v3451
        %v3628 = vpop.f32.mrb[0].mxu0
        %v3629 = vadd.f32 %v3423, %v3628
        %v3630 = vpop.f32.mrb[0].mxu0
        %3631 = vmatprep.mubr.f32.mxu0 0.0
        %3632 = vmatmul.mubr.f32.gmra.mrb[0].mxu0 %v3454
        %v3633 = vpop.f32.mrb[0].mxu0
        %v3634 = vadd.f32 %v3423, %v3633
        %v3635 = vpop.f32.mrb[0].mxu0
        %3636 = vmatprep.mubr.f32.mxu0 0.0
        %3637 = vmatmul.mubr.f32.gmra.mrb[0].mxu0 %v3457
        %v3638 = vpop.f32.mrb[0].mxu0
        %v3639 = vadd.f32 %v3423, %v3638
        %v3640 = vpop.f32.mrb[0].mxu0
        %3641 = vmatprep.mubr.f32.mxu0 0.0
        %3642 = vmatmul.mubr.f32.gmra.mrb[0].mxu0 %v3460
        %v3643 = vpop.f32.mrb[0].mxu0
        %v3644 = vadd.f32 %v3423, %v3643
        %v3645 = vpop.f32.mrb[0].mxu0
        %3646 = vmatprep.mubr.f32.mxu0 0.0
        %3647 = vmatmul.mubr.f32.gmra.mrb[0].mxu0 %v3463
        %v3648 = vpop.f32.mrb[0].mxu0
        %v3649 = vadd.f32 %v3423, %v3648
        %v3650 = vpop.f32.mrb[0].mxu0
        %3651 = vmatprep.mubr.f32.mxu0 0.0
        %3652 = vmatmul.mubr.f32.gmra.mrb[0].mxu0 %v3466
        %v3653 = vpop.f32.mrb[0].mxu0
        %v3654 = vadd.f32 %v3423, %v3653
        %v3655 = vpop.f32.mrb[0].mxu0
        %3656 = vmatprep.mubr.f32.mxu0 0.0
        %3657 = vmatmul.mubr.f32.gmra.mrb[0].mxu0 %v3469
        %v3658 = vpop.f32.mrb[0].mxu0
        %v3659 = vadd.f32 %v3423, %v3658
        %v3660 = vpop.f32.mrb[0].mxu0
        %3661 = vmatprep.mubr.f32.mxu0 0.0
        %3662 = vmatmul.mubr.f32.gmra.mrb[0].mxu0 %v3472
        %v3663 = vpop.f32.mrb[0].mxu0
        %v3664 = vadd.f32 %v3423, %v3663
        %v3665 = vpop.f32.mrb[0].mxu0
        %3666 = vmatprep.mubr.f32.mxu0 0.0
        %3667 = vmatmul.mubr.f32.gmra.mrb[0].mxu0 %v3475
        %v3668 = vpop.f32.mrb[0].mxu0
        %v3669 = vadd.f32 %v3423, %v3668
        %v3670 = vpop.f32.mrb[0].mxu0
        %3671 = vmatprep.mubr.f32.mxu0 0.0
        %3672 = vmatmul.mubr.f32.gmra.mrb[0].mxu0 %v3478
        %v3673 = vpop.f32.mrb[0].mxu0
        %v3674 = vadd.f32 %v3423, %v3673
        %v3675 = vpop.f32.mrb[0].mxu0
        %3676 = vmatprep.mubr.f32.mxu0 0.0
        %3677 = vmatmul.mubr.f32.gmra.mrb[0].mxu0 %v3481
        %v3678 = vpop.f32.mrb[0].mxu0
        %v3679 = vadd.f32 %v3423, %v3678
        %v3680 = vpop.f32.mrb[0].mxu0
        %3681 = vmatprep.mubr.f32.mxu0 0.0
        %3682 = vmatmul.mubr.f32.gmra.mrb[0].mxu0 %v3484
        %v3683 = vpop.f32.mrb[0].mxu0
        %v3684 = vadd.f32 %v3423, %v3683
        %v3685 = vpop.f32.mrb[0].mxu0
        %3686 = vmatprep.mubr.f32.mxu0 0.0
        %3687 = vmatmul.mubr.f32.gmra.mrb[0].mxu0 %v3487
        %v3688 = vpop.f32.mrb[0].mxu0
        %v3689 = vadd.f32 %v3423, %v3688
        %v3690 = vpop.f32.mrb[0].mxu0
        %3691 = vmatprep.mubr.f32.mxu0 0.0
        %3692 = vmatmul.mubr.f32.gmra.mrb[0].mxu0 %v3490
        %v3693 = vpop.f32.mrb[0].mxu0
        %v3694 = vadd.f32 %v3423, %v3693
        %v3695 = vpop.f32.mrb[0].mxu0
        %3696 = vmatprep.mubr.f32.mxu0 0.0
        %3697 = vmatmul.mubr.f32.gmra.mrb[0].mxu0 %v3493
        %v3698 = vpop.f32.mrb[0].mxu0
        %v3699 = vadd.f32 %v3423, %v3698
        %v3700 = vpop.f32.mrb[0].mxu0
        %3701 = vmatprep.mubr.f32.mxu0 0.0
        %3702 = vmatmul.mubr.f32.gmra.mrb[0].mxu0 %v3496
        %v3703 = vpop.f32.mrb[0].mxu0
        %v3704 = vadd.f32 %v3423, %v3703
        %v3705 = vpop.f32.mrb[0].mxu0
        %3706 = vmatprep.mubr.f32.mxu0 0.0
        %3707 = vmatmul.mubr.f32.gmra.mrb[0].mxu0 %v3499
        %v3708 = vpop.f32.mrb[0].mxu0
        %v3709 = vadd.f32 %v3423, %v3708
        %v3710 = vpop.f32.mrb[0].mxu0
        %3711 = vmatprep.mubr.f32.mxu0 0.0
        %3712 = vmatmul.mubr.f32.gmra.mrb[0].mxu0 %v3502
        %v3713 = vpop.f32.mrb[0].mxu0
        %v3714 = vadd.f32 %v3423, %v3713
        %v3715 = vpop.f32.mrb[0].mxu0
        %3716 = vmatprep.mubr.f32.mxu0 0.0
        %3717 = vmatmul.mubr.f32.gmra.mrb[0].mxu0 %v3505
        %v3718 = vpop.f32.mrb[0].mxu0
        %v3719 = vadd.f32 %v3423, %v3718
        %v3720 = vpop.f32.mrb[0].mxu0
        %3721 = vmatprep.mubr.f32.mxu0 0.0
        %3722 = vmatmul.mubr.f32.gmra.mrb[0].mxu0 %v3508
        %v3723 = vpop.f32.mrb[0].mxu0
        %v3724 = vadd.f32 %v3423, %v3723
        %v3725 = vpop.f32.mrb[0].mxu0
        %3726 = vmatprep.mubr.f32.mxu0 0.0
        %3727 = vmatmul.mubr.f32.gmra.mrb[0].mxu0 %v3511
        %v3728 = vpop.f32.mrb[0].mxu0
        %v3729 = vadd.f32 %v3423, %v3728
        %v3730 = vpop.f32.mrb[0].mxu0
        %3731 = vmatprep.mubr.f32.mxu0 0.0
        %3732 = vmatmul.mubr.f32.gmra.mrb[0].mxu0 %v3514
        %v3733 = vpop.f32.mrb[0].mxu0
        %v3734 = vadd.f32 %v3423, %v3733
        %v3735 = vpop.f32.mrb[0].mxu0
        %3736 = vmatprep.mubr.f32.mxu0 0.0
        %3737 = vmatmul.mubr.f32.gmra.mrb[0].mxu0 %v3517
        %v3738 = vpop.f32.mrb[0].mxu0
        %v3739 = vadd.f32 %v3423, %v3738
        %v3740 = vpop.f32.mrb[0].mxu0
        %3741 = vmatprep.mubr.f32.mxu0 0.0
        %3742 = vmatmul.mubr.f32.gmra.mrb[0].mxu0 %v3520
        %v3743 = vpop.f32.mrb[0].mxu0
        %v3744 = vadd.f32 %v3423, %v3743
        %v3745 = vpop.f32.mrb[0].mxu0
        %3746 = vdwg.mxu0
        %v3747 = vlaneseq
        %v3748 = vand.u32 %v3747, 127
        %vm3749 = vcmp.lt.s32.totalorder %v3748, 3
        %v3750 = vxor.u32 %v3589, 2147483648
        %v3751 = vxor.u32 %v3594, 2147483648
        %v3752 = vxor.u32 %v3599, 2147483648
        %v3753 = vxor.u32 %v3604, 2147483648
        %v3754 = vxor.u32 %v3609, 2147483648
        %v3755 = vxor.u32 %v3614, 2147483648
        %v3756 = vxor.u32 %v3619, 2147483648
        %v3757 = vxor.u32 %v3624, 2147483648
        %v3758 = vxor.u32 %v3629, 2147483648
        %v3759 = vxor.u32 %v3634, 2147483648
        %v3760 = vxor.u32 %v3639, 2147483648
        %v3761 = vxor.u32 %v3644, 2147483648
        %v3762 = vxor.u32 %v3649, 2147483648
        %v3763 = vxor.u32 %v3654, 2147483648
        %v3764 = vxor.u32 %v3659, 2147483648
        %v3765 = vxor.u32 %v3664, 2147483648
        %v3766 = vxor.u32 %v3669, 2147483648
        %v3767 = vxor.u32 %v3674, 2147483648
        %v3768 = vxor.u32 %v3679, 2147483648
        %v3769 = vxor.u32 %v3684, 2147483648
        %v3770 = vxor.u32 %v3689, 2147483648
        %v3771 = vxor.u32 %v3694, 2147483648
        %v3772 = vxor.u32 %v3699, 2147483648
        %v3773 = vxor.u32 %v3704, 2147483648
        %v3774 = vxor.u32 %v3709, 2147483648
        %v3775 = vxor.u32 %v3714, 2147483648
        %v3776 = vxor.u32 %v3719, 2147483648
        %v3777 = vxor.u32 %v3724, 2147483648
        %v3778 = vxor.u32 %v3729, 2147483648
        %v3779 = vxor.u32 %v3734, 2147483648
        %v3780 = vxor.u32 %v3739, 2147483648
        %v3781 = vxor.u32 %v3744, 2147483648
        %v3782 = vmul.f32 %v3750, 1.442695
        %v3783 = vpow.pop %v3782
        %v3784 = vmul.f32 %v3751, 1.442695
        %v3785 = vpow.pop %v3784
        %v3786 = vmul.f32 %v3752, 1.442695
        %v3787 = vpow.pop %v3786
        %v3788 = vmul.f32 %v3753, 1.442695
        %v3789 = vpow.pop %v3788
        %v3790 = vmul.f32 %v3754, 1.442695
        %v3791 = vpow.pop %v3790
        %v3792 = vmul.f32 %v3755, 1.442695
        %v3793 = vpow.pop %v3792
        %v3794 = vmul.f32 %v3756, 1.442695
        %v3795 = vpow.pop %v3794
        %v3796 = vmul.f32 %v3757, 1.442695
        %v3797 = vpow.pop %v3796
        %v3798 = vmul.f32 %v3758, 1.442695
        %v3799 = vpow.pop %v3798
        %v3800 = vmul.f32 %v3759, 1.442695
        %v3801 = vpow.pop %v3800
        %v3802 = vmul.f32 %v3760, 1.442695
        %v3803 = vpow.pop %v3802
        %v3804 = vmul.f32 %v3761, 1.442695
        %v3805 = vpow.pop %v3804
        %v3806 = vmul.f32 %v3762, 1.442695
        %v3807 = vpow.pop %v3806
        %v3808 = vmul.f32 %v3763, 1.442695
        %v3809 = vpow.pop %v3808
        %v3810 = vmul.f32 %v3764, 1.442695
        %v3811 = vpow.pop %v3810
        %v3812 = vmul.f32 %v3765, 1.442695
        %v3813 = vpow.pop %v3812
        %v3814 = vmul.f32 %v3766, 1.442695
        %v3815 = vpow.pop %v3814
        %v3816 = vmul.f32 %v3767, 1.442695
        %v3817 = vpow.pop %v3816
        %v3818 = vmul.f32 %v3768, 1.442695
        %v3819 = vpow.pop %v3818
        %v3820 = vmul.f32 %v3769, 1.442695
        %v3821 = vpow.pop %v3820
        %v3822 = vmul.f32 %v3770, 1.442695
        %v3823 = vpow.pop %v3822
        %v3824 = vmul.f32 %v3771, 1.442695
        %v3825 = vpow.pop %v3824
        %v3826 = vmul.f32 %v3772, 1.442695
        %v3827 = vpow.pop %v3826
        %v3828 = vmul.f32 %v3773, 1.442695
        %v3829 = vpow.pop %v3828
        %v3830 = vmul.f32 %v3774, 1.442695
        %v3831 = vpow.pop %v3830
        %v3832 = vmul.f32 %v3775, 1.442695
        %v3833 = vpow.pop %v3832
        %v3834 = vmul.f32 %v3776, 1.442695
        %v3835 = vpow.pop %v3834
        %v3836 = vmul.f32 %v3777, 1.442695
        %v3837 = vpow.pop %v3836
        %v3838 = vmul.f32 %v3778, 1.442695
        %v3839 = vpow.pop %v3838
        %v3840 = vmul.f32 %v3779, 1.442695
        %v3841 = vpow.pop %v3840
        %v3842 = vmul.f32 %v3780, 1.442695
        %v3843 = vpow.pop %v3842
        %v3844 = vmul.f32 %v3781, 1.442695
        %v3845 = vpow.pop %v3844
        %v3846 = vadd.f32 %v3783, 1.0
        %v3847 = vadd.f32 %v3785, 1.0
        %v3848 = vadd.f32 %v3787, 1.0
        %v3849 = vadd.f32 %v3789, 1.0
        %v3850 = vadd.f32 %v3791, 1.0
        %v3851 = vadd.f32 %v3793, 1.0
        %v3852 = vadd.f32 %v3795, 1.0
        %v3853 = vadd.f32 %v3797, 1.0
        %v3854 = vadd.f32 %v3799, 1.0
        %v3855 = vadd.f32 %v3801, 1.0
        %v3856 = vadd.f32 %v3803, 1.0
        %v3857 = vadd.f32 %v3805, 1.0
        %v3858 = vadd.f32 %v3807, 1.0
        %v3859 = vadd.f32 %v3809, 1.0
        %v3860 = vadd.f32 %v3811, 1.0
        %v3861 = vadd.f32 %v3813, 1.0
        %v3862 = vadd.f32 %v3815, 1.0
        %v3863 = vadd.f32 %v3817, 1.0
        %v3864 = vadd.f32 %v3819, 1.0
        %v3865 = vadd.f32 %v3821, 1.0
        %v3866 = vadd.f32 %v3823, 1.0
        %v3867 = vadd.f32 %v3825, 1.0
        %v3868 = vadd.f32 %v3827, 1.0
        %v3869 = vadd.f32 %v3829, 1.0
        %v3870 = vadd.f32 %v3831, 1.0
        %v3871 = vadd.f32 %v3833, 1.0
        %v3872 = vadd.f32 %v3835, 1.0
        %v3873 = vadd.f32 %v3837, 1.0
        %v3874 = vadd.f32 %v3839, 1.0
        %v3875 = vadd.f32 %v3841, 1.0
        %v3876 = vadd.f32 %v3843, 1.0
        %v3877 = vadd.f32 %v3845, 1.0
        %v3878 = vrcp.pop %v3846
        %v3879 = vmul.f32 1.0, %v3878
        %v3880 = vrcp.pop %v3847
        %v3881 = vmul.f32 1.0, %v3880
        %v3882 = vrcp.pop %v3848
        %v3883 = vmul.f32 1.0, %v3882
        %v3884 = vrcp.pop %v3849
        %v3885 = vmul.f32 1.0, %v3884
        %v3886 = vrcp.pop %v3850
        %v3887 = vmul.f32 1.0, %v3886
        %v3888 = vrcp.pop %v3851
        %v3889 = vmul.f32 1.0, %v3888
        %v3890 = vrcp.pop %v3852
        %v3891 = vmul.f32 1.0, %v3890
        %v3892 = vrcp.pop %v3853
        %v3893 = vmul.f32 1.0, %v3892
        %v3894 = vrcp.pop %v3854
        %v3895 = vmul.f32 1.0, %v3894
        %v3896 = vrcp.pop %v3855
        %v3897 = vmul.f32 1.0, %v3896
        %v3898 = vrcp.pop %v3856
        %v3899 = vmul.f32 1.0, %v3898
        %v3900 = vrcp.pop %v3857
        %v3901 = vmul.f32 1.0, %v3900
        %v3902 = vrcp.pop %v3858
        %v3903 = vmul.f32 1.0, %v3902
        %v3904 = vrcp.pop %v3859
        %v3905 = vmul.f32 1.0, %v3904
        %v3906 = vrcp.pop %v3860
        %v3907 = vmul.f32 1.0, %v3906
        %v3908 = vrcp.pop %v3861
        %v3909 = vmul.f32 1.0, %v3908
        %v3910 = vrcp.pop %v3862
        %v3911 = vmul.f32 1.0, %v3910
        %v3912 = vrcp.pop %v3863
        %v3913 = vmul.f32 1.0, %v3912
        %v3914 = vrcp.pop %v3864
        %v3915 = vmul.f32 1.0, %v3914
        %v3916 = vrcp.pop %v3865
        %v3917 = vmul.f32 1.0, %v3916
        %v3918 = vrcp.pop %v3866
        %v3919 = vmul.f32 1.0, %v3918
        %v3920 = vrcp.pop %v3867
        %v3921 = vmul.f32 1.0, %v3920
        %v3922 = vrcp.pop %v3868
        %v3923 = vmul.f32 1.0, %v3922
        %v3924 = vrcp.pop %v3869
        %v3925 = vmul.f32 1.0, %v3924
        %v3926 = vrcp.pop %v3870
        %v3927 = vmul.f32 1.0, %v3926
        %v3928 = vrcp.pop %v3871
        %v3929 = vmul.f32 1.0, %v3928
        %v3930 = vrcp.pop %v3872
        %v3931 = vmul.f32 1.0, %v3930
        %v3932 = vrcp.pop %v3873
        %v3933 = vmul.f32 1.0, %v3932
        %v3934 = vrcp.pop %v3874
        %v3935 = vmul.f32 1.0, %v3934
        %v3936 = vrcp.pop %v3875
        %v3937 = vmul.f32 1.0, %v3936
        %v3938 = vrcp.pop %v3876
        %v3939 = vmul.f32 1.0, %v3938
        %v3940 = vrcp.pop %v3877
        %v3941 = vmul.f32 1.0, %v3940
        %v3942 = vtanh.pop %v3589
        %v3943 = vtanh.pop %v3594
        %v3944 = vtanh.pop %v3599
        %v3945 = vtanh.pop %v3604
        %v3946 = vtanh.pop %v3609
        %v3947 = vtanh.pop %v3614
        %v3948 = vtanh.pop %v3619
        %v3949 = vtanh.pop %v3624
        %v3950 = vtanh.pop %v3629
        %v3951 = vtanh.pop %v3634
        %v3952 = vtanh.pop %v3639
        %v3953 = vtanh.pop %v3644
        %v3954 = vtanh.pop %v3649
        %v3955 = vtanh.pop %v3654
        %v3956 = vtanh.pop %v3659
        %v3957 = vtanh.pop %v3664
        %v3958 = vtanh.pop %v3669
        %v3959 = vtanh.pop %v3674
        %v3960 = vtanh.pop %v3679
        %v3961 = vtanh.pop %v3684
        %v3962 = vtanh.pop %v3689
        %v3963 = vtanh.pop %v3694
        %v3964 = vtanh.pop %v3699
        %v3965 = vtanh.pop %v3704
        %v3966 = vtanh.pop %v3709
        %v3967 = vtanh.pop %v3714
        %v3968 = vtanh.pop %v3719
        %v3969 = vtanh.pop %v3724
        %v3970 = vtanh.pop %v3729
        %v3971 = vtanh.pop %v3734
        %v3972 = vtanh.pop %v3739
        %v3973 = vtanh.pop %v3744
        %v3974 = vsel %vm3749, %v3879, %v3942
        %v3975 = vsel %vm3749, %v3881, %v3943
        %v3976 = vsel %vm3749, %v3883, %v3944
        %v3977 = vsel %vm3749, %v3885, %v3945
        %v3978 = vsel %vm3749, %v3887, %v3946
        %v3979 = vsel %vm3749, %v3889, %v3947
        %v3980 = vsel %vm3749, %v3891, %v3948
        %v3981 = vsel %vm3749, %v3893, %v3949
        %v3982 = vsel %vm3749, %v3895, %v3950
        %v3983 = vsel %vm3749, %v3897, %v3951
        %v3984 = vsel %vm3749, %v3899, %v3952
        %v3985 = vsel %vm3749, %v3901, %v3953
        %v3986 = vsel %vm3749, %v3903, %v3954
        %v3987 = vsel %vm3749, %v3905, %v3955
        %v3988 = vsel %vm3749, %v3907, %v3956
        %v3989 = vsel %vm3749, %v3909, %v3957
        %v3990 = vsel %vm3749, %v3911, %v3958
        %v3991 = vsel %vm3749, %v3913, %v3959
        %v3992 = vsel %vm3749, %v3915, %v3960
        %v3993 = vsel %vm3749, %v3917, %v3961
        %v3994 = vsel %vm3749, %v3919, %v3962
        %v3995 = vsel %vm3749, %v3921, %v3963
        %v3996 = vsel %vm3749, %v3923, %v3964
        %v3997 = vsel %vm3749, %v3925, %v3965
        %v3998 = vsel %vm3749, %v3927, %v3966
        %v3999 = vsel %vm3749, %v3929, %v3967
        %v4000 = vsel %vm3749, %v3931, %v3968
        %v4001 = vsel %vm3749, %v3933, %v3969
        %v4002 = vsel %vm3749, %v3935, %v3970
        %v4003 = vsel %vm3749, %v3937, %v3971
        %v4004 = vsel %vm3749, %v3939, %v3972
        %v4005 = vsel %vm3749, %v3941, %v3973
        %4006 = vxpose.xlu0.b32.start [1/16] %v3974, 128
        %4007 = vxpose.xlu0.b32.cont [2/16] %v3975, 128
        %4008 = vxpose.xlu0.b32.cont [3/16] %v3976, 128
        %4009 = vxpose.xlu0.b32.cont [4/16] %v3977, 128
        %4010 = vxpose.xlu0.b32.cont [5/16] %v3978, 128
        %4011 = vxpose.xlu0.b32.cont [6/16] %v3979, 128
        %4012 = vxpose.xlu0.b32.cont [7/16] %v3980, 128
        %4013 = vxpose.xlu0.b32.cont [8/16] %v3981, 128
        %4014 = vxpose.xlu0.b32.cont [9/16] %v3982, 128
        %4015 = vxpose.xlu0.b32.cont [10/16] %v3983, 128
        %4016 = vxpose.xlu0.b32.cont [11/16] %v3984, 128
        %4017 = vxpose.xlu0.b32.cont [12/16] %v3985, 128
        %4018 = vxpose.xlu0.b32.cont [13/16] %v3986, 128
        %4019 = vxpose.xlu0.b32.cont [14/16] %v3987, 128
        %4020 = vxpose.xlu0.b32.cont [15/16] %v3988, 128
        %4021 = vxpose.xlu0.b32.end [16/16] %v3989, 128
        %v4022 = vpop.trf.xlu0
        %v4023 = vpop.trf.xlu0
        %v4024 = vpop.trf.xlu0
        %v4025 = vpop.trf.xlu0
        %v4026 = vpop.trf.xlu0
        %v4027 = vpop.trf.xlu0
        %v4028 = vpop.trf.xlu0
        %v4029 = vpop.trf.xlu0
        %v4030 = vpop.trf.xlu0
        %v4031 = vpop.trf.xlu0
        %v4032 = vpop.trf.xlu0
        %v4033 = vpop.trf.xlu0
        %v4034 = vpop.trf.xlu0
        %v4035 = vpop.trf.xlu0
        %v4036 = vpop.trf.xlu0
        %v4037 = vpop.trf.xlu0
        %4038 = vxpose.xlu0.b32.start [1/16] %v3990, 128
        %4039 = vxpose.xlu0.b32.cont [2/16] %v3991, 128
        %4040 = vxpose.xlu0.b32.cont [3/16] %v3992, 128
        %4041 = vxpose.xlu0.b32.cont [4/16] %v3993, 128
        %4042 = vxpose.xlu0.b32.cont [5/16] %v3994, 128
        %4043 = vxpose.xlu0.b32.cont [6/16] %v3995, 128
        %4044 = vxpose.xlu0.b32.cont [7/16] %v3996, 128
        %4045 = vxpose.xlu0.b32.cont [8/16] %v3997, 128
        %4046 = vxpose.xlu0.b32.cont [9/16] %v3998, 128
        %4047 = vxpose.xlu0.b32.cont [10/16] %v3999, 128
        %4048 = vxpose.xlu0.b32.cont [11/16] %v4000, 128
        %4049 = vxpose.xlu0.b32.cont [12/16] %v4001, 128
        %4050 = vxpose.xlu0.b32.cont [13/16] %v4002, 128
        %4051 = vxpose.xlu0.b32.cont [14/16] %v4003, 128
        %4052 = vxpose.xlu0.b32.cont [15/16] %v4004, 128
        %4053 = vxpose.xlu0.b32.end [16/16] %v4005, 128
        %v4054 = vpop.trf.xlu0
        %v4055 = vpop.trf.xlu0
        %v4056 = vpop.trf.xlu0
        %v4057 = vpop.trf.xlu0
        %v4058 = vpop.trf.xlu0
        %v4059 = vpop.trf.xlu0
        %v4060 = vpop.trf.xlu0
        %v4061 = vpop.trf.xlu0
        %v4062 = vpop.trf.xlu0
        %v4063 = vpop.trf.xlu0
        %v4064 = vpop.trf.xlu0
        %v4065 = vpop.trf.xlu0
        %v4066 = vpop.trf.xlu0
        %v4067 = vpop.trf.xlu0
        %v4068 = vpop.trf.xlu0
        %v4069 = vpop.trf.xlu0
        %4070 = vst [vmem:[%s217] sm:$0xff] %v4022
        %4071 = vst [vmem:[%s217 + $0x8] sm:$0xff] %v4054
        %s4072 = sand.u32 %s137, 1
        %s4073 = scalar_lea.sflag [#allocation3], %s4072
        %s4074 = sand.u32 %s137, 1
        %s4075 = smul.addr %s4074, 16
        %s4076 = scalar_lea.vmem [#allocation2], %s4075
        // Predicated region
        $region41: #{tpu_custom_call.1} parent=39 // pred_check
          %p4077 = pneg %p147
        $region42: #{tpu_custom_call.1} parent=39 // pred_check_branch
          %4079 = sbr.rel (%p4077) target = $region44
        $region43: #{tpu_custom_call.1} parent=39 // pred_region
          %s4081 = ssub.s32 256, 256
          %4082 = vsyncadd %s4073, %s4081
          %s4083 = smul.addr %s19, 2
          %s4084 = smul.addr %s4083, 128
          %s4085 = scalar_lea.hbm %s5, %s4084
          %s4087 = sshll.u32 %s4076, 4
          %s4088 = int_to_ptr.vmem [resolvable:$true] %s4087
          %4090 = dma.vmem_to_hbm [thread:$0]  %s4088, 256, %s4085, %s4073
        $region44: #{tpu_custom_call.1} parent=39 // pred_fallthru
          _
      $region40: #{tpu_custom_call.1} parent=5 // pred_fallthru
        _
      %p4091 = scmp.le.s32.totalorder 2, %s14
      // Predicated region
      $region45: #{tpu_custom_call.1} parent=5 // pred_check
        %p4092 = pneg %p4091
      $region46: #{tpu_custom_call.1} parent=5 // pred_check_branch
        %4094 = sbr.rel (%p4092) target = $region48
      $region47: #{tpu_custom_call.1} parent=5 // pred_region
        %s4095 = ssub.s32 %s14, 2
        // Predicated region
        $region49: #{tpu_custom_call.1} parent=47 // pred_check
          %p4096 = pneg %p153
        $region50: #{tpu_custom_call.1} parent=47 // pred_check_branch
          %4098 = sbr.rel (%p4096) target = $region52
        $region51: #{tpu_custom_call.1} parent=47 // pred_region
          %s4099 = sand.u32 %s138, 1
          %s4100 = scalar_lea.sflag [#allocation3], %s4099
          %s4101 = sand.u32 %s138, 1
          %s4102 = smul.addr %s4101, 16
          %s4103 = scalar_lea.vmem [#allocation2], %s4102
          %4104 = dma.done %s4100, 256
        $region52: #{tpu_custom_call.1} parent=47 // pred_fallthru
          _
      $region48: #{tpu_custom_call.1} parent=5 // pred_fallthru
        _
    $region6: #{tpu_custom_call.1} parent=1 // loop_footer
      %s18 = sadd.s32 1, %s14
    $region7: #{tpu_custom_call.1} parent=1 // loop_footer_branch
      %13 = sbr.rel target = $region3
    $region8: #{tpu_custom_call.1} parent=1 // loop_exit
      _
    %4105 = vsyncpa [#allocation3], 1
    %s4106 = scalar_lea.sflag [#allocation3], 1
    %4107 = vsyncpa %s4106, 1

</llo_original>
